<compile_context>
chip_gen: v6e
topology: v6e:2x2x1
jax: 0.10.0
libtpu: 0.0.40
codegen_flags: <defaults>
</compile_context>

<pallas_src>
import functools

import jax
import jax.numpy as jnp
from jax.experimental import pallas as pl
from jax.experimental.pallas import tpu as pltpu

HIDDEN = 120          # logical hidden width of the PyTorch module
HPAD = 128            # hidden width padded to one full vreg lane count
TB_MAX_DEFAULT = 4096  # default max batch tile (multiple of 256)


def mlp_kernel(x_ref, w1_ref, b1_ref, w2_ref, b2_ref, w3_ref, b3_ref,
               w4_ref, b4_ref, o_ref, *, use_bf16):
    """Feature-major MLP: activations are (HPAD, tb) with the batch in lanes."""
    x = x_ref[...]                                            # (1, tb)
    # Layer 1: Linear(1, 120) is an outer product -> plain VPU broadcast.
    h = jnp.maximum(w1_ref[...] * x + b1_ref[...], 0.0)       # (HPAD, tb)

    def mm(w_ref, a):
        if use_bf16:
            # bf16 operands, f32 accumulation: fills the 256-wide MXU lanes at
            # full bf16 rate on v5e/v6e/v7x.
            return jnp.dot(w_ref[...].astype(jnp.bfloat16),
                           a.astype(jnp.bfloat16),
                           preferred_element_type=jnp.float32)
        # f32 operands with explicitly pinned full-precision multipass matmul.
        return jnp.dot(w_ref[...], a,
                       precision=jax.lax.Precision.HIGHEST,
                       preferred_element_type=jnp.float32)

    # Layers 2 / 3: the only real matmuls -> MXU.
    h = jnp.maximum(mm(w2_ref, h) + b2_ref[...], 0.0)          # (HPAD, tb)
    h = jnp.maximum(mm(w3_ref, h) + b3_ref[...], 0.0)          # (HPAD, tb)
    # Layer 4: Linear(120, 1) -> VPU multiply + cross-sublane reduction (XLU).
    out = jnp.sum(h * w4_ref[...], axis=0, keepdims=True) + b4_ref[...]
    o_ref[...] = out.astype(o_ref.dtype)                       # (1, tb) lane-dense


def _round_up(v, m):
    return -(-v // m) * m


def _choose_tb(n, tb_max):
    """Adaptive lane tile for the batch axis.

    Tiny batches get a single minimally-padded tile; larger batches aim for
    >= 2 grid steps (so v7x's second TensorCore gets work) while capping at
    tb_max (multiple of 256 keeps the v6e/v7x MXU N-dim full) to amortize
    per-grid-step overhead.
    """
    if n <= 256:
        return _round_up(max(n, 1), 128)
    return max(256, min(tb_max, _round_up(-(-n // 2), 256)))


@functools.partial(jax.jit, static_argnames=("tb_max", "use_bf16"))
def nonlinear_model_forward(x, params, tb_max=TB_MAX_DEFAULT, use_bf16=False):
    """x: [N, 1] float32 -> [N, 1] float32."""
    n = x.shape[0]
    tb = _choose_tb(n, tb_max)
    n_pad = _round_up(n, tb)

    # Lane-dense, feature-major input: (N,1) -> (1,N) -> zero-pad to (1,n_pad).
    xt = jnp.pad(x.reshape(1, n), ((0, 0), (0, n_pad - n)))

    w1, b1 = params["w1"], params["b1"]   # (HPAD, 1),    (HPAD, 1)
    w2, b2 = params["w2"], params["b2"]   # (HPAD, HPAD), (HPAD, 1)
    w3, b3 = params["w3"], params["b3"]   # (HPAD, HPAD), (HPAD, 1)
    w4, b4 = params["w4"], params["b4"]   # (HPAD, 1),    (1, 1)
    if use_bf16:
        w2 = w2.astype(jnp.bfloat16)
        w3 = w3.astype(jnp.bfloat16)

    # Full-array resident blocks for the (tiny) weights; lane-tiled blocks for
    # the input / output.
    rep = lambda a: pl.BlockSpec(a.shape, lambda i: (0, 0))
    grid_spec = pltpu.PrefetchScalarGridSpec(
        num_scalar_prefetch=0,
        grid=(n_pad // tb,),
        in_specs=[
            pl.BlockSpec((1, tb), lambda i: (0, i)),   # x (lane-dense)
            rep(w1), rep(b1),
            rep(w2), rep(b2),
            rep(w3), rep(b3),
            rep(w4), rep(b4),
        ],
        out_specs=pl.BlockSpec((1, tb), lambda i: (0, i)),
    )
    out = pl.pallas_call(
        functools.partial(mlp_kernel, use_bf16=use_bf16),
        out_shape=jax.ShapeDtypeStruct((1, n_pad), jnp.float32),
        grid_spec=grid_spec,
        compiler_params=pltpu.CompilerParams(
            dimension_semantics=("parallel",)),   # shards batch tiles on v7x
    )(xt, w1, b1, w2, b2, w3, b3, w4, b4)

    return out[0, :n].reshape(n, 1)


def init_torch_params(key):
    """PyTorch-convention params: W is (out, in), b is (out,).

    Mimics nn.Linear's default init (uniform +-1/sqrt(fan_in)).
    """
    dims = [(HIDDEN, 1), (HIDDEN, HIDDEN), (HIDDEN, HIDDEN), (1, HIDDEN)]
    raw = {}
    for idx, (out_f, in_f) in enumerate(dims, start=1):
        key, kw, kb = jax.random.split(key, 3)
        bound = 1.0 / jnp.sqrt(jnp.float32(in_f))
        raw[f"w{idx}"] = jax.random.uniform(kw, (out_f, in_f), jnp.float32,
                                            -bound, bound)
        raw[f"b{idx}"] = jax.random.uniform(kb, (out_f,), jnp.float32,
                                            -bound, bound)
    return raw


def pack_params(raw):
    """Zero-pad 120 -> 128 and lay weights out for the feature-major kernel."""
    def pad_to(a, shape):
        return jnp.pad(a, [(0, t - s) for s, t in zip(a.shape, shape)])

    p = {}
    # Layer 1: (120,1) weight column; bias as a column.
    p["w1"] = pad_to(raw["w1"], (HPAD, 1))
    p["b1"] = pad_to(raw["b1"].reshape(HIDDEN, 1), (HPAD, 1))
    # Layers 2/3: keep PyTorch (out, in) orientation -> kernel computes W @ h.
    p["w2"] = pad_to(raw["w2"], (HPAD, HPAD))
    p["b2"] = pad_to(raw["b2"].reshape(HIDDEN, 1), (HPAD, 1))
    p["w3"] = pad_to(raw["w3"], (HPAD, HPAD))
    p["b3"] = pad_to(raw["b3"].reshape(HIDDEN, 1), (HPAD, 1))
    # Layer 4: (1,120) row -> (128,1) column for the sublane reduction.
    p["w4"] = pad_to(raw["w4"].reshape(HIDDEN, 1), (HPAD, 1))
    p["b4"] = raw["b4"].reshape(1, 1)
    return p


def reference_forward(x, raw):
    """Plain-JAX replica of the PyTorch module (x @ W.T + b per layer)."""
    h = jnp.maximum(x @ raw["w1"].T + raw["b1"], 0.0)
    h = jnp.maximum(h @ raw["w2"].T + raw["b2"], 0.0)
    h = jnp.maximum(h @ raw["w3"].T + raw["b3"], 0.0)
    return h @ raw["w4"].T + raw["b4"]


if __name__ == "__main__":
    key = jax.random.PRNGKey(0)
    key, kx = jax.random.split(key)
    raw = init_torch_params(key)
    params = pack_params(raw)

    # x has shape [batch, 1] just like the PyTorch module expects.
    x = jax.random.normal(kx, (16, 1), dtype=jnp.float32)
    ref = reference_forward(x, raw)

    # Faithful f32 path (precision pinned to HIGHEST).  Small batch -> tb=128.
    out = jax.block_until_ready(nonlinear_model_forward(x, params))
    assert out.shape == (16, 1)
    assert jnp.allclose(out, ref, atol=1e-5, rtol=1e-5), "f32 path mismatch"

    # bf16-operand fast path (MXU-fill win on v6e/v7x); looser tolerance.
    out_bf16 = jax.block_until_ready(
        nonlinear_model_forward(x, params, use_bf16=True))
    assert out_bf16.shape == (16, 1)
    assert jnp.allclose(out_bf16, ref, atol=1e-1, rtol=1e-1), "bf16 path mismatch"

    # Larger batch exercises the adaptive tile, padding, and the >=2-step
    # parallel grid (both v7x TensorCores get work).
    key, kx2 = jax.random.split(key)
    x2 = jax.random.normal(kx2, (1000, 1), dtype=jnp.float32)
    out2 = jax.block_until_ready(nonlinear_model_forward(x2, params))
    ref2 = reference_forward(x2, raw)
    assert out2.shape == (1000, 1)
    assert jnp.allclose(out2, ref2, atol=1e-4, rtol=1e-4), "multi-tile mismatch"

    print("KERNEL_OK")
</pallas_src>

<mosaic_0001>
module attributes {stable_mosaic.version = 11 : i64} {
  func.func @mlp_kernel(%arg0: i32, %arg1: memref<1x128xf32, #tpu.memory_space<vmem>>, %arg2: memref<128x1xf32, #tpu.memory_space<vmem>>, %arg3: memref<128x1xf32, #tpu.memory_space<vmem>>, %arg4: memref<128x128xf32, #tpu.memory_space<vmem>>, %arg5: memref<128x1xf32, #tpu.memory_space<vmem>>, %arg6: memref<128x128xf32, #tpu.memory_space<vmem>>, %arg7: memref<128x1xf32, #tpu.memory_space<vmem>>, %arg8: memref<128x1xf32, #tpu.memory_space<vmem>>, %arg9: memref<1x1xf32, #tpu.memory_space<vmem>>, %arg10: memref<1x128xf32, #tpu.memory_space<vmem>>) attributes {dimension_semantics = [#tpu.dimension_semantics<parallel>], iteration_bounds = array<i64: 1>, scalar_prefetch = 0 : i64, scratch_operands = 0 : i64, tpu.core_type = #tpu.core_type<tc>, window_params = [{transform_indices = @transform_0, window_bounds = array<i64: 1, 128>}, {pipeline_mode = #tpu.pipeline_mode<synchronous>, transform_indices = @transform_1, window_bounds = array<i64: 128, 1>}, {pipeline_mode = #tpu.pipeline_mode<synchronous>, transform_indices = @transform_2, window_bounds = array<i64: 128, 1>}, {pipeline_mode = #tpu.pipeline_mode<synchronous>, transform_indices = @transform_3, window_bounds = array<i64: 128, 128>}, {pipeline_mode = #tpu.pipeline_mode<synchronous>, transform_indices = @transform_4, window_bounds = array<i64: 128, 1>}, {pipeline_mode = #tpu.pipeline_mode<synchronous>, transform_indices = @transform_5, window_bounds = array<i64: 128, 128>}, {pipeline_mode = #tpu.pipeline_mode<synchronous>, transform_indices = @transform_6, window_bounds = array<i64: 128, 1>}, {pipeline_mode = #tpu.pipeline_mode<synchronous>, transform_indices = @transform_7, window_bounds = array<i64: 128, 1>}, {pipeline_mode = #tpu.pipeline_mode<synchronous>, transform_indices = @transform_8, window_bounds = array<i64: 1, 1>}, {transform_indices = @transform_9, window_bounds = array<i64: 1, 128>}]} {
    %c0 = arith.constant 0 : index
    %c0_0 = arith.constant 0 : index
    %0 = vector.load %arg1[%c0, %c0_0] : memref<1x128xf32, #tpu.memory_space<vmem>>, vector<1x128xf32>
    %c0_1 = arith.constant 0 : index
    %c0_2 = arith.constant 0 : index
    %1 = vector.load %arg2[%c0_1, %c0_2] : memref<128x1xf32, #tpu.memory_space<vmem>>, vector<128x1xf32>
    %2 = vector.broadcast %1 : vector<128x1xf32> to vector<128x128xf32>
    %3 = vector.broadcast %0 : vector<1x128xf32> to vector<128x128xf32>
    %4 = arith.mulf %2, %3 : vector<128x128xf32>
    %c0_3 = arith.constant 0 : index
    %c0_4 = arith.constant 0 : index
    %5 = vector.load %arg3[%c0_3, %c0_4] : memref<128x1xf32, #tpu.memory_space<vmem>>, vector<128x1xf32>
    %6 = vector.broadcast %5 : vector<128x1xf32> to vector<128x128xf32>
    %7 = arith.addf %4, %6 : vector<128x128xf32>
    %cst = arith.constant 0.000000e+00 : f32
    %8 = vector.broadcast %cst : f32 to vector<128x128xf32>
    %9 = arith.maximumf %7, %8 : vector<128x128xf32>
    %c0_5 = arith.constant 0 : index
    %c0_6 = arith.constant 0 : index
    %10 = vector.load %arg4[%c0_5, %c0_6] : memref<128x128xf32, #tpu.memory_space<vmem>>, vector<128x128xf32>
    %cst_7 = arith.constant dense<0.000000e+00> : vector<128x128xf32>
    %11 = tpu.matmul %10, %9, %cst_7 {dimension_numbers = #tpu.dot_dimension_numbers<[1], [0], [0], [1], [0, 0, 1, 1], [], []>, precision = #tpu.contract_precision<fp32>} : vector<128x128xf32>, vector<128x128xf32>, vector<128x128xf32> -> vector<128x128xf32>
    %c0_8 = arith.constant 0 : index
    %c0_9 = arith.constant 0 : index
    %12 = vector.load %arg5[%c0_8, %c0_9] : memref<128x1xf32, #tpu.memory_space<vmem>>, vector<128x1xf32>
    %13 = vector.broadcast %12 : vector<128x1xf32> to vector<128x128xf32>
    %14 = arith.addf %11, %13 : vector<128x128xf32>
    %cst_10 = arith.constant 0.000000e+00 : f32
    %15 = vector.broadcast %cst_10 : f32 to vector<128x128xf32>
    %16 = arith.maximumf %14, %15 : vector<128x128xf32>
    %c0_11 = arith.constant 0 : index
    %c0_12 = arith.constant 0 : index
    %17 = vector.load %arg6[%c0_11, %c0_12] : memref<128x128xf32, #tpu.memory_space<vmem>>, vector<128x128xf32>
    %cst_13 = arith.constant dense<0.000000e+00> : vector<128x128xf32>
    %18 = tpu.matmul %17, %16, %cst_13 {dimension_numbers = #tpu.dot_dimension_numbers<[1], [0], [0], [1], [0, 0, 1, 1], [], []>, precision = #tpu.contract_precision<fp32>} : vector<128x128xf32>, vector<128x128xf32>, vector<128x128xf32> -> vector<128x128xf32>
    %c0_14 = arith.constant 0 : index
    %c0_15 = arith.constant 0 : index
    %19 = vector.load %arg7[%c0_14, %c0_15] : memref<128x1xf32, #tpu.memory_space<vmem>>, vector<128x1xf32>
    %20 = vector.broadcast %19 : vector<128x1xf32> to vector<128x128xf32>
    %21 = arith.addf %18, %20 : vector<128x128xf32>
    %cst_16 = arith.constant 0.000000e+00 : f32
    %22 = vector.broadcast %cst_16 : f32 to vector<128x128xf32>
    %23 = arith.maximumf %21, %22 : vector<128x128xf32>
    %c0_17 = arith.constant 0 : index
    %c0_18 = arith.constant 0 : index
    %24 = vector.load %arg8[%c0_17, %c0_18] : memref<128x1xf32, #tpu.memory_space<vmem>>, vector<128x1xf32>
    %25 = vector.broadcast %24 : vector<128x1xf32> to vector<128x128xf32>
    %26 = arith.mulf %23, %25 : vector<128x128xf32>
    %cst_19 = arith.constant dense<0.000000e+00> : vector<128xf32>
    %27 = vector.multi_reduction <add>, %26, %cst_19 [0] : vector<128x128xf32> to vector<128xf32>
    %28 = vector.shape_cast %27 : vector<128xf32> to vector<1x128xf32>
    %c0_20 = arith.constant 0 : index
    %c0_21 = arith.constant 0 : index
    %29 = vector.load %arg9[%c0_20, %c0_21] : memref<1x1xf32, #tpu.memory_space<vmem>>, vector<1x1xf32>
    %30 = vector.broadcast %29 : vector<1x1xf32> to vector<1x128xf32>
    %31 = arith.addf %28, %30 : vector<1x128xf32>
    %c0_22 = arith.constant 0 : index
    %c0_23 = arith.constant 0 : index
    %32 = vector.load %arg10[%c0_22, %c0_23] : memref<1x128xf32, #tpu.memory_space<vmem>>, vector<1x128xf32>
    tpu.vector_store %arg10[%c0_22, %c0_23], %31 {strides = array<i32>} : memref<1x128xf32, #tpu.memory_space<vmem>>, vector<1x128xf32>,
    return
  }
  func.func @transform_0(%arg0: i32) -> (i32, i32) {
    %c0_i32 = arith.constant 0 : i32
    %c0_i32_0 = arith.constant 0 : i32
    return %c0_i32, %arg0 : i32, i32
  }
  func.func @transform_1(%arg0: i32) -> (i32, i32) {
    %c0_i32 = arith.constant 0 : i32
    %c0_i32_0 = arith.constant 0 : i32
    %c0_i32_1 = arith.constant 0 : i32
    return %c0_i32, %c0_i32_0 : i32, i32
  }
  func.func @transform_2(%arg0: i32) -> (i32, i32) {
    %c0_i32 = arith.constant 0 : i32
    %c0_i32_0 = arith.constant 0 : i32
    %c0_i32_1 = arith.constant 0 : i32
    return %c0_i32, %c0_i32_0 : i32, i32
  }
  func.func @transform_3(%arg0: i32) -> (i32, i32) {
    %c0_i32 = arith.constant 0 : i32
    %c0_i32_0 = arith.constant 0 : i32
    %c0_i32_1 = arith.constant 0 : i32
    return %c0_i32, %c0_i32_0 : i32, i32
  }
  func.func @transform_4(%arg0: i32) -> (i32, i32) {
    %c0_i32 = arith.constant 0 : i32
    %c0_i32_0 = arith.constant 0 : i32
    %c0_i32_1 = arith.constant 0 : i32
    return %c0_i32, %c0_i32_0 : i32, i32
  }
  func.func @transform_5(%arg0: i32) -> (i32, i32) {
    %c0_i32 = arith.constant 0 : i32
    %c0_i32_0 = arith.constant 0 : i32
    %c0_i32_1 = arith.constant 0 : i32
    return %c0_i32, %c0_i32_0 : i32, i32
  }
  func.func @transform_6(%arg0: i32) -> (i32, i32) {
    %c0_i32 = arith.constant 0 : i32
    %c0_i32_0 = arith.constant 0 : i32
    %c0_i32_1 = arith.constant 0 : i32
    return %c0_i32, %c0_i32_0 : i32, i32
  }
  func.func @transform_7(%arg0: i32) -> (i32, i32) {
    %c0_i32 = arith.constant 0 : i32
    %c0_i32_0 = arith.constant 0 : i32
    %c0_i32_1 = arith.constant 0 : i32
    return %c0_i32, %c0_i32_0 : i32, i32
  }
  func.func @transform_8(%arg0: i32) -> (i32, i32) {
    %c0_i32 = arith.constant 0 : i32
    %c0_i32_0 = arith.constant 0 : i32
    %c0_i32_1 = arith.constant 0 : i32
    return %c0_i32, %c0_i32_0 : i32, i32
  }
  func.func @transform_9(%arg0: i32) -> (i32, i32) {
    %c0_i32 = arith.constant 0 : i32
    %c0_i32_0 = arith.constant 0 : i32
    return %c0_i32, %arg0 : i32, i32
  }
}

</mosaic_0001>

<llo_original>
// kernel: nonlinear_model_forward.1
$region0: #{nonlinear_model_forward.1}
  #allocation0 [shape = 'u32[]', space=smem, size = 0x4, offset = 0x4, fixed_abs, tag = 'smem constant byte address 0x4 - core index']
  #allocation1 [shape = 'u32[144,128]{1,0:T(1,128)}', space=vmem, size = 0x12000, scoped, tag = 'internal scratch']
  #allocation2 [shape = 'f32[1,1]{1,0:T(1,128)S(1)}', space=vmem, size = 0x200, scoped, tag = 'scoped memory for nonlinear_model_forward.1']
  %s0 = inlined_call_operand.vmem [shape: f32[1,128], index: 0, kind: input, shape index: {}]
  %s1 = inlined_call_operand.vmem [shape: f32[128,1], index: 1, kind: input, shape index: {}]
  %s2 = inlined_call_operand.vmem [shape: f32[128,1], index: 2, kind: input, shape index: {}]
  %s3 = inlined_call_operand.vmem [shape: f32[128,128], index: 3, kind: input, shape index: {}]
  %s4 = inlined_call_operand.vmem [shape: f32[128,1], index: 4, kind: input, shape index: {}]
  %s5 = inlined_call_operand.vmem [shape: f32[128,128], index: 5, kind: input, shape index: {}]
  %s6 = inlined_call_operand.vmem [shape: f32[128,1], index: 6, kind: input, shape index: {}]
  %s7 = inlined_call_operand.vmem [shape: f32[128,1], index: 7, kind: input, shape index: {}]
  %s8 = inlined_call_operand.<no memory space> [shape: f32[1,1], index: 8, kind: input, shape index: {}]
  %s9 = inlined_call_operand.vmem [shape: f32[1,128], index: 9, kind: output, shape index: {}]
  %s10 = sld [smem:[#allocation0]]
  $region46: #{nonlinear_model_forward.1} parent=0
    _
  %s12 = ssub.s32 1, %s10
  %s13 = scalar_select 0, %s12, %s10
  %v14 = vstv %s8
  %15 = vst [vmem:[#allocation2] sm:$0x1] %v14
  // Predicated region
  $region2: #{nonlinear_model_forward.1} parent=0 // pred_check
    _
  $region3: #{nonlinear_model_forward.1} parent=0 // pred_check_branch
    %17 = sbr.rel (0) target = $region5
  $region4: #{nonlinear_model_forward.1} parent=0 // pred_region
    _
  $region5: #{nonlinear_model_forward.1} parent=0 // pred_fallthru
    _
  // Predicated region
  $region6: #{nonlinear_model_forward.1} parent=0 // pred_check
    _
  $region7: #{nonlinear_model_forward.1} parent=0 // pred_check_branch
    %19 = sbr.rel (0) target = $region9
  $region8: #{nonlinear_model_forward.1} parent=0 // pred_region
    _
  $region9: #{nonlinear_model_forward.1} parent=0 // pred_fallthru
    _
  // Predicated region
  $region10: #{nonlinear_model_forward.1} parent=0 // pred_check
    _
  $region11: #{nonlinear_model_forward.1} parent=0 // pred_check_branch
    %21 = sbr.rel (0) target = $region13
  $region12: #{nonlinear_model_forward.1} parent=0 // pred_region
    _
  $region13: #{nonlinear_model_forward.1} parent=0 // pred_fallthru
    _
  // Predicated region
  $region14: #{nonlinear_model_forward.1} parent=0 // pred_check
    _
  $region15: #{nonlinear_model_forward.1} parent=0 // pred_check_branch
    %23 = sbr.rel (0) target = $region17
  $region16: #{nonlinear_model_forward.1} parent=0 // pred_region
    _
  $region17: #{nonlinear_model_forward.1} parent=0 // pred_fallthru
    _
  // Predicated region
  $region18: #{nonlinear_model_forward.1} parent=0 // pred_check
    _
  $region19: #{nonlinear_model_forward.1} parent=0 // pred_check_branch
    %25 = sbr.rel (0) target = $region21
  $region20: #{nonlinear_model_forward.1} parent=0 // pred_region
    _
  $region21: #{nonlinear_model_forward.1} parent=0 // pred_fallthru
    _
  // Predicated region
  $region22: #{nonlinear_model_forward.1} parent=0 // pred_check
    _
  $region23: #{nonlinear_model_forward.1} parent=0 // pred_check_branch
    %27 = sbr.rel (0) target = $region25
  $region24: #{nonlinear_model_forward.1} parent=0 // pred_region
    _
  $region25: #{nonlinear_model_forward.1} parent=0 // pred_fallthru
    _
  // Predicated region
  $region26: #{nonlinear_model_forward.1} parent=0 // pred_check
    _
  $region27: #{nonlinear_model_forward.1} parent=0 // pred_check_branch
    %29 = sbr.rel (0) target = $region29
  $region28: #{nonlinear_model_forward.1} parent=0 // pred_region
    _
  $region29: #{nonlinear_model_forward.1} parent=0 // pred_fallthru
    _
  // Predicated region
  $region30: #{nonlinear_model_forward.1} parent=0 // pred_check
    _
  $region31: #{nonlinear_model_forward.1} parent=0 // pred_check_branch
    %31 = sbr.rel (0) target = $region33
  $region32: #{nonlinear_model_forward.1} parent=0 // pred_region
    _
  $region33: #{nonlinear_model_forward.1} parent=0 // pred_fallthru
    _
  // Predicated region
  $region34: #{nonlinear_model_forward.1} parent=0 // pred_check
    _
  $region35: #{nonlinear_model_forward.1} parent=0 // pred_check_branch
    %33 = sbr.rel (0) target = $region37
  $region36: #{nonlinear_model_forward.1} parent=0 // pred_region
    _
  $region37: #{nonlinear_model_forward.1} parent=0 // pred_fallthru
    _
  %v34 = vld [vmem:[%s0] sm:$0x1]
  %v35 = vld [vmem:[%s1] sm:$0xff]
  %v36 = vld [vmem:[%s1 + $0x8] sm:$0xff]
  %v37 = vld [vmem:[%s1 + $0x10] sm:$0xff]
  %v38 = vld [vmem:[%s1 + $0x18] sm:$0xff]
  %v39 = vld [vmem:[%s1 + $0x20] sm:$0xff]
  %v40 = vld [vmem:[%s1 + $0x28] sm:$0xff]
  %v41 = vld [vmem:[%s1 + $0x30] sm:$0xff]
  %v42 = vld [vmem:[%s1 + $0x38] sm:$0xff]
  %v43 = vld [vmem:[%s1 + $0x40] sm:$0xff]
  %v44 = vld [vmem:[%s1 + $0x48] sm:$0xff]
  %v45 = vld [vmem:[%s1 + $0x50] sm:$0xff]
  %v46 = vld [vmem:[%s1 + $0x58] sm:$0xff]
  %v47 = vld [vmem:[%s1 + $0x60] sm:$0xff]
  %v48 = vld [vmem:[%s1 + $0x68] sm:$0xff]
  %v49 = vld [vmem:[%s1 + $0x70] sm:$0xff]
  %v50 = vld [vmem:[%s1 + $0x78] sm:$0xff]
  %52 = vset.pattern.permute.xlu0 0
  %53 = vperm.xlu0 %52, %v35
  %v54 = vpop.permute.xlu0 %53
  %57 = vset.pattern.permute.xlu0 0
  %58 = vperm.xlu0 %57, %v36
  %v59 = vpop.permute.xlu0 %58
  %62 = vset.pattern.permute.xlu0 0
  %63 = vperm.xlu0 %62, %v37
  %v64 = vpop.permute.xlu0 %63
  %67 = vset.pattern.permute.xlu0 0
  %68 = vperm.xlu0 %67, %v38
  %v69 = vpop.permute.xlu0 %68
  %72 = vset.pattern.permute.xlu0 0
  %73 = vperm.xlu0 %72, %v39
  %v74 = vpop.permute.xlu0 %73
  %77 = vset.pattern.permute.xlu0 0
  %78 = vperm.xlu0 %77, %v40
  %v79 = vpop.permute.xlu0 %78
  %82 = vset.pattern.permute.xlu0 0
  %83 = vperm.xlu0 %82, %v41
  %v84 = vpop.permute.xlu0 %83
  %87 = vset.pattern.permute.xlu0 0
  %88 = vperm.xlu0 %87, %v42
  %v89 = vpop.permute.xlu0 %88
  %92 = vset.pattern.permute.xlu0 0
  %93 = vperm.xlu0 %92, %v43
  %v94 = vpop.permute.xlu0 %93
  %97 = vset.pattern.permute.xlu0 0
  %98 = vperm.xlu0 %97, %v44
  %v99 = vpop.permute.xlu0 %98
  %102 = vset.pattern.permute.xlu0 0
  %103 = vperm.xlu0 %102, %v45
  %v104 = vpop.permute.xlu0 %103
  %107 = vset.pattern.permute.xlu0 0
  %108 = vperm.xlu0 %107, %v46
  %v109 = vpop.permute.xlu0 %108
  %112 = vset.pattern.permute.xlu0 0
  %113 = vperm.xlu0 %112, %v47
  %v114 = vpop.permute.xlu0 %113
  %117 = vset.pattern.permute.xlu0 0
  %118 = vperm.xlu0 %117, %v48
  %v119 = vpop.permute.xlu0 %118
  %122 = vset.pattern.permute.xlu0 0
  %123 = vperm.xlu0 %122, %v49
  %v124 = vpop.permute.xlu0 %123
  %127 = vset.pattern.permute.xlu0 0
  %128 = vperm.xlu0 %127, %v50
  %v129 = vpop.permute.xlu0 %128
  %v132 = vlaneseq
  %v133 = vshrl.u32 %v132, 7
  %v134 = vsub.s32 0, %v133
  %v135 = vrot.slane %v34, %v134
  %v137 = vmul.f32 %v54, %v135
  %v138 = vmul.f32 %v59, %v135
  %v139 = vmul.f32 %v64, %v135
  %v140 = vmul.f32 %v69, %v135
  %v141 = vmul.f32 %v74, %v135
  %v142 = vmul.f32 %v79, %v135
  %v143 = vmul.f32 %v84, %v135
  %v144 = vmul.f32 %v89, %v135
  %v145 = vmul.f32 %v94, %v135
  %v146 = vmul.f32 %v99, %v135
  %v147 = vmul.f32 %v104, %v135
  %v148 = vmul.f32 %v109, %v135
  %v149 = vmul.f32 %v114, %v135
  %v150 = vmul.f32 %v119, %v135
  %v151 = vmul.f32 %v124, %v135
  %v152 = vmul.f32 %v129, %v135
  %v153 = vld [vmem:[%s2] sm:$0xff]
  %v154 = vld [vmem:[%s2 + $0x8] sm:$0xff]
  %v155 = vld [vmem:[%s2 + $0x10] sm:$0xff]
  %v156 = vld [vmem:[%s2 + $0x18] sm:$0xff]
  %v157 = vld [vmem:[%s2 + $0x20] sm:$0xff]
  %v158 = vld [vmem:[%s2 + $0x28] sm:$0xff]
  %v159 = vld [vmem:[%s2 + $0x30] sm:$0xff]
  %v160 = vld [vmem:[%s2 + $0x38] sm:$0xff]
  %v161 = vld [vmem:[%s2 + $0x40] sm:$0xff]
  %v162 = vld [vmem:[%s2 + $0x48] sm:$0xff]
  %v163 = vld [vmem:[%s2 + $0x50] sm:$0xff]
  %v164 = vld [vmem:[%s2 + $0x58] sm:$0xff]
  %v165 = vld [vmem:[%s2 + $0x60] sm:$0xff]
  %v166 = vld [vmem:[%s2 + $0x68] sm:$0xff]
  %v167 = vld [vmem:[%s2 + $0x70] sm:$0xff]
  %v168 = vld [vmem:[%s2 + $0x78] sm:$0xff]
  %170 = vset.pattern.permute.xlu0 0
  %171 = vperm.xlu0 %170, %v153
  %v172 = vpop.permute.xlu0 %171
  %175 = vset.pattern.permute.xlu0 0
  %176 = vperm.xlu0 %175, %v154
  %v177 = vpop.permute.xlu0 %176
  %180 = vset.pattern.permute.xlu0 0
  %181 = vperm.xlu0 %180, %v155
  %v182 = vpop.permute.xlu0 %181
  %185 = vset.pattern.permute.xlu0 0
  %186 = vperm.xlu0 %185, %v156
  %v187 = vpop.permute.xlu0 %186
  %190 = vset.pattern.permute.xlu0 0
  %191 = vperm.xlu0 %190, %v157
  %v192 = vpop.permute.xlu0 %191
  %195 = vset.pattern.permute.xlu0 0
  %196 = vperm.xlu0 %195, %v158
  %v197 = vpop.permute.xlu0 %196
  %200 = vset.pattern.permute.xlu0 0
  %201 = vperm.xlu0 %200, %v159
  %v202 = vpop.permute.xlu0 %201
  %205 = vset.pattern.permute.xlu0 0
  %206 = vperm.xlu0 %205, %v160
  %v207 = vpop.permute.xlu0 %206
  %210 = vset.pattern.permute.xlu0 0
  %211 = vperm.xlu0 %210, %v161
  %v212 = vpop.permute.xlu0 %211
  %215 = vset.pattern.permute.xlu0 0
  %216 = vperm.xlu0 %215, %v162
  %v217 = vpop.permute.xlu0 %216
  %220 = vset.pattern.permute.xlu0 0
  %221 = vperm.xlu0 %220, %v163
  %v222 = vpop.permute.xlu0 %221
  %225 = vset.pattern.permute.xlu0 0
  %226 = vperm.xlu0 %225, %v164
  %v227 = vpop.permute.xlu0 %226
  %230 = vset.pattern.permute.xlu0 0
  %231 = vperm.xlu0 %230, %v165
  %v232 = vpop.permute.xlu0 %231
  %235 = vset.pattern.permute.xlu0 0
  %236 = vperm.xlu0 %235, %v166
  %v237 = vpop.permute.xlu0 %236
  %240 = vset.pattern.permute.xlu0 0
  %241 = vperm.xlu0 %240, %v167
  %v242 = vpop.permute.xlu0 %241
  %245 = vset.pattern.permute.xlu0 0
  %246 = vperm.xlu0 %245, %v168
  %v247 = vpop.permute.xlu0 %246
  %v249 = vadd.f32 %v137, %v172
  %v250 = vadd.f32 %v138, %v177
  %v251 = vadd.f32 %v139, %v182
  %v252 = vadd.f32 %v140, %v187
  %v253 = vadd.f32 %v141, %v192
  %v254 = vadd.f32 %v142, %v197
  %v255 = vadd.f32 %v143, %v202
  %v256 = vadd.f32 %v144, %v207
  %v257 = vadd.f32 %v145, %v212
  %v258 = vadd.f32 %v146, %v217
  %v259 = vadd.f32 %v147, %v222
  %v260 = vadd.f32 %v148, %v227
  %v261 = vadd.f32 %v149, %v232
  %v262 = vadd.f32 %v150, %v237
  %v263 = vadd.f32 %v151, %v242
  %v264 = vadd.f32 %v152, %v247
  %v265 = vmax.f32 %v249, 0.0
  %v266 = vmax.f32 %v250, 0.0
  %v267 = vmax.f32 %v251, 0.0
  %v268 = vmax.f32 %v252, 0.0
  %v269 = vmax.f32 %v253, 0.0
  %v270 = vmax.f32 %v254, 0.0
  %v271 = vmax.f32 %v255, 0.0
  %v272 = vmax.f32 %v256, 0.0
  %v273 = vmax.f32 %v257, 0.0
  %v274 = vmax.f32 %v258, 0.0
  %v275 = vmax.f32 %v259, 0.0
  %v276 = vmax.f32 %v260, 0.0
  %v277 = vmax.f32 %v261, 0.0
  %v278 = vmax.f32 %v262, 0.0
  %v279 = vmax.f32 %v263, 0.0
  %v280 = vmax.f32 %v264, 0.0
  %v281 = vld [vmem:[%s3] sm:$0xff]
  %v282 = vld [vmem:[%s3 + $0x8] sm:$0xff]
  %v283 = vld [vmem:[%s3 + $0x10] sm:$0xff]
  %v284 = vld [vmem:[%s3 + $0x18] sm:$0xff]
  %v285 = vld [vmem:[%s3 + $0x20] sm:$0xff]
  %v286 = vld [vmem:[%s3 + $0x28] sm:$0xff]
  %v287 = vld [vmem:[%s3 + $0x30] sm:$0xff]
  %v288 = vld [vmem:[%s3 + $0x38] sm:$0xff]
  %v289 = vld [vmem:[%s3 + $0x40] sm:$0xff]
  %v290 = vld [vmem:[%s3 + $0x48] sm:$0xff]
  %v291 = vld [vmem:[%s3 + $0x50] sm:$0xff]
  %v292 = vld [vmem:[%s3 + $0x58] sm:$0xff]
  %v293 = vld [vmem:[%s3 + $0x60] sm:$0xff]
  %v294 = vld [vmem:[%s3 + $0x68] sm:$0xff]
  %v295 = vld [vmem:[%s3 + $0x70] sm:$0xff]
  %v296 = vld [vmem:[%s3 + $0x78] sm:$0xff]
  %v297 = vld [vmem:[%s4] sm:$0xff]
  %v298 = vld [vmem:[%s4 + $0x8] sm:$0xff]
  %v299 = vld [vmem:[%s4 + $0x10] sm:$0xff]
  %v300 = vld [vmem:[%s4 + $0x18] sm:$0xff]
  %v301 = vld [vmem:[%s4 + $0x20] sm:$0xff]
  %v302 = vld [vmem:[%s4 + $0x28] sm:$0xff]
  %v303 = vld [vmem:[%s4 + $0x30] sm:$0xff]
  %v304 = vld [vmem:[%s4 + $0x38] sm:$0xff]
  %v305 = vld [vmem:[%s4 + $0x40] sm:$0xff]
  %v306 = vld [vmem:[%s4 + $0x48] sm:$0xff]
  %v307 = vld [vmem:[%s4 + $0x50] sm:$0xff]
  %v308 = vld [vmem:[%s4 + $0x58] sm:$0xff]
  %v309 = vld [vmem:[%s4 + $0x60] sm:$0xff]
  %v310 = vld [vmem:[%s4 + $0x68] sm:$0xff]
  %v311 = vld [vmem:[%s4 + $0x70] sm:$0xff]
  %v312 = vld [vmem:[%s4 + $0x78] sm:$0xff]
  %314 = vset.pattern.permute.xlu0 0
  %315 = vperm.xlu0 %314, %v297
  %v316 = vpop.permute.xlu0 %315
  %319 = vset.pattern.permute.xlu0 0
  %320 = vperm.xlu0 %319, %v298
  %v321 = vpop.permute.xlu0 %320
  %324 = vset.pattern.permute.xlu0 0
  %325 = vperm.xlu0 %324, %v299
  %v326 = vpop.permute.xlu0 %325
  %329 = vset.pattern.permute.xlu0 0
  %330 = vperm.xlu0 %329, %v300
  %v331 = vpop.permute.xlu0 %330
  %334 = vset.pattern.permute.xlu0 0
  %335 = vperm.xlu0 %334, %v301
  %v336 = vpop.permute.xlu0 %335
  %339 = vset.pattern.permute.xlu0 0
  %340 = vperm.xlu0 %339, %v302
  %v341 = vpop.permute.xlu0 %340
  %344 = vset.pattern.permute.xlu0 0
  %345 = vperm.xlu0 %344, %v303
  %v346 = vpop.permute.xlu0 %345
  %349 = vset.pattern.permute.xlu0 0
  %350 = vperm.xlu0 %349, %v304
  %v351 = vpop.permute.xlu0 %350
  %354 = vset.pattern.permute.xlu0 0
  %355 = vperm.xlu0 %354, %v305
  %v356 = vpop.permute.xlu0 %355
  %359 = vset.pattern.permute.xlu0 0
  %360 = vperm.xlu0 %359, %v306
  %v361 = vpop.permute.xlu0 %360
  %364 = vset.pattern.permute.xlu0 0
  %365 = vperm.xlu0 %364, %v307
  %v366 = vpop.permute.xlu0 %365
  %369 = vset.pattern.permute.xlu0 0
  %370 = vperm.xlu0 %369, %v308
  %v371 = vpop.permute.xlu0 %370
  %374 = vset.pattern.permute.xlu0 0
  %375 = vperm.xlu0 %374, %v309
  %v376 = vpop.permute.xlu0 %375
  %379 = vset.pattern.permute.xlu0 0
  %380 = vperm.xlu0 %379, %v310
  %v381 = vpop.permute.xlu0 %380
  %384 = vset.pattern.permute.xlu0 0
  %385 = vperm.xlu0 %384, %v311
  %v386 = vpop.permute.xlu0 %385
  %389 = vset.pattern.permute.xlu0 0
  %390 = vperm.xlu0 %389, %v312
  %v391 = vpop.permute.xlu0 %390
  %393 = vmatprep.subr.mxu0 0.0
  %v394 = vand.u32 %v280, 4294901760
  %395 = vmatpush1.msra.mxu0 %v394
  %396 = vmatprep.subr.mxu0 0.0
  %v397 = vand.u32 %v279, 4294901760
  %398 = vmatpush1.msra.mxu0 %v397
  %399 = vmatprep.subr.mxu0 0.0
  %v400 = vand.u32 %v278, 4294901760
  %401 = vmatpush1.msra.mxu0 %v400
  %402 = vmatprep.subr.mxu0 0.0
  %v403 = vand.u32 %v277, 4294901760
  %404 = vmatpush1.msra.mxu0 %v403
  %405 = vmatprep.subr.mxu0 0.0
  %v406 = vand.u32 %v276, 4294901760
  %407 = vmatpush1.msra.mxu0 %v406
  %408 = vmatprep.subr.mxu0 0.0
  %v409 = vand.u32 %v275, 4294901760
  %410 = vmatpush1.msra.mxu0 %v409
  %411 = vmatprep.subr.mxu0 0.0
  %v412 = vand.u32 %v274, 4294901760
  %413 = vmatpush1.msra.mxu0 %v412
  %414 = vmatprep.subr.mxu0 0.0
  %v415 = vand.u32 %v273, 4294901760
  %416 = vmatpush1.msra.mxu0 %v415
  %417 = vmatprep.subr.mxu0 0.0
  %v418 = vand.u32 %v272, 4294901760
  %419 = vmatpush1.msra.mxu0 %v418
  %420 = vmatprep.subr.mxu0 0.0
  %v421 = vand.u32 %v271, 4294901760
  %422 = vmatpush1.msra.mxu0 %v421
  %423 = vmatprep.subr.mxu0 0.0
  %v424 = vand.u32 %v270, 4294901760
  %425 = vmatpush1.msra.mxu0 %v424
  %426 = vmatprep.subr.mxu0 0.0
  %v427 = vand.u32 %v269, 4294901760
  %428 = vmatpush1.msra.mxu0 %v427
  %429 = vmatprep.subr.mxu0 0.0
  %v430 = vand.u32 %v268, 4294901760
  %431 = vmatpush1.msra.mxu0 %v430
  %432 = vmatprep.subr.mxu0 0.0
  %v433 = vand.u32 %v267, 4294901760
  %434 = vmatpush1.msra.mxu0 %v433
  %435 = vmatprep.subr.mxu0 0.0
  %v436 = vand.u32 %v266, 4294901760
  %437 = vmatpush1.msra.mxu0 %v436
  %438 = vmatprep.subr.mxu0 0.0
  %v439 = vand.u32 %v265, 4294901760
  %440 = vmatpush1.msra.mxu0 %v439
  %441 = vmatprep.subr.mxu0 0.0
  %442 = vmatpush2.msra.mxu0 0.0
  %443 = vmatprep.subr.mxu0 0.0
  %444 = vmatpush2.msra.mxu0 0.0
  %445 = vmatprep.subr.mxu0 0.0
  %446 = vmatpush2.msra.mxu0 0.0
  %447 = vmatprep.subr.mxu0 0.0
  %448 = vmatpush2.msra.mxu0 0.0
  %449 = vmatprep.subr.mxu0 0.0
  %450 = vmatpush2.msra.mxu0 0.0
  %451 = vmatprep.subr.mxu0 0.0
  %452 = vmatpush2.msra.mxu0 0.0
  %453 = vmatprep.subr.mxu0 0.0
  %454 = vmatpush2.msra.mxu0 0.0
  %455 = vmatprep.subr.mxu0 0.0
  %456 = vmatpush2.msra.mxu0 0.0
  %457 = vmatprep.subr.mxu0 0.0
  %458 = vmatpush2.msra.mxu0 0.0
  %459 = vmatprep.subr.mxu0 0.0
  %460 = vmatpush2.msra.mxu0 0.0
  %461 = vmatprep.subr.mxu0 0.0
  %462 = vmatpush2.msra.mxu0 0.0
  %463 = vmatprep.subr.mxu0 0.0
  %464 = vmatpush2.msra.mxu0 0.0
  %465 = vmatprep.subr.mxu0 0.0
  %466 = vmatpush2.msra.mxu0 0.0
  %467 = vmatprep.subr.mxu0 0.0
  %468 = vmatpush2.msra.mxu0 0.0
  %469 = vmatprep.subr.mxu0 0.0
  %470 = vmatpush2.msra.mxu0 0.0
  %471 = vmatprep.subr.mxu0 0.0
  %472 = vmatpush2.msra.mxu0 0.0
  %473 = vmatprep.mubr.f32.mxu0 0.0
  %v474 = vand.u32 %v281, 4294901760
  %v475 = vsub.f32 %v281, %v474
  %v476 = vand.u32 %v475, 4294901760
  %v477 = vsub.f32 %v475, %v476
  %v478 = vand.u32 %v477, 4294901760
  %479 = vmatmul.mubr.f32.gmra.mxu0 %v478
  %v480 = vpop.f32.mrf.mxu0
  %v481 = vadd.f32 %v316, %v480
  %v482 = vpop.f32.mrf.mxu0
  %483 = vmatprep.mubr.f32.mxu0 0.0
  %v484 = vand.u32 %v282, 4294901760
  %v485 = vsub.f32 %v282, %v484
  %v486 = vand.u32 %v485, 4294901760
  %v487 = vsub.f32 %v485, %v486
  %v488 = vand.u32 %v487, 4294901760
  %489 = vmatmul.mubr.f32.gmra.mxu0 %v488
  %v490 = vpop.f32.mrf.mxu0
  %v491 = vadd.f32 %v321, %v490
  %v492 = vpop.f32.mrf.mxu0
  %493 = vmatprep.mubr.f32.mxu0 0.0
  %v494 = vand.u32 %v283, 4294901760
  %v495 = vsub.f32 %v283, %v494
  %v496 = vand.u32 %v495, 4294901760
  %v497 = vsub.f32 %v495, %v496
  %v498 = vand.u32 %v497, 4294901760
  %499 = vmatmul.mubr.f32.gmra.mxu0 %v498
  %v500 = vpop.f32.mrf.mxu0
  %v501 = vadd.f32 %v326, %v500
  %v502 = vpop.f32.mrf.mxu0
  %503 = vmatprep.mubr.f32.mxu0 0.0
  %v504 = vand.u32 %v284, 4294901760
  %v505 = vsub.f32 %v284, %v504
  %v506 = vand.u32 %v505, 4294901760
  %v507 = vsub.f32 %v505, %v506
  %v508 = vand.u32 %v507, 4294901760
  %509 = vmatmul.mubr.f32.gmra.mxu0 %v508
  %v510 = vpop.f32.mrf.mxu0
  %v511 = vadd.f32 %v331, %v510
  %v512 = vpop.f32.mrf.mxu0
  %513 = vmatprep.mubr.f32.mxu0 0.0
  %v514 = vand.u32 %v285, 4294901760
  %v515 = vsub.f32 %v285, %v514
  %v516 = vand.u32 %v515, 4294901760
  %v517 = vsub.f32 %v515, %v516
  %v518 = vand.u32 %v517, 4294901760
  %519 = vmatmul.mubr.f32.gmra.mxu0 %v518
  %v520 = vpop.f32.mrf.mxu0
  %v521 = vadd.f32 %v336, %v520
  %v522 = vpop.f32.mrf.mxu0
  %523 = vmatprep.mubr.f32.mxu0 0.0
  %v524 = vand.u32 %v286, 4294901760
  %v525 = vsub.f32 %v286, %v524
  %v526 = vand.u32 %v525, 4294901760
  %v527 = vsub.f32 %v525, %v526
  %v528 = vand.u32 %v527, 4294901760
  %529 = vmatmul.mubr.f32.gmra.mxu0 %v528
  %v530 = vpop.f32.mrf.mxu0
  %v531 = vadd.f32 %v341, %v530
  %v532 = vpop.f32.mrf.mxu0
  %533 = vmatprep.mubr.f32.mxu0 0.0
  %v534 = vand.u32 %v287, 4294901760
  %v535 = vsub.f32 %v287, %v534
  %v536 = vand.u32 %v535, 4294901760
  %v537 = vsub.f32 %v535, %v536
  %v538 = vand.u32 %v537, 4294901760
  %539 = vmatmul.mubr.f32.gmra.mxu0 %v538
  %v540 = vpop.f32.mrf.mxu0
  %v541 = vadd.f32 %v346, %v540
  %v542 = vpop.f32.mrf.mxu0
  %543 = vmatprep.mubr.f32.mxu0 0.0
  %v544 = vand.u32 %v288, 4294901760
  %v545 = vsub.f32 %v288, %v544
  %v546 = vand.u32 %v545, 4294901760
  %v547 = vsub.f32 %v545, %v546
  %v548 = vand.u32 %v547, 4294901760
  %549 = vmatmul.mubr.f32.gmra.mxu0 %v548
  %v550 = vpop.f32.mrf.mxu0
  %v551 = vadd.f32 %v351, %v550
  %v552 = vpop.f32.mrf.mxu0
  %553 = vmatprep.mubr.f32.mxu0 0.0
  %v554 = vand.u32 %v289, 4294901760
  %v555 = vsub.f32 %v289, %v554
  %v556 = vand.u32 %v555, 4294901760
  %v557 = vsub.f32 %v555, %v556
  %v558 = vand.u32 %v557, 4294901760
  %559 = vmatmul.mubr.f32.gmra.mxu0 %v558
  %v560 = vpop.f32.mrf.mxu0
  %v561 = vadd.f32 %v356, %v560
  %v562 = vpop.f32.mrf.mxu0
  %563 = vmatprep.mubr.f32.mxu0 0.0
  %v564 = vand.u32 %v290, 4294901760
  %v565 = vsub.f32 %v290, %v564
  %v566 = vand.u32 %v565, 4294901760
  %v567 = vsub.f32 %v565, %v566
  %v568 = vand.u32 %v567, 4294901760
  %569 = vmatmul.mubr.f32.gmra.mxu0 %v568
  %v570 = vpop.f32.mrf.mxu0
  %v571 = vadd.f32 %v361, %v570
  %v572 = vpop.f32.mrf.mxu0
  %573 = vmatprep.mubr.f32.mxu0 0.0
  %v574 = vand.u32 %v291, 4294901760
  %v575 = vsub.f32 %v291, %v574
  %v576 = vand.u32 %v575, 4294901760
  %v577 = vsub.f32 %v575, %v576
  %v578 = vand.u32 %v577, 4294901760
  %579 = vmatmul.mubr.f32.gmra.mxu0 %v578
  %v580 = vpop.f32.mrf.mxu0
  %v581 = vadd.f32 %v366, %v580
  %v582 = vpop.f32.mrf.mxu0
  %583 = vmatprep.mubr.f32.mxu0 0.0
  %v584 = vand.u32 %v292, 4294901760
  %v585 = vsub.f32 %v292, %v584
  %v586 = vand.u32 %v585, 4294901760
  %v587 = vsub.f32 %v585, %v586
  %v588 = vand.u32 %v587, 4294901760
  %589 = vmatmul.mubr.f32.gmra.mxu0 %v588
  %v590 = vpop.f32.mrf.mxu0
  %v591 = vadd.f32 %v371, %v590
  %v592 = vpop.f32.mrf.mxu0
  %593 = vmatprep.mubr.f32.mxu0 0.0
  %v594 = vand.u32 %v293, 4294901760
  %v595 = vsub.f32 %v293, %v594
  %v596 = vand.u32 %v595, 4294901760
  %v597 = vsub.f32 %v595, %v596
  %v598 = vand.u32 %v597, 4294901760
  %599 = vmatmul.mubr.f32.gmra.mxu0 %v598
  %v600 = vpop.f32.mrf.mxu0
  %v601 = vadd.f32 %v376, %v600
  %v602 = vpop.f32.mrf.mxu0
  %603 = vmatprep.mubr.f32.mxu0 0.0
  %v604 = vand.u32 %v294, 4294901760
  %v605 = vsub.f32 %v294, %v604
  %v606 = vand.u32 %v605, 4294901760
  %v607 = vsub.f32 %v605, %v606
  %v608 = vand.u32 %v607, 4294901760
  %609 = vmatmul.mubr.f32.gmra.mxu0 %v608
  %v610 = vpop.f32.mrf.mxu0
  %v611 = vadd.f32 %v381, %v610
  %v612 = vpop.f32.mrf.mxu0
  %613 = vmatprep.mubr.f32.mxu0 0.0
  %v614 = vand.u32 %v295, 4294901760
  %v615 = vsub.f32 %v295, %v614
  %v616 = vand.u32 %v615, 4294901760
  %v617 = vsub.f32 %v615, %v616
  %v618 = vand.u32 %v617, 4294901760
  %619 = vmatmul.mubr.f32.gmra.mxu0 %v618
  %v620 = vpop.f32.mrf.mxu0
  %v621 = vadd.f32 %v386, %v620
  %v622 = vpop.f32.mrf.mxu0
  %623 = vmatprep.mubr.f32.mxu0 0.0
  %v624 = vand.u32 %v296, 4294901760
  %v625 = vsub.f32 %v296, %v624
  %v626 = vand.u32 %v625, 4294901760
  %v627 = vsub.f32 %v625, %v626
  %v628 = vand.u32 %v627, 4294901760
  %629 = vmatmul.mubr.f32.gmra.mxu0 %v628
  %v630 = vpop.f32.mrf.mxu0
  %v631 = vadd.f32 %v391, %v630
  %v632 = vpop.f32.mrf.mxu0
  %633 = vdwg.mxu0
  %634 = vmatprep.subr.mxu0 0.0
  %v635 = vand.u32 %v280, 4294901760
  %v636 = vsub.f32 %v280, %v635
  %v637 = vand.u32 %v636, 4294901760
  %v638 = vsub.f32 %v636, %v637
  %v639 = vand.u32 %v638, 4294901760
  %640 = vmatpush1.msra.mxu0 %v639
  %641 = vmatprep.subr.mxu0 0.0
  %v642 = vand.u32 %v279, 4294901760
  %v643 = vsub.f32 %v279, %v642
  %v644 = vand.u32 %v643, 4294901760
  %v645 = vsub.f32 %v643, %v644
  %v646 = vand.u32 %v645, 4294901760
  %647 = vmatpush1.msra.mxu0 %v646
  %648 = vmatprep.subr.mxu0 0.0
  %v649 = vand.u32 %v278, 4294901760
  %v650 = vsub.f32 %v278, %v649
  %v651 = vand.u32 %v650, 4294901760
  %v652 = vsub.f32 %v650, %v651
  %v653 = vand.u32 %v652, 4294901760
  %654 = vmatpush1.msra.mxu0 %v653
  %655 = vmatprep.subr.mxu0 0.0
  %v656 = vand.u32 %v277, 4294901760
  %v657 = vsub.f32 %v277, %v656
  %v658 = vand.u32 %v657, 4294901760
  %v659 = vsub.f32 %v657, %v658
  %v660 = vand.u32 %v659, 4294901760
  %661 = vmatpush1.msra.mxu0 %v660
  %662 = vmatprep.subr.mxu0 0.0
  %v663 = vand.u32 %v276, 4294901760
  %v664 = vsub.f32 %v276, %v663
  %v665 = vand.u32 %v664, 4294901760
  %v666 = vsub.f32 %v664, %v665
  %v667 = vand.u32 %v666, 4294901760
  %668 = vmatpush1.msra.mxu0 %v667
  %669 = vmatprep.subr.mxu0 0.0
  %v670 = vand.u32 %v275, 4294901760
  %v671 = vsub.f32 %v275, %v670
  %v672 = vand.u32 %v671, 4294901760
  %v673 = vsub.f32 %v671, %v672
  %v674 = vand.u32 %v673, 4294901760
  %675 = vmatpush1.msra.mxu0 %v674
  %676 = vmatprep.subr.mxu0 0.0
  %v677 = vand.u32 %v274, 4294901760
  %v678 = vsub.f32 %v274, %v677
  %v679 = vand.u32 %v678, 4294901760
  %v680 = vsub.f32 %v678, %v679
  %v681 = vand.u32 %v680, 4294901760
  %682 = vmatpush1.msra.mxu0 %v681
  %683 = vmatprep.subr.mxu0 0.0
  %v684 = vand.u32 %v273, 4294901760
  %v685 = vsub.f32 %v273, %v684
  %v686 = vand.u32 %v685, 4294901760
  %v687 = vsub.f32 %v685, %v686
  %v688 = vand.u32 %v687, 4294901760
  %689 = vmatpush1.msra.mxu0 %v688
  %690 = vmatprep.subr.mxu0 0.0
  %v691 = vand.u32 %v272, 4294901760
  %v692 = vsub.f32 %v272, %v691
  %v693 = vand.u32 %v692, 4294901760
  %v694 = vsub.f32 %v692, %v693
  %v695 = vand.u32 %v694, 4294901760
  %696 = vmatpush1.msra.mxu0 %v695
  %697 = vmatprep.subr.mxu0 0.0
  %v698 = vand.u32 %v271, 4294901760
  %v699 = vsub.f32 %v271, %v698
  %v700 = vand.u32 %v699, 4294901760
  %v701 = vsub.f32 %v699, %v700
  %v702 = vand.u32 %v701, 4294901760
  %703 = vmatpush1.msra.mxu0 %v702
  %704 = vmatprep.subr.mxu0 0.0
  %v705 = vand.u32 %v270, 4294901760
  %v706 = vsub.f32 %v270, %v705
  %v707 = vand.u32 %v706, 4294901760
  %v708 = vsub.f32 %v706, %v707
  %v709 = vand.u32 %v708, 4294901760
  %710 = vmatpush1.msra.mxu0 %v709
  %711 = vmatprep.subr.mxu0 0.0
  %v712 = vand.u32 %v269, 4294901760
  %v713 = vsub.f32 %v269, %v712
  %v714 = vand.u32 %v713, 4294901760
  %v715 = vsub.f32 %v713, %v714
  %v716 = vand.u32 %v715, 4294901760
  %717 = vmatpush1.msra.mxu0 %v716
  %718 = vmatprep.subr.mxu0 0.0
  %v719 = vand.u32 %v268, 4294901760
  %v720 = vsub.f32 %v268, %v719
  %v721 = vand.u32 %v720, 4294901760
  %v722 = vsub.f32 %v720, %v721
  %v723 = vand.u32 %v722, 4294901760
  %724 = vmatpush1.msra.mxu0 %v723
  %725 = vmatprep.subr.mxu0 0.0
  %v726 = vand.u32 %v267, 4294901760
  %v727 = vsub.f32 %v267, %v726
  %v728 = vand.u32 %v727, 4294901760
  %v729 = vsub.f32 %v727, %v728
  %v730 = vand.u32 %v729, 4294901760
  %731 = vmatpush1.msra.mxu0 %v730
  %732 = vmatprep.subr.mxu0 0.0
  %v733 = vand.u32 %v266, 4294901760
  %v734 = vsub.f32 %v266, %v733
  %v735 = vand.u32 %v734, 4294901760
  %v736 = vsub.f32 %v734, %v735
  %v737 = vand.u32 %v736, 4294901760
  %738 = vmatpush1.msra.mxu0 %v737
  %739 = vmatprep.subr.mxu0 0.0
  %v740 = vand.u32 %v265, 4294901760
  %v741 = vsub.f32 %v265, %v740
  %v742 = vand.u32 %v741, 4294901760
  %v743 = vsub.f32 %v741, %v742
  %v744 = vand.u32 %v743, 4294901760
  %745 = vmatpush1.msra.mxu0 %v744
  %746 = vmatprep.subr.mxu0 0.0
  %747 = vmatpush2.msra.mxu0 0.0
  %748 = vmatprep.subr.mxu0 0.0
  %749 = vmatpush2.msra.mxu0 0.0
  %750 = vmatprep.subr.mxu0 0.0
  %751 = vmatpush2.msra.mxu0 0.0
  %752 = vmatprep.subr.mxu0 0.0
  %753 = vmatpush2.msra.mxu0 0.0
  %754 = vmatprep.subr.mxu0 0.0
  %755 = vmatpush2.msra.mxu0 0.0
  %756 = vmatprep.subr.mxu0 0.0
  %757 = vmatpush2.msra.mxu0 0.0
  %758 = vmatprep.subr.mxu0 0.0
  %759 = vmatpush2.msra.mxu0 0.0
  %760 = vmatprep.subr.mxu0 0.0
  %761 = vmatpush2.msra.mxu0 0.0
  %762 = vmatprep.subr.mxu0 0.0
  %763 = vmatpush2.msra.mxu0 0.0
  %764 = vmatprep.subr.mxu0 0.0
  %765 = vmatpush2.msra.mxu0 0.0
  %766 = vmatprep.subr.mxu0 0.0
  %767 = vmatpush2.msra.mxu0 0.0
  %768 = vmatprep.subr.mxu0 0.0
  %769 = vmatpush2.msra.mxu0 0.0
  %770 = vmatprep.subr.mxu0 0.0
  %771 = vmatpush2.msra.mxu0 0.0
  %772 = vmatprep.subr.mxu0 0.0
  %773 = vmatpush2.msra.mxu0 0.0
  %774 = vmatprep.subr.mxu0 0.0
  %775 = vmatpush2.msra.mxu0 0.0
  %776 = vmatprep.subr.mxu0 0.0
  %777 = vmatpush2.msra.mxu0 0.0
  %778 = vmatprep.mubr.f32.mxu0 0.0
  %v779 = vand.u32 %v281, 4294901760
  %780 = vmatmul.mubr.f32.gmra.mxu0 %v779
  %v781 = vpop.f32.mrf.mxu0
  %v782 = vadd.f32 %v481, %v781
  %v783 = vpop.f32.mrf.mxu0
  %784 = vmatprep.mubr.f32.mxu0 0.0
  %v785 = vand.u32 %v282, 4294901760
  %786 = vmatmul.mubr.f32.gmra.mxu0 %v785
  %v787 = vpop.f32.mrf.mxu0
  %v788 = vadd.f32 %v491, %v787
  %v789 = vpop.f32.mrf.mxu0
  %790 = vmatprep.mubr.f32.mxu0 0.0
  %v791 = vand.u32 %v283, 4294901760
  %792 = vmatmul.mubr.f32.gmra.mxu0 %v791
  %v793 = vpop.f32.mrf.mxu0
  %v794 = vadd.f32 %v501, %v793
  %v795 = vpop.f32.mrf.mxu0
  %796 = vmatprep.mubr.f32.mxu0 0.0
  %v797 = vand.u32 %v284, 4294901760
  %798 = vmatmul.mubr.f32.gmra.mxu0 %v797
  %v799 = vpop.f32.mrf.mxu0
  %v800 = vadd.f32 %v511, %v799
  %v801 = vpop.f32.mrf.mxu0
  %802 = vmatprep.mubr.f32.mxu0 0.0
  %v803 = vand.u32 %v285, 4294901760
  %804 = vmatmul.mubr.f32.gmra.mxu0 %v803
  %v805 = vpop.f32.mrf.mxu0
  %v806 = vadd.f32 %v521, %v805
  %v807 = vpop.f32.mrf.mxu0
  %808 = vmatprep.mubr.f32.mxu0 0.0
  %v809 = vand.u32 %v286, 4294901760
  %810 = vmatmul.mubr.f32.gmra.mxu0 %v809
  %v811 = vpop.f32.mrf.mxu0
  %v812 = vadd.f32 %v531, %v811
  %v813 = vpop.f32.mrf.mxu0
  %814 = vmatprep.mubr.f32.mxu0 0.0
  %v815 = vand.u32 %v287, 4294901760
  %816 = vmatmul.mubr.f32.gmra.mxu0 %v815
  %v817 = vpop.f32.mrf.mxu0
  %v818 = vadd.f32 %v541, %v817
  %v819 = vpop.f32.mrf.mxu0
  %820 = vmatprep.mubr.f32.mxu0 0.0
  %v821 = vand.u32 %v288, 4294901760
  %822 = vmatmul.mubr.f32.gmra.mxu0 %v821
  %v823 = vpop.f32.mrf.mxu0
  %v824 = vadd.f32 %v551, %v823
  %v825 = vpop.f32.mrf.mxu0
  %826 = vmatprep.mubr.f32.mxu0 0.0
  %v827 = vand.u32 %v289, 4294901760
  %828 = vmatmul.mubr.f32.gmra.mxu0 %v827
  %v829 = vpop.f32.mrf.mxu0
  %v830 = vadd.f32 %v561, %v829
  %v831 = vpop.f32.mrf.mxu0
  %832 = vmatprep.mubr.f32.mxu0 0.0
  %v833 = vand.u32 %v290, 4294901760
  %834 = vmatmul.mubr.f32.gmra.mxu0 %v833
  %v835 = vpop.f32.mrf.mxu0
  %v836 = vadd.f32 %v571, %v835
  %v837 = vpop.f32.mrf.mxu0
  %838 = vmatprep.mubr.f32.mxu0 0.0
  %v839 = vand.u32 %v291, 4294901760
  %840 = vmatmul.mubr.f32.gmra.mxu0 %v839
  %v841 = vpop.f32.mrf.mxu0
  %v842 = vadd.f32 %v581, %v841
  %v843 = vpop.f32.mrf.mxu0
  %844 = vmatprep.mubr.f32.mxu0 0.0
  %v845 = vand.u32 %v292, 4294901760
  %846 = vmatmul.mubr.f32.gmra.mxu0 %v845
  %v847 = vpop.f32.mrf.mxu0
  %v848 = vadd.f32 %v591, %v847
  %v849 = vpop.f32.mrf.mxu0
  %850 = vmatprep.mubr.f32.mxu0 0.0
  %v851 = vand.u32 %v293, 4294901760
  %852 = vmatmul.mubr.f32.gmra.mxu0 %v851
  %v853 = vpop.f32.mrf.mxu0
  %v854 = vadd.f32 %v601, %v853
  %v855 = vpop.f32.mrf.mxu0
  %856 = vmatprep.mubr.f32.mxu0 0.0
  %v857 = vand.u32 %v294, 4294901760
  %858 = vmatmul.mubr.f32.gmra.mxu0 %v857
  %v859 = vpop.f32.mrf.mxu0
  %v860 = vadd.f32 %v611, %v859
  %v861 = vpop.f32.mrf.mxu0
  %862 = vmatprep.mubr.f32.mxu0 0.0
  %v863 = vand.u32 %v295, 4294901760
  %864 = vmatmul.mubr.f32.gmra.mxu0 %v863
  %v865 = vpop.f32.mrf.mxu0
  %v866 = vadd.f32 %v621, %v865
  %v867 = vpop.f32.mrf.mxu0
  %868 = vmatprep.mubr.f32.mxu0 0.0
  %v869 = vand.u32 %v296, 4294901760
  %870 = vmatmul.mubr.f32.gmra.mxu0 %v869
  %v871 = vpop.f32.mrf.mxu0
  %v872 = vadd.f32 %v631, %v871
  %v873 = vpop.f32.mrf.mxu0
  %874 = vdwg.mxu0
  %875 = vmatprep.subr.mxu0 0.0
  %v876 = vand.u32 %v280, 4294901760
  %v877 = vsub.f32 %v280, %v876
  %878 = vmatpush1.msra.mxu0 %v877
  %879 = vmatprep.subr.mxu0 0.0
  %v880 = vand.u32 %v279, 4294901760
  %v881 = vsub.f32 %v279, %v880
  %882 = vmatpush1.msra.mxu0 %v881
  %883 = vmatprep.subr.mxu0 0.0
  %v884 = vand.u32 %v278, 4294901760
  %v885 = vsub.f32 %v278, %v884
  %886 = vmatpush1.msra.mxu0 %v885
  %887 = vmatprep.subr.mxu0 0.0
  %v888 = vand.u32 %v277, 4294901760
  %v889 = vsub.f32 %v277, %v888
  %890 = vmatpush1.msra.mxu0 %v889
  %891 = vmatprep.subr.mxu0 0.0
  %v892 = vand.u32 %v276, 4294901760
  %v893 = vsub.f32 %v276, %v892
  %894 = vmatpush1.msra.mxu0 %v893
  %895 = vmatprep.subr.mxu0 0.0
  %v896 = vand.u32 %v275, 4294901760
  %v897 = vsub.f32 %v275, %v896
  %898 = vmatpush1.msra.mxu0 %v897
  %899 = vmatprep.subr.mxu0 0.0
  %v900 = vand.u32 %v274, 4294901760
  %v901 = vsub.f32 %v274, %v900
  %902 = vmatpush1.msra.mxu0 %v901
  %903 = vmatprep.subr.mxu0 0.0
  %v904 = vand.u32 %v273, 4294901760
  %v905 = vsub.f32 %v273, %v904
  %906 = vmatpush1.msra.mxu0 %v905
  %907 = vmatprep.subr.mxu0 0.0
  %v908 = vand.u32 %v272, 4294901760
  %v909 = vsub.f32 %v272, %v908
  %910 = vmatpush1.msra.mxu0 %v909
  %911 = vmatprep.subr.mxu0 0.0
  %v912 = vand.u32 %v271, 4294901760
  %v913 = vsub.f32 %v271, %v912
  %914 = vmatpush1.msra.mxu0 %v913
  %915 = vmatprep.subr.mxu0 0.0
  %v916 = vand.u32 %v270, 4294901760
  %v917 = vsub.f32 %v270, %v916
  %918 = vmatpush1.msra.mxu0 %v917
  %919 = vmatprep.subr.mxu0 0.0
  %v920 = vand.u32 %v269, 4294901760
  %v921 = vsub.f32 %v269, %v920
  %922 = vmatpush1.msra.mxu0 %v921
  %923 = vmatprep.subr.mxu0 0.0
  %v924 = vand.u32 %v268, 4294901760
  %v925 = vsub.f32 %v268, %v924
  %926 = vmatpush1.msra.mxu0 %v925
  %927 = vmatprep.subr.mxu0 0.0
  %v928 = vand.u32 %v267, 4294901760
  %v929 = vsub.f32 %v267, %v928
  %930 = vmatpush1.msra.mxu0 %v929
  %931 = vmatprep.subr.mxu0 0.0
  %v932 = vand.u32 %v266, 4294901760
  %v933 = vsub.f32 %v266, %v932
  %934 = vmatpush1.msra.mxu0 %v933
  %935 = vmatprep.subr.mxu0 0.0
  %v936 = vand.u32 %v265, 4294901760
  %v937 = vsub.f32 %v265, %v936
  %938 = vmatpush1.msra.mxu0 %v937
  %939 = vmatprep.subr.mxu0 0.0
  %940 = vmatpush2.msra.mxu0 0.0
  %941 = vmatprep.subr.mxu0 0.0
  %942 = vmatpush2.msra.mxu0 0.0
  %943 = vmatprep.subr.mxu0 0.0
  %944 = vmatpush2.msra.mxu0 0.0
  %945 = vmatprep.subr.mxu0 0.0
  %946 = vmatpush2.msra.mxu0 0.0
  %947 = vmatprep.subr.mxu0 0.0
  %948 = vmatpush2.msra.mxu0 0.0
  %949 = vmatprep.subr.mxu0 0.0
  %950 = vmatpush2.msra.mxu0 0.0
  %951 = vmatprep.subr.mxu0 0.0
  %952 = vmatpush2.msra.mxu0 0.0
  %953 = vmatprep.subr.mxu0 0.0
  %954 = vmatpush2.msra.mxu0 0.0
  %955 = vmatprep.subr.mxu0 0.0
  %956 = vmatpush2.msra.mxu0 0.0
  %957 = vmatprep.subr.mxu0 0.0
  %958 = vmatpush2.msra.mxu0 0.0
  %959 = vmatprep.subr.mxu0 0.0
  %960 = vmatpush2.msra.mxu0 0.0
  %961 = vmatprep.subr.mxu0 0.0
  %962 = vmatpush2.msra.mxu0 0.0
  %963 = vmatprep.subr.mxu0 0.0
  %964 = vmatpush2.msra.mxu0 0.0
  %965 = vmatprep.subr.mxu0 0.0
  %966 = vmatpush2.msra.mxu0 0.0
  %967 = vmatprep.subr.mxu0 0.0
  %968 = vmatpush2.msra.mxu0 0.0
  %969 = vmatprep.subr.mxu0 0.0
  %970 = vmatpush2.msra.mxu0 0.0
  %971 = vmatprep.mubr.f32.mxu0 0.0
  %v972 = vand.u32 %v281, 4294901760
  %v973 = vsub.f32 %v281, %v972
  %974 = vmatmul.mubr.f32.gmra.mxu0 %v973
  %v975 = vpop.f32.mrf.mxu0
  %v976 = vadd.f32 %v782, %v975
  %v977 = vpop.f32.mrf.mxu0
  %978 = vmatprep.mubr.f32.mxu0 0.0
  %v979 = vand.u32 %v282, 4294901760
  %v980 = vsub.f32 %v282, %v979
  %981 = vmatmul.mubr.f32.gmra.mxu0 %v980
  %v982 = vpop.f32.mrf.mxu0
  %v983 = vadd.f32 %v788, %v982
  %v984 = vpop.f32.mrf.mxu0
  %985 = vmatprep.mubr.f32.mxu0 0.0
  %v986 = vand.u32 %v283, 4294901760
  %v987 = vsub.f32 %v283, %v986
  %988 = vmatmul.mubr.f32.gmra.mxu0 %v987
  %v989 = vpop.f32.mrf.mxu0
  %v990 = vadd.f32 %v794, %v989
  %v991 = vpop.f32.mrf.mxu0
  %992 = vmatprep.mubr.f32.mxu0 0.0
  %v993 = vand.u32 %v284, 4294901760
  %v994 = vsub.f32 %v284, %v993
  %995 = vmatmul.mubr.f32.gmra.mxu0 %v994
  %v996 = vpop.f32.mrf.mxu0
  %v997 = vadd.f32 %v800, %v996
  %v998 = vpop.f32.mrf.mxu0
  %999 = vmatprep.mubr.f32.mxu0 0.0
  %v1000 = vand.u32 %v285, 4294901760
  %v1001 = vsub.f32 %v285, %v1000
  %1002 = vmatmul.mubr.f32.gmra.mxu0 %v1001
  %v1003 = vpop.f32.mrf.mxu0
  %v1004 = vadd.f32 %v806, %v1003
  %v1005 = vpop.f32.mrf.mxu0
  %1006 = vmatprep.mubr.f32.mxu0 0.0
  %v1007 = vand.u32 %v286, 4294901760
  %v1008 = vsub.f32 %v286, %v1007
  %1009 = vmatmul.mubr.f32.gmra.mxu0 %v1008
  %v1010 = vpop.f32.mrf.mxu0
  %v1011 = vadd.f32 %v812, %v1010
  %v1012 = vpop.f32.mrf.mxu0
  %1013 = vmatprep.mubr.f32.mxu0 0.0
  %v1014 = vand.u32 %v287, 4294901760
  %v1015 = vsub.f32 %v287, %v1014
  %1016 = vmatmul.mubr.f32.gmra.mxu0 %v1015
  %v1017 = vpop.f32.mrf.mxu0
  %v1018 = vadd.f32 %v818, %v1017
  %v1019 = vpop.f32.mrf.mxu0
  %1020 = vmatprep.mubr.f32.mxu0 0.0
  %v1021 = vand.u32 %v288, 4294901760
  %v1022 = vsub.f32 %v288, %v1021
  %1023 = vmatmul.mubr.f32.gmra.mxu0 %v1022
  %v1024 = vpop.f32.mrf.mxu0
  %v1025 = vadd.f32 %v824, %v1024
  %v1026 = vpop.f32.mrf.mxu0
  %1027 = vmatprep.mubr.f32.mxu0 0.0
  %v1028 = vand.u32 %v289, 4294901760
  %v1029 = vsub.f32 %v289, %v1028
  %1030 = vmatmul.mubr.f32.gmra.mxu0 %v1029
  %v1031 = vpop.f32.mrf.mxu0
  %v1032 = vadd.f32 %v830, %v1031
  %v1033 = vpop.f32.mrf.mxu0
  %1034 = vmatprep.mubr.f32.mxu0 0.0
  %v1035 = vand.u32 %v290, 4294901760
  %v1036 = vsub.f32 %v290, %v1035
  %1037 = vmatmul.mubr.f32.gmra.mxu0 %v1036
  %v1038 = vpop.f32.mrf.mxu0
  %v1039 = vadd.f32 %v836, %v1038
  %v1040 = vpop.f32.mrf.mxu0
  %1041 = vmatprep.mubr.f32.mxu0 0.0
  %v1042 = vand.u32 %v291, 4294901760
  %v1043 = vsub.f32 %v291, %v1042
  %1044 = vmatmul.mubr.f32.gmra.mxu0 %v1043
  %v1045 = vpop.f32.mrf.mxu0
  %v1046 = vadd.f32 %v842, %v1045
  %v1047 = vpop.f32.mrf.mxu0
  %1048 = vmatprep.mubr.f32.mxu0 0.0
  %v1049 = vand.u32 %v292, 4294901760
  %v1050 = vsub.f32 %v292, %v1049
  %1051 = vmatmul.mubr.f32.gmra.mxu0 %v1050
  %v1052 = vpop.f32.mrf.mxu0
  %v1053 = vadd.f32 %v848, %v1052
  %v1054 = vpop.f32.mrf.mxu0
  %1055 = vmatprep.mubr.f32.mxu0 0.0
  %v1056 = vand.u32 %v293, 4294901760
  %v1057 = vsub.f32 %v293, %v1056
  %1058 = vmatmul.mubr.f32.gmra.mxu0 %v1057
  %v1059 = vpop.f32.mrf.mxu0
  %v1060 = vadd.f32 %v854, %v1059
  %v1061 = vpop.f32.mrf.mxu0
  %1062 = vmatprep.mubr.f32.mxu0 0.0
  %v1063 = vand.u32 %v294, 4294901760
  %v1064 = vsub.f32 %v294, %v1063
  %1065 = vmatmul.mubr.f32.gmra.mxu0 %v1064
  %v1066 = vpop.f32.mrf.mxu0
  %v1067 = vadd.f32 %v860, %v1066
  %v1068 = vpop.f32.mrf.mxu0
  %1069 = vmatprep.mubr.f32.mxu0 0.0
  %v1070 = vand.u32 %v295, 4294901760
  %v1071 = vsub.f32 %v295, %v1070
  %1072 = vmatmul.mubr.f32.gmra.mxu0 %v1071
  %v1073 = vpop.f32.mrf.mxu0
  %v1074 = vadd.f32 %v866, %v1073
  %v1075 = vpop.f32.mrf.mxu0
  %1076 = vmatprep.mubr.f32.mxu0 0.0
  %v1077 = vand.u32 %v296, 4294901760
  %v1078 = vsub.f32 %v296, %v1077
  %1079 = vmatmul.mubr.f32.gmra.mxu0 %v1078
  %v1080 = vpop.f32.mrf.mxu0
  %v1081 = vadd.f32 %v872, %v1080
  %v1082 = vpop.f32.mrf.mxu0
  %1083 = vdwg.mxu0
  %1084 = vmatprep.subr.mxu0 0.0
  %v1085 = vand.u32 %v280, 4294901760
  %1086 = vmatpush1.msra.mxu0 %v1085
  %1087 = vmatprep.subr.mxu0 0.0
  %v1088 = vand.u32 %v279, 4294901760
  %1089 = vmatpush1.msra.mxu0 %v1088
  %1090 = vmatprep.subr.mxu0 0.0
  %v1091 = vand.u32 %v278, 4294901760
  %1092 = vmatpush1.msra.mxu0 %v1091
  %1093 = vmatprep.subr.mxu0 0.0
  %v1094 = vand.u32 %v277, 4294901760
  %1095 = vmatpush1.msra.mxu0 %v1094
  %1096 = vmatprep.subr.mxu0 0.0
  %v1097 = vand.u32 %v276, 4294901760
  %1098 = vmatpush1.msra.mxu0 %v1097
  %1099 = vmatprep.subr.mxu0 0.0
  %v1100 = vand.u32 %v275, 4294901760
  %1101 = vmatpush1.msra.mxu0 %v1100
  %1102 = vmatprep.subr.mxu0 0.0
  %v1103 = vand.u32 %v274, 4294901760
  %1104 = vmatpush1.msra.mxu0 %v1103
  %1105 = vmatprep.subr.mxu0 0.0
  %v1106 = vand.u32 %v273, 4294901760
  %1107 = vmatpush1.msra.mxu0 %v1106
  %1108 = vmatprep.subr.mxu0 0.0
  %v1109 = vand.u32 %v272, 4294901760
  %1110 = vmatpush1.msra.mxu0 %v1109
  %1111 = vmatprep.subr.mxu0 0.0
  %v1112 = vand.u32 %v271, 4294901760
  %1113 = vmatpush1.msra.mxu0 %v1112
  %1114 = vmatprep.subr.mxu0 0.0
  %v1115 = vand.u32 %v270, 4294901760
  %1116 = vmatpush1.msra.mxu0 %v1115
  %1117 = vmatprep.subr.mxu0 0.0
  %v1118 = vand.u32 %v269, 4294901760
  %1119 = vmatpush1.msra.mxu0 %v1118
  %1120 = vmatprep.subr.mxu0 0.0
  %v1121 = vand.u32 %v268, 4294901760
  %1122 = vmatpush1.msra.mxu0 %v1121
  %1123 = vmatprep.subr.mxu0 0.0
  %v1124 = vand.u32 %v267, 4294901760
  %1125 = vmatpush1.msra.mxu0 %v1124
  %1126 = vmatprep.subr.mxu0 0.0
  %v1127 = vand.u32 %v266, 4294901760
  %1128 = vmatpush1.msra.mxu0 %v1127
  %1129 = vmatprep.subr.mxu0 0.0
  %v1130 = vand.u32 %v265, 4294901760
  %1131 = vmatpush1.msra.mxu0 %v1130
  %1132 = vmatprep.subr.mxu0 0.0
  %1133 = vmatpush2.msra.mxu0 0.0
  %1134 = vmatprep.subr.mxu0 0.0
  %1135 = vmatpush2.msra.mxu0 0.0
  %1136 = vmatprep.subr.mxu0 0.0
  %1137 = vmatpush2.msra.mxu0 0.0
  %1138 = vmatprep.subr.mxu0 0.0
  %1139 = vmatpush2.msra.mxu0 0.0
  %1140 = vmatprep.subr.mxu0 0.0
  %1141 = vmatpush2.msra.mxu0 0.0
  %1142 = vmatprep.subr.mxu0 0.0
  %1143 = vmatpush2.msra.mxu0 0.0
  %1144 = vmatprep.subr.mxu0 0.0
  %1145 = vmatpush2.msra.mxu0 0.0
  %1146 = vmatprep.subr.mxu0 0.0
  %1147 = vmatpush2.msra.mxu0 0.0
  %1148 = vmatprep.subr.mxu0 0.0
  %1149 = vmatpush2.msra.mxu0 0.0
  %1150 = vmatprep.subr.mxu0 0.0
  %1151 = vmatpush2.msra.mxu0 0.0
  %1152 = vmatprep.subr.mxu0 0.0
  %1153 = vmatpush2.msra.mxu0 0.0
  %1154 = vmatprep.subr.mxu0 0.0
  %1155 = vmatpush2.msra.mxu0 0.0
  %1156 = vmatprep.subr.mxu0 0.0
  %1157 = vmatpush2.msra.mxu0 0.0
  %1158 = vmatprep.subr.mxu0 0.0
  %1159 = vmatpush2.msra.mxu0 0.0
  %1160 = vmatprep.subr.mxu0 0.0
  %1161 = vmatpush2.msra.mxu0 0.0
  %1162 = vmatprep.subr.mxu0 0.0
  %1163 = vmatpush2.msra.mxu0 0.0
  %1164 = vmatprep.mubr.f32.mxu0 0.0
  %v1165 = vand.u32 %v281, 4294901760
  %v1166 = vsub.f32 %v281, %v1165
  %v1167 = vand.u32 %v1166, 4294901760
  %1168 = vmatmul.mubr.f32.gmra.mxu0 %v1167
  %v1169 = vpop.f32.mrf.mxu0
  %v1170 = vadd.f32 %v976, %v1169
  %v1171 = vpop.f32.mrf.mxu0
  %1172 = vmatprep.mubr.f32.mxu0 0.0
  %v1173 = vand.u32 %v282, 4294901760
  %v1174 = vsub.f32 %v282, %v1173
  %v1175 = vand.u32 %v1174, 4294901760
  %1176 = vmatmul.mubr.f32.gmra.mxu0 %v1175
  %v1177 = vpop.f32.mrf.mxu0
  %v1178 = vadd.f32 %v983, %v1177
  %v1179 = vpop.f32.mrf.mxu0
  %1180 = vmatprep.mubr.f32.mxu0 0.0
  %v1181 = vand.u32 %v283, 4294901760
  %v1182 = vsub.f32 %v283, %v1181
  %v1183 = vand.u32 %v1182, 4294901760
  %1184 = vmatmul.mubr.f32.gmra.mxu0 %v1183
  %v1185 = vpop.f32.mrf.mxu0
  %v1186 = vadd.f32 %v990, %v1185
  %v1187 = vpop.f32.mrf.mxu0
  %1188 = vmatprep.mubr.f32.mxu0 0.0
  %v1189 = vand.u32 %v284, 4294901760
  %v1190 = vsub.f32 %v284, %v1189
  %v1191 = vand.u32 %v1190, 4294901760
  %1192 = vmatmul.mubr.f32.gmra.mxu0 %v1191
  %v1193 = vpop.f32.mrf.mxu0
  %v1194 = vadd.f32 %v997, %v1193
  %v1195 = vpop.f32.mrf.mxu0
  %1196 = vmatprep.mubr.f32.mxu0 0.0
  %v1197 = vand.u32 %v285, 4294901760
  %v1198 = vsub.f32 %v285, %v1197
  %v1199 = vand.u32 %v1198, 4294901760
  %1200 = vmatmul.mubr.f32.gmra.mxu0 %v1199
  %v1201 = vpop.f32.mrf.mxu0
  %v1202 = vadd.f32 %v1004, %v1201
  %v1203 = vpop.f32.mrf.mxu0
  %1204 = vmatprep.mubr.f32.mxu0 0.0
  %v1205 = vand.u32 %v286, 4294901760
  %v1206 = vsub.f32 %v286, %v1205
  %v1207 = vand.u32 %v1206, 4294901760
  %1208 = vmatmul.mubr.f32.gmra.mxu0 %v1207
  %v1209 = vpop.f32.mrf.mxu0
  %v1210 = vadd.f32 %v1011, %v1209
  %v1211 = vpop.f32.mrf.mxu0
  %1212 = vmatprep.mubr.f32.mxu0 0.0
  %v1213 = vand.u32 %v287, 4294901760
  %v1214 = vsub.f32 %v287, %v1213
  %v1215 = vand.u32 %v1214, 4294901760
  %1216 = vmatmul.mubr.f32.gmra.mxu0 %v1215
  %v1217 = vpop.f32.mrf.mxu0
  %v1218 = vadd.f32 %v1018, %v1217
  %v1219 = vpop.f32.mrf.mxu0
  %1220 = vmatprep.mubr.f32.mxu0 0.0
  %v1221 = vand.u32 %v288, 4294901760
  %v1222 = vsub.f32 %v288, %v1221
  %v1223 = vand.u32 %v1222, 4294901760
  %1224 = vmatmul.mubr.f32.gmra.mxu0 %v1223
  %v1225 = vpop.f32.mrf.mxu0
  %v1226 = vadd.f32 %v1025, %v1225
  %v1227 = vpop.f32.mrf.mxu0
  %1228 = vmatprep.mubr.f32.mxu0 0.0
  %v1229 = vand.u32 %v289, 4294901760
  %v1230 = vsub.f32 %v289, %v1229
  %v1231 = vand.u32 %v1230, 4294901760
  %1232 = vmatmul.mubr.f32.gmra.mxu0 %v1231
  %v1233 = vpop.f32.mrf.mxu0
  %v1234 = vadd.f32 %v1032, %v1233
  %v1235 = vpop.f32.mrf.mxu0
  %1236 = vmatprep.mubr.f32.mxu0 0.0
  %v1237 = vand.u32 %v290, 4294901760
  %v1238 = vsub.f32 %v290, %v1237
  %v1239 = vand.u32 %v1238, 4294901760
  %1240 = vmatmul.mubr.f32.gmra.mxu0 %v1239
  %v1241 = vpop.f32.mrf.mxu0
  %v1242 = vadd.f32 %v1039, %v1241
  %v1243 = vpop.f32.mrf.mxu0
  %1244 = vmatprep.mubr.f32.mxu0 0.0
  %v1245 = vand.u32 %v291, 4294901760
  %v1246 = vsub.f32 %v291, %v1245
  %v1247 = vand.u32 %v1246, 4294901760
  %1248 = vmatmul.mubr.f32.gmra.mxu0 %v1247
  %v1249 = vpop.f32.mrf.mxu0
  %v1250 = vadd.f32 %v1046, %v1249
  %v1251 = vpop.f32.mrf.mxu0
  %1252 = vmatprep.mubr.f32.mxu0 0.0
  %v1253 = vand.u32 %v292, 4294901760
  %v1254 = vsub.f32 %v292, %v1253
  %v1255 = vand.u32 %v1254, 4294901760
  %1256 = vmatmul.mubr.f32.gmra.mxu0 %v1255
  %v1257 = vpop.f32.mrf.mxu0
  %v1258 = vadd.f32 %v1053, %v1257
  %v1259 = vpop.f32.mrf.mxu0
  %1260 = vmatprep.mubr.f32.mxu0 0.0
  %v1261 = vand.u32 %v293, 4294901760
  %v1262 = vsub.f32 %v293, %v1261
  %v1263 = vand.u32 %v1262, 4294901760
  %1264 = vmatmul.mubr.f32.gmra.mxu0 %v1263
  %v1265 = vpop.f32.mrf.mxu0
  %v1266 = vadd.f32 %v1060, %v1265
  %v1267 = vpop.f32.mrf.mxu0
  %1268 = vmatprep.mubr.f32.mxu0 0.0
  %v1269 = vand.u32 %v294, 4294901760
  %v1270 = vsub.f32 %v294, %v1269
  %v1271 = vand.u32 %v1270, 4294901760
  %1272 = vmatmul.mubr.f32.gmra.mxu0 %v1271
  %v1273 = vpop.f32.mrf.mxu0
  %v1274 = vadd.f32 %v1067, %v1273
  %v1275 = vpop.f32.mrf.mxu0
  %1276 = vmatprep.mubr.f32.mxu0 0.0
  %v1277 = vand.u32 %v295, 4294901760
  %v1278 = vsub.f32 %v295, %v1277
  %v1279 = vand.u32 %v1278, 4294901760
  %1280 = vmatmul.mubr.f32.gmra.mxu0 %v1279
  %v1281 = vpop.f32.mrf.mxu0
  %v1282 = vadd.f32 %v1074, %v1281
  %v1283 = vpop.f32.mrf.mxu0
  %1284 = vmatprep.mubr.f32.mxu0 0.0
  %v1285 = vand.u32 %v296, 4294901760
  %v1286 = vsub.f32 %v296, %v1285
  %v1287 = vand.u32 %v1286, 4294901760
  %1288 = vmatmul.mubr.f32.gmra.mxu0 %v1287
  %v1289 = vpop.f32.mrf.mxu0
  %v1290 = vadd.f32 %v1081, %v1289
  %v1291 = vpop.f32.mrf.mxu0
  %1292 = vdwg.mxu0
  %1293 = vmatprep.subr.mxu0 0.0
  %v1294 = vand.u32 %v280, 4294901760
  %v1295 = vsub.f32 %v280, %v1294
  %v1296 = vand.u32 %v1295, 4294901760
  %1297 = vmatpush1.msra.mxu0 %v1296
  %1298 = vmatprep.subr.mxu0 0.0
  %v1299 = vand.u32 %v279, 4294901760
  %v1300 = vsub.f32 %v279, %v1299
  %v1301 = vand.u32 %v1300, 4294901760
  %1302 = vmatpush1.msra.mxu0 %v1301
  %1303 = vmatprep.subr.mxu0 0.0
  %v1304 = vand.u32 %v278, 4294901760
  %v1305 = vsub.f32 %v278, %v1304
  %v1306 = vand.u32 %v1305, 4294901760
  %1307 = vmatpush1.msra.mxu0 %v1306
  %1308 = vmatprep.subr.mxu0 0.0
  %v1309 = vand.u32 %v277, 4294901760
  %v1310 = vsub.f32 %v277, %v1309
  %v1311 = vand.u32 %v1310, 4294901760
  %1312 = vmatpush1.msra.mxu0 %v1311
  %1313 = vmatprep.subr.mxu0 0.0
  %v1314 = vand.u32 %v276, 4294901760
  %v1315 = vsub.f32 %v276, %v1314
  %v1316 = vand.u32 %v1315, 4294901760
  %1317 = vmatpush1.msra.mxu0 %v1316
  %1318 = vmatprep.subr.mxu0 0.0
  %v1319 = vand.u32 %v275, 4294901760
  %v1320 = vsub.f32 %v275, %v1319
  %v1321 = vand.u32 %v1320, 4294901760
  %1322 = vmatpush1.msra.mxu0 %v1321
  %1323 = vmatprep.subr.mxu0 0.0
  %v1324 = vand.u32 %v274, 4294901760
  %v1325 = vsub.f32 %v274, %v1324
  %v1326 = vand.u32 %v1325, 4294901760
  %1327 = vmatpush1.msra.mxu0 %v1326
  %1328 = vmatprep.subr.mxu0 0.0
  %v1329 = vand.u32 %v273, 4294901760
  %v1330 = vsub.f32 %v273, %v1329
  %v1331 = vand.u32 %v1330, 4294901760
  %1332 = vmatpush1.msra.mxu0 %v1331
  %1333 = vmatprep.subr.mxu0 0.0
  %v1334 = vand.u32 %v272, 4294901760
  %v1335 = vsub.f32 %v272, %v1334
  %v1336 = vand.u32 %v1335, 4294901760
  %1337 = vmatpush1.msra.mxu0 %v1336
  %1338 = vmatprep.subr.mxu0 0.0
  %v1339 = vand.u32 %v271, 4294901760
  %v1340 = vsub.f32 %v271, %v1339
  %v1341 = vand.u32 %v1340, 4294901760
  %1342 = vmatpush1.msra.mxu0 %v1341
  %1343 = vmatprep.subr.mxu0 0.0
  %v1344 = vand.u32 %v270, 4294901760
  %v1345 = vsub.f32 %v270, %v1344
  %v1346 = vand.u32 %v1345, 4294901760
  %1347 = vmatpush1.msra.mxu0 %v1346
  %1348 = vmatprep.subr.mxu0 0.0
  %v1349 = vand.u32 %v269, 4294901760
  %v1350 = vsub.f32 %v269, %v1349
  %v1351 = vand.u32 %v1350, 4294901760
  %1352 = vmatpush1.msra.mxu0 %v1351
  %1353 = vmatprep.subr.mxu0 0.0
  %v1354 = vand.u32 %v268, 4294901760
  %v1355 = vsub.f32 %v268, %v1354
  %v1356 = vand.u32 %v1355, 4294901760
  %1357 = vmatpush1.msra.mxu0 %v1356
  %1358 = vmatprep.subr.mxu0 0.0
  %v1359 = vand.u32 %v267, 4294901760
  %v1360 = vsub.f32 %v267, %v1359
  %v1361 = vand.u32 %v1360, 4294901760
  %1362 = vmatpush1.msra.mxu0 %v1361
  %1363 = vmatprep.subr.mxu0 0.0
  %v1364 = vand.u32 %v266, 4294901760
  %v1365 = vsub.f32 %v266, %v1364
  %v1366 = vand.u32 %v1365, 4294901760
  %1367 = vmatpush1.msra.mxu0 %v1366
  %1368 = vmatprep.subr.mxu0 0.0
  %v1369 = vand.u32 %v265, 4294901760
  %v1370 = vsub.f32 %v265, %v1369
  %v1371 = vand.u32 %v1370, 4294901760
  %1372 = vmatpush1.msra.mxu0 %v1371
  %1373 = vmatprep.subr.mxu0 0.0
  %1374 = vmatpush2.msra.mxu0 0.0
  %1375 = vmatprep.subr.mxu0 0.0
  %1376 = vmatpush2.msra.mxu0 0.0
  %1377 = vmatprep.subr.mxu0 0.0
  %1378 = vmatpush2.msra.mxu0 0.0
  %1379 = vmatprep.subr.mxu0 0.0
  %1380 = vmatpush2.msra.mxu0 0.0
  %1381 = vmatprep.subr.mxu0 0.0
  %1382 = vmatpush2.msra.mxu0 0.0
  %1383 = vmatprep.subr.mxu0 0.0
  %1384 = vmatpush2.msra.mxu0 0.0
  %1385 = vmatprep.subr.mxu0 0.0
  %1386 = vmatpush2.msra.mxu0 0.0
  %1387 = vmatprep.subr.mxu0 0.0
  %1388 = vmatpush2.msra.mxu0 0.0
  %1389 = vmatprep.subr.mxu0 0.0
  %1390 = vmatpush2.msra.mxu0 0.0
  %1391 = vmatprep.subr.mxu0 0.0
  %1392 = vmatpush2.msra.mxu0 0.0
  %1393 = vmatprep.subr.mxu0 0.0
  %1394 = vmatpush2.msra.mxu0 0.0
  %1395 = vmatprep.subr.mxu0 0.0
  %1396 = vmatpush2.msra.mxu0 0.0
  %1397 = vmatprep.subr.mxu0 0.0
  %1398 = vmatpush2.msra.mxu0 0.0
  %1399 = vmatprep.subr.mxu0 0.0
  %1400 = vmatpush2.msra.mxu0 0.0
  %1401 = vmatprep.subr.mxu0 0.0
  %1402 = vmatpush2.msra.mxu0 0.0
  %1403 = vmatprep.subr.mxu0 0.0
  %1404 = vmatpush2.msra.mxu0 0.0
  %1405 = vmatprep.mubr.f32.mxu0 0.0
  %v1406 = vand.u32 %v281, 4294901760
  %1407 = vmatmul.mubr.f32.gmra.mxu0 %v1406
  %v1408 = vpop.f32.mrf.mxu0
  %v1409 = vadd.f32 %v1170, %v1408
  %v1410 = vpop.f32.mrf.mxu0
  %1411 = vmatprep.mubr.f32.mxu0 0.0
  %v1412 = vand.u32 %v282, 4294901760
  %1413 = vmatmul.mubr.f32.gmra.mxu0 %v1412
  %v1414 = vpop.f32.mrf.mxu0
  %v1415 = vadd.f32 %v1178, %v1414
  %v1416 = vpop.f32.mrf.mxu0
  %1417 = vmatprep.mubr.f32.mxu0 0.0
  %v1418 = vand.u32 %v283, 4294901760
  %1419 = vmatmul.mubr.f32.gmra.mxu0 %v1418
  %v1420 = vpop.f32.mrf.mxu0
  %v1421 = vadd.f32 %v1186, %v1420
  %v1422 = vpop.f32.mrf.mxu0
  %1423 = vmatprep.mubr.f32.mxu0 0.0
  %v1424 = vand.u32 %v284, 4294901760
  %1425 = vmatmul.mubr.f32.gmra.mxu0 %v1424
  %v1426 = vpop.f32.mrf.mxu0
  %v1427 = vadd.f32 %v1194, %v1426
  %v1428 = vpop.f32.mrf.mxu0
  %1429 = vmatprep.mubr.f32.mxu0 0.0
  %v1430 = vand.u32 %v285, 4294901760
  %1431 = vmatmul.mubr.f32.gmra.mxu0 %v1430
  %v1432 = vpop.f32.mrf.mxu0
  %v1433 = vadd.f32 %v1202, %v1432
  %v1434 = vpop.f32.mrf.mxu0
  %1435 = vmatprep.mubr.f32.mxu0 0.0
  %v1436 = vand.u32 %v286, 4294901760
  %1437 = vmatmul.mubr.f32.gmra.mxu0 %v1436
  %v1438 = vpop.f32.mrf.mxu0
  %v1439 = vadd.f32 %v1210, %v1438
  %v1440 = vpop.f32.mrf.mxu0
  %1441 = vmatprep.mubr.f32.mxu0 0.0
  %v1442 = vand.u32 %v287, 4294901760
  %1443 = vmatmul.mubr.f32.gmra.mxu0 %v1442
  %v1444 = vpop.f32.mrf.mxu0
  %v1445 = vadd.f32 %v1218, %v1444
  %v1446 = vpop.f32.mrf.mxu0
  %1447 = vmatprep.mubr.f32.mxu0 0.0
  %v1448 = vand.u32 %v288, 4294901760
  %1449 = vmatmul.mubr.f32.gmra.mxu0 %v1448
  %v1450 = vpop.f32.mrf.mxu0
  %v1451 = vadd.f32 %v1226, %v1450
  %v1452 = vpop.f32.mrf.mxu0
  %1453 = vmatprep.mubr.f32.mxu0 0.0
  %v1454 = vand.u32 %v289, 4294901760
  %1455 = vmatmul.mubr.f32.gmra.mxu0 %v1454
  %v1456 = vpop.f32.mrf.mxu0
  %v1457 = vadd.f32 %v1234, %v1456
  %v1458 = vpop.f32.mrf.mxu0
  %1459 = vmatprep.mubr.f32.mxu0 0.0
  %v1460 = vand.u32 %v290, 4294901760
  %1461 = vmatmul.mubr.f32.gmra.mxu0 %v1460
  %v1462 = vpop.f32.mrf.mxu0
  %v1463 = vadd.f32 %v1242, %v1462
  %v1464 = vpop.f32.mrf.mxu0
  %1465 = vmatprep.mubr.f32.mxu0 0.0
  %v1466 = vand.u32 %v291, 4294901760
  %1467 = vmatmul.mubr.f32.gmra.mxu0 %v1466
  %v1468 = vpop.f32.mrf.mxu0
  %v1469 = vadd.f32 %v1250, %v1468
  %v1470 = vpop.f32.mrf.mxu0
  %1471 = vmatprep.mubr.f32.mxu0 0.0
  %v1472 = vand.u32 %v292, 4294901760
  %1473 = vmatmul.mubr.f32.gmra.mxu0 %v1472
  %v1474 = vpop.f32.mrf.mxu0
  %v1475 = vadd.f32 %v1258, %v1474
  %v1476 = vpop.f32.mrf.mxu0
  %1477 = vmatprep.mubr.f32.mxu0 0.0
  %v1478 = vand.u32 %v293, 4294901760
  %1479 = vmatmul.mubr.f32.gmra.mxu0 %v1478
  %v1480 = vpop.f32.mrf.mxu0
  %v1481 = vadd.f32 %v1266, %v1480
  %v1482 = vpop.f32.mrf.mxu0
  %1483 = vmatprep.mubr.f32.mxu0 0.0
  %v1484 = vand.u32 %v294, 4294901760
  %1485 = vmatmul.mubr.f32.gmra.mxu0 %v1484
  %v1486 = vpop.f32.mrf.mxu0
  %v1487 = vadd.f32 %v1274, %v1486
  %v1488 = vpop.f32.mrf.mxu0
  %1489 = vmatprep.mubr.f32.mxu0 0.0
  %v1490 = vand.u32 %v295, 4294901760
  %1491 = vmatmul.mubr.f32.gmra.mxu0 %v1490
  %v1492 = vpop.f32.mrf.mxu0
  %v1493 = vadd.f32 %v1282, %v1492
  %v1494 = vpop.f32.mrf.mxu0
  %1495 = vmatprep.mubr.f32.mxu0 0.0
  %v1496 = vand.u32 %v296, 4294901760
  %1497 = vmatmul.mubr.f32.gmra.mxu0 %v1496
  %v1498 = vpop.f32.mrf.mxu0
  %v1499 = vadd.f32 %v1290, %v1498
  %v1500 = vpop.f32.mrf.mxu0
  %1501 = vdwg.mxu0
  %1502 = vmatprep.subr.mxu0 0.0
  %v1503 = vand.u32 %v280, 4294901760
  %1504 = vmatpush1.msra.mxu0 %v1503
  %1505 = vmatprep.subr.mxu0 0.0
  %v1506 = vand.u32 %v279, 4294901760
  %1507 = vmatpush1.msra.mxu0 %v1506
  %1508 = vmatprep.subr.mxu0 0.0
  %v1509 = vand.u32 %v278, 4294901760
  %1510 = vmatpush1.msra.mxu0 %v1509
  %1511 = vmatprep.subr.mxu0 0.0
  %v1512 = vand.u32 %v277, 4294901760
  %1513 = vmatpush1.msra.mxu0 %v1512
  %1514 = vmatprep.subr.mxu0 0.0
  %v1515 = vand.u32 %v276, 4294901760
  %1516 = vmatpush1.msra.mxu0 %v1515
  %1517 = vmatprep.subr.mxu0 0.0
  %v1518 = vand.u32 %v275, 4294901760
  %1519 = vmatpush1.msra.mxu0 %v1518
  %1520 = vmatprep.subr.mxu0 0.0
  %v1521 = vand.u32 %v274, 4294901760
  %1522 = vmatpush1.msra.mxu0 %v1521
  %1523 = vmatprep.subr.mxu0 0.0
  %v1524 = vand.u32 %v273, 4294901760
  %1525 = vmatpush1.msra.mxu0 %v1524
  %1526 = vmatprep.subr.mxu0 0.0
  %v1527 = vand.u32 %v272, 4294901760
  %1528 = vmatpush1.msra.mxu0 %v1527
  %1529 = vmatprep.subr.mxu0 0.0
  %v1530 = vand.u32 %v271, 4294901760
  %1531 = vmatpush1.msra.mxu0 %v1530
  %1532 = vmatprep.subr.mxu0 0.0
  %v1533 = vand.u32 %v270, 4294901760
  %1534 = vmatpush1.msra.mxu0 %v1533
  %1535 = vmatprep.subr.mxu0 0.0
  %v1536 = vand.u32 %v269, 4294901760
  %1537 = vmatpush1.msra.mxu0 %v1536
  %1538 = vmatprep.subr.mxu0 0.0
  %v1539 = vand.u32 %v268, 4294901760
  %1540 = vmatpush1.msra.mxu0 %v1539
  %1541 = vmatprep.subr.mxu0 0.0
  %v1542 = vand.u32 %v267, 4294901760
  %1543 = vmatpush1.msra.mxu0 %v1542
  %1544 = vmatprep.subr.mxu0 0.0
  %v1545 = vand.u32 %v266, 4294901760
  %1546 = vmatpush1.msra.mxu0 %v1545
  %1547 = vmatprep.subr.mxu0 0.0
  %v1548 = vand.u32 %v265, 4294901760
  %1549 = vmatpush1.msra.mxu0 %v1548
  %1550 = vmatprep.subr.mxu0 0.0
  %1551 = vmatpush2.msra.mxu0 0.0
  %1552 = vmatprep.subr.mxu0 0.0
  %1553 = vmatpush2.msra.mxu0 0.0
  %1554 = vmatprep.subr.mxu0 0.0
  %1555 = vmatpush2.msra.mxu0 0.0
  %1556 = vmatprep.subr.mxu0 0.0
  %1557 = vmatpush2.msra.mxu0 0.0
  %1558 = vmatprep.subr.mxu0 0.0
  %1559 = vmatpush2.msra.mxu0 0.0
  %1560 = vmatprep.subr.mxu0 0.0
  %1561 = vmatpush2.msra.mxu0 0.0
  %1562 = vmatprep.subr.mxu0 0.0
  %1563 = vmatpush2.msra.mxu0 0.0
  %1564 = vmatprep.subr.mxu0 0.0
  %1565 = vmatpush2.msra.mxu0 0.0
  %1566 = vmatprep.subr.mxu0 0.0
  %1567 = vmatpush2.msra.mxu0 0.0
  %1568 = vmatprep.subr.mxu0 0.0
  %1569 = vmatpush2.msra.mxu0 0.0
  %1570 = vmatprep.subr.mxu0 0.0
  %1571 = vmatpush2.msra.mxu0 0.0
  %1572 = vmatprep.subr.mxu0 0.0
  %1573 = vmatpush2.msra.mxu0 0.0
  %1574 = vmatprep.subr.mxu0 0.0
  %1575 = vmatpush2.msra.mxu0 0.0
  %1576 = vmatprep.subr.mxu0 0.0
  %1577 = vmatpush2.msra.mxu0 0.0
  %1578 = vmatprep.subr.mxu0 0.0
  %1579 = vmatpush2.msra.mxu0 0.0
  %1580 = vmatprep.subr.mxu0 0.0
  %1581 = vmatpush2.msra.mxu0 0.0
  %1582 = vmatprep.mubr.f32.mxu0 0.0
  %v1583 = vand.u32 %v281, 4294901760
  %1584 = vmatmul.mubr.f32.gmra.mxu0 %v1583
  %v1585 = vpop.f32.mrf.mxu0
  %v1586 = vadd.f32 %v1409, %v1585
  %v1587 = vpop.f32.mrf.mxu0
  %1588 = vmatprep.mubr.f32.mxu0 0.0
  %v1589 = vand.u32 %v282, 4294901760
  %1590 = vmatmul.mubr.f32.gmra.mxu0 %v1589
  %v1591 = vpop.f32.mrf.mxu0
  %v1592 = vadd.f32 %v1415, %v1591
  %v1593 = vpop.f32.mrf.mxu0
  %1594 = vmatprep.mubr.f32.mxu0 0.0
  %v1595 = vand.u32 %v283, 4294901760
  %1596 = vmatmul.mubr.f32.gmra.mxu0 %v1595
  %v1597 = vpop.f32.mrf.mxu0
  %v1598 = vadd.f32 %v1421, %v1597
  %v1599 = vpop.f32.mrf.mxu0
  %1600 = vmatprep.mubr.f32.mxu0 0.0
  %v1601 = vand.u32 %v284, 4294901760
  %1602 = vmatmul.mubr.f32.gmra.mxu0 %v1601
  %v1603 = vpop.f32.mrf.mxu0
  %v1604 = vadd.f32 %v1427, %v1603
  %v1605 = vpop.f32.mrf.mxu0
  %1606 = vmatprep.mubr.f32.mxu0 0.0
  %v1607 = vand.u32 %v285, 4294901760
  %1608 = vmatmul.mubr.f32.gmra.mxu0 %v1607
  %v1609 = vpop.f32.mrf.mxu0
  %v1610 = vadd.f32 %v1433, %v1609
  %v1611 = vpop.f32.mrf.mxu0
  %1612 = vmatprep.mubr.f32.mxu0 0.0
  %v1613 = vand.u32 %v286, 4294901760
  %1614 = vmatmul.mubr.f32.gmra.mxu0 %v1613
  %v1615 = vpop.f32.mrf.mxu0
  %v1616 = vadd.f32 %v1439, %v1615
  %v1617 = vpop.f32.mrf.mxu0
  %1618 = vmatprep.mubr.f32.mxu0 0.0
  %v1619 = vand.u32 %v287, 4294901760
  %1620 = vmatmul.mubr.f32.gmra.mxu0 %v1619
  %v1621 = vpop.f32.mrf.mxu0
  %v1622 = vadd.f32 %v1445, %v1621
  %v1623 = vpop.f32.mrf.mxu0
  %1624 = vmatprep.mubr.f32.mxu0 0.0
  %v1625 = vand.u32 %v288, 4294901760
  %1626 = vmatmul.mubr.f32.gmra.mxu0 %v1625
  %v1627 = vpop.f32.mrf.mxu0
  %v1628 = vadd.f32 %v1451, %v1627
  %v1629 = vpop.f32.mrf.mxu0
  %1630 = vmatprep.mubr.f32.mxu0 0.0
  %v1631 = vand.u32 %v289, 4294901760
  %1632 = vmatmul.mubr.f32.gmra.mxu0 %v1631
  %v1633 = vpop.f32.mrf.mxu0
  %v1634 = vadd.f32 %v1457, %v1633
  %v1635 = vpop.f32.mrf.mxu0
  %1636 = vmatprep.mubr.f32.mxu0 0.0
  %v1637 = vand.u32 %v290, 4294901760
  %1638 = vmatmul.mubr.f32.gmra.mxu0 %v1637
  %v1639 = vpop.f32.mrf.mxu0
  %v1640 = vadd.f32 %v1463, %v1639
  %v1641 = vpop.f32.mrf.mxu0
  %1642 = vmatprep.mubr.f32.mxu0 0.0
  %v1643 = vand.u32 %v291, 4294901760
  %1644 = vmatmul.mubr.f32.gmra.mxu0 %v1643
  %v1645 = vpop.f32.mrf.mxu0
  %v1646 = vadd.f32 %v1469, %v1645
  %v1647 = vpop.f32.mrf.mxu0
  %1648 = vmatprep.mubr.f32.mxu0 0.0
  %v1649 = vand.u32 %v292, 4294901760
  %1650 = vmatmul.mubr.f32.gmra.mxu0 %v1649
  %v1651 = vpop.f32.mrf.mxu0
  %v1652 = vadd.f32 %v1475, %v1651
  %v1653 = vpop.f32.mrf.mxu0
  %1654 = vmatprep.mubr.f32.mxu0 0.0
  %v1655 = vand.u32 %v293, 4294901760
  %1656 = vmatmul.mubr.f32.gmra.mxu0 %v1655
  %v1657 = vpop.f32.mrf.mxu0
  %v1658 = vadd.f32 %v1481, %v1657
  %v1659 = vpop.f32.mrf.mxu0
  %1660 = vmatprep.mubr.f32.mxu0 0.0
  %v1661 = vand.u32 %v294, 4294901760
  %1662 = vmatmul.mubr.f32.gmra.mxu0 %v1661
  %v1663 = vpop.f32.mrf.mxu0
  %v1664 = vadd.f32 %v1487, %v1663
  %v1665 = vpop.f32.mrf.mxu0
  %1666 = vmatprep.mubr.f32.mxu0 0.0
  %v1667 = vand.u32 %v295, 4294901760
  %1668 = vmatmul.mubr.f32.gmra.mxu0 %v1667
  %v1669 = vpop.f32.mrf.mxu0
  %v1670 = vadd.f32 %v1493, %v1669
  %v1671 = vpop.f32.mrf.mxu0
  %1672 = vmatprep.mubr.f32.mxu0 0.0
  %v1673 = vand.u32 %v296, 4294901760
  %1674 = vmatmul.mubr.f32.gmra.mxu0 %v1673
  %v1675 = vpop.f32.mrf.mxu0
  %v1676 = vadd.f32 %v1499, %v1675
  %v1677 = vpop.f32.mrf.mxu0
  %1678 = vdwg.mxu0
  %v1679 = vmax.f32 %v1586, 0.0
  %v1680 = vmax.f32 %v1592, 0.0
  %v1681 = vmax.f32 %v1598, 0.0
  %v1682 = vmax.f32 %v1604, 0.0
  %v1683 = vmax.f32 %v1610, 0.0
  %v1684 = vmax.f32 %v1616, 0.0
  %v1685 = vmax.f32 %v1622, 0.0
  %v1686 = vmax.f32 %v1628, 0.0
  %v1687 = vmax.f32 %v1634, 0.0
  %v1688 = vmax.f32 %v1640, 0.0
  %v1689 = vmax.f32 %v1646, 0.0
  %v1690 = vmax.f32 %v1652, 0.0
  %v1691 = vmax.f32 %v1658, 0.0
  %v1692 = vmax.f32 %v1664, 0.0
  %v1693 = vmax.f32 %v1670, 0.0
  %v1694 = vmax.f32 %v1676, 0.0
  %v1695 = vld [vmem:[%s5] sm:$0xff]
  %v1696 = vld [vmem:[%s5 + $0x8] sm:$0xff]
  %v1697 = vld [vmem:[%s5 + $0x10] sm:$0xff]
  %v1698 = vld [vmem:[%s5 + $0x18] sm:$0xff]
  %v1699 = vld [vmem:[%s5 + $0x20] sm:$0xff]
  %v1700 = vld [vmem:[%s5 + $0x28] sm:$0xff]
  %v1701 = vld [vmem:[%s5 + $0x30] sm:$0xff]
  %v1702 = vld [vmem:[%s5 + $0x38] sm:$0xff]
  %v1703 = vld [vmem:[%s5 + $0x40] sm:$0xff]
  %v1704 = vld [vmem:[%s5 + $0x48] sm:$0xff]
  %v1705 = vld [vmem:[%s5 + $0x50] sm:$0xff]
  %v1706 = vld [vmem:[%s5 + $0x58] sm:$0xff]
  %v1707 = vld [vmem:[%s5 + $0x60] sm:$0xff]
  %v1708 = vld [vmem:[%s5 + $0x68] sm:$0xff]
  %v1709 = vld [vmem:[%s5 + $0x70] sm:$0xff]
  %v1710 = vld [vmem:[%s5 + $0x78] sm:$0xff]
  %v1711 = vld [vmem:[%s6] sm:$0xff]
  %v1712 = vld [vmem:[%s6 + $0x8] sm:$0xff]
  %v1713 = vld [vmem:[%s6 + $0x10] sm:$0xff]
  %v1714 = vld [vmem:[%s6 + $0x18] sm:$0xff]
  %v1715 = vld [vmem:[%s6 + $0x20] sm:$0xff]
  %v1716 = vld [vmem:[%s6 + $0x28] sm:$0xff]
  %v1717 = vld [vmem:[%s6 + $0x30] sm:$0xff]
  %v1718 = vld [vmem:[%s6 + $0x38] sm:$0xff]
  %v1719 = vld [vmem:[%s6 + $0x40] sm:$0xff]
  %v1720 = vld [vmem:[%s6 + $0x48] sm:$0xff]
  %v1721 = vld [vmem:[%s6 + $0x50] sm:$0xff]
  %v1722 = vld [vmem:[%s6 + $0x58] sm:$0xff]
  %v1723 = vld [vmem:[%s6 + $0x60] sm:$0xff]
  %v1724 = vld [vmem:[%s6 + $0x68] sm:$0xff]
  %v1725 = vld [vmem:[%s6 + $0x70] sm:$0xff]
  %v1726 = vld [vmem:[%s6 + $0x78] sm:$0xff]
  %1728 = vset.pattern.permute.xlu0 0
  %1729 = vperm.xlu0 %1728, %v1711
  %v1730 = vpop.permute.xlu0 %1729
  %1733 = vset.pattern.permute.xlu0 0
  %1734 = vperm.xlu0 %1733, %v1712
  %v1735 = vpop.permute.xlu0 %1734
  %1738 = vset.pattern.permute.xlu0 0
  %1739 = vperm.xlu0 %1738, %v1713
  %v1740 = vpop.permute.xlu0 %1739
  %1743 = vset.pattern.permute.xlu0 0
  %1744 = vperm.xlu0 %1743, %v1714
  %v1745 = vpop.permute.xlu0 %1744
  %1748 = vset.pattern.permute.xlu0 0
  %1749 = vperm.xlu0 %1748, %v1715
  %v1750 = vpop.permute.xlu0 %1749
  %1753 = vset.pattern.permute.xlu0 0
  %1754 = vperm.xlu0 %1753, %v1716
  %v1755 = vpop.permute.xlu0 %1754
  %1758 = vset.pattern.permute.xlu0 0
  %1759 = vperm.xlu0 %1758, %v1717
  %v1760 = vpop.permute.xlu0 %1759
  %1763 = vset.pattern.permute.xlu0 0
  %1764 = vperm.xlu0 %1763, %v1718
  %v1765 = vpop.permute.xlu0 %1764
  %1768 = vset.pattern.permute.xlu0 0
  %1769 = vperm.xlu0 %1768, %v1719
  %v1770 = vpop.permute.xlu0 %1769
  %1773 = vset.pattern.permute.xlu0 0
  %1774 = vperm.xlu0 %1773, %v1720
  %v1775 = vpop.permute.xlu0 %1774
  %1778 = vset.pattern.permute.xlu0 0
  %1779 = vperm.xlu0 %1778, %v1721
  %v1780 = vpop.permute.xlu0 %1779
  %1783 = vset.pattern.permute.xlu0 0
  %1784 = vperm.xlu0 %1783, %v1722
  %v1785 = vpop.permute.xlu0 %1784
  %1788 = vset.pattern.permute.xlu0 0
  %1789 = vperm.xlu0 %1788, %v1723
  %v1790 = vpop.permute.xlu0 %1789
  %1793 = vset.pattern.permute.xlu0 0
  %1794 = vperm.xlu0 %1793, %v1724
  %v1795 = vpop.permute.xlu0 %1794
  %1798 = vset.pattern.permute.xlu0 0
  %1799 = vperm.xlu0 %1798, %v1725
  %v1800 = vpop.permute.xlu0 %1799
  %1803 = vset.pattern.permute.xlu0 0
  %1804 = vperm.xlu0 %1803, %v1726
  %v1805 = vpop.permute.xlu0 %1804
  %1807 = vmatprep.subr.mxu0 0.0
  %v1808 = vand.u32 %v1694, 4294901760
  %1809 = vmatpush1.msra.mxu0 %v1808
  %1810 = vmatprep.subr.mxu0 0.0
  %v1811 = vand.u32 %v1693, 4294901760
  %1812 = vmatpush1.msra.mxu0 %v1811
  %1813 = vmatprep.subr.mxu0 0.0
  %v1814 = vand.u32 %v1692, 4294901760
  %1815 = vmatpush1.msra.mxu0 %v1814
  %1816 = vmatprep.subr.mxu0 0.0
  %v1817 = vand.u32 %v1691, 4294901760
  %1818 = vmatpush1.msra.mxu0 %v1817
  %1819 = vmatprep.subr.mxu0 0.0
  %v1820 = vand.u32 %v1690, 4294901760
  %1821 = vmatpush1.msra.mxu0 %v1820
  %1822 = vmatprep.subr.mxu0 0.0
  %v1823 = vand.u32 %v1689, 4294901760
  %1824 = vmatpush1.msra.mxu0 %v1823
  %1825 = vmatprep.subr.mxu0 0.0
  %v1826 = vand.u32 %v1688, 4294901760
  %1827 = vmatpush1.msra.mxu0 %v1826
  %1828 = vmatprep.subr.mxu0 0.0
  %v1829 = vand.u32 %v1687, 4294901760
  %1830 = vmatpush1.msra.mxu0 %v1829
  %1831 = vmatprep.subr.mxu0 0.0
  %v1832 = vand.u32 %v1686, 4294901760
  %1833 = vmatpush1.msra.mxu0 %v1832
  %1834 = vmatprep.subr.mxu0 0.0
  %v1835 = vand.u32 %v1685, 4294901760
  %1836 = vmatpush1.msra.mxu0 %v1835
  %1837 = vmatprep.subr.mxu0 0.0
  %v1838 = vand.u32 %v1684, 4294901760
  %1839 = vmatpush1.msra.mxu0 %v1838
  %1840 = vmatprep.subr.mxu0 0.0
  %v1841 = vand.u32 %v1683, 4294901760
  %1842 = vmatpush1.msra.mxu0 %v1841
  %1843 = vmatprep.subr.mxu0 0.0
  %v1844 = vand.u32 %v1682, 4294901760
  %1845 = vmatpush1.msra.mxu0 %v1844
  %1846 = vmatprep.subr.mxu0 0.0
  %v1847 = vand.u32 %v1681, 4294901760
  %1848 = vmatpush1.msra.mxu0 %v1847
  %1849 = vmatprep.subr.mxu0 0.0
  %v1850 = vand.u32 %v1680, 4294901760
  %1851 = vmatpush1.msra.mxu0 %v1850
  %1852 = vmatprep.subr.mxu0 0.0
  %v1853 = vand.u32 %v1679, 4294901760
  %1854 = vmatpush1.msra.mxu0 %v1853
  %1855 = vmatprep.subr.mxu0 0.0
  %1856 = vmatpush2.msra.mxu0 0.0
  %1857 = vmatprep.subr.mxu0 0.0
  %1858 = vmatpush2.msra.mxu0 0.0
  %1859 = vmatprep.subr.mxu0 0.0
  %1860 = vmatpush2.msra.mxu0 0.0
  %1861 = vmatprep.subr.mxu0 0.0
  %1862 = vmatpush2.msra.mxu0 0.0
  %1863 = vmatprep.subr.mxu0 0.0
  %1864 = vmatpush2.msra.mxu0 0.0
  %1865 = vmatprep.subr.mxu0 0.0
  %1866 = vmatpush2.msra.mxu0 0.0
  %1867 = vmatprep.subr.mxu0 0.0
  %1868 = vmatpush2.msra.mxu0 0.0
  %1869 = vmatprep.subr.mxu0 0.0
  %1870 = vmatpush2.msra.mxu0 0.0
  %1871 = vmatprep.subr.mxu0 0.0
  %1872 = vmatpush2.msra.mxu0 0.0
  %1873 = vmatprep.subr.mxu0 0.0
  %1874 = vmatpush2.msra.mxu0 0.0
  %1875 = vmatprep.subr.mxu0 0.0
  %1876 = vmatpush2.msra.mxu0 0.0
  %1877 = vmatprep.subr.mxu0 0.0
  %1878 = vmatpush2.msra.mxu0 0.0
  %1879 = vmatprep.subr.mxu0 0.0
  %1880 = vmatpush2.msra.mxu0 0.0
  %1881 = vmatprep.subr.mxu0 0.0
  %1882 = vmatpush2.msra.mxu0 0.0
  %1883 = vmatprep.subr.mxu0 0.0
  %1884 = vmatpush2.msra.mxu0 0.0
  %1885 = vmatprep.subr.mxu0 0.0
  %1886 = vmatpush2.msra.mxu0 0.0
  %1887 = vmatprep.mubr.f32.mxu0 0.0
  %v1888 = vand.u32 %v1695, 4294901760
  %v1889 = vsub.f32 %v1695, %v1888
  %v1890 = vand.u32 %v1889, 4294901760
  %v1891 = vsub.f32 %v1889, %v1890
  %v1892 = vand.u32 %v1891, 4294901760
  %1893 = vmatmul.mubr.f32.gmra.mxu0 %v1892
  %v1894 = vpop.f32.mrf.mxu0
  %v1895 = vadd.f32 %v1730, %v1894
  %v1896 = vpop.f32.mrf.mxu0
  %1897 = vmatprep.mubr.f32.mxu0 0.0
  %v1898 = vand.u32 %v1696, 4294901760
  %v1899 = vsub.f32 %v1696, %v1898
  %v1900 = vand.u32 %v1899, 4294901760
  %v1901 = vsub.f32 %v1899, %v1900
  %v1902 = vand.u32 %v1901, 4294901760
  %1903 = vmatmul.mubr.f32.gmra.mxu0 %v1902
  %v1904 = vpop.f32.mrf.mxu0
  %v1905 = vadd.f32 %v1735, %v1904
  %v1906 = vpop.f32.mrf.mxu0
  %1907 = vmatprep.mubr.f32.mxu0 0.0
  %v1908 = vand.u32 %v1697, 4294901760
  %v1909 = vsub.f32 %v1697, %v1908
  %v1910 = vand.u32 %v1909, 4294901760
  %v1911 = vsub.f32 %v1909, %v1910
  %v1912 = vand.u32 %v1911, 4294901760
  %1913 = vmatmul.mubr.f32.gmra.mxu0 %v1912
  %v1914 = vpop.f32.mrf.mxu0
  %v1915 = vadd.f32 %v1740, %v1914
  %v1916 = vpop.f32.mrf.mxu0
  %1917 = vmatprep.mubr.f32.mxu0 0.0
  %v1918 = vand.u32 %v1698, 4294901760
  %v1919 = vsub.f32 %v1698, %v1918
  %v1920 = vand.u32 %v1919, 4294901760
  %v1921 = vsub.f32 %v1919, %v1920
  %v1922 = vand.u32 %v1921, 4294901760
  %1923 = vmatmul.mubr.f32.gmra.mxu0 %v1922
  %v1924 = vpop.f32.mrf.mxu0
  %v1925 = vadd.f32 %v1745, %v1924
  %v1926 = vpop.f32.mrf.mxu0
  %1927 = vmatprep.mubr.f32.mxu0 0.0
  %v1928 = vand.u32 %v1699, 4294901760
  %v1929 = vsub.f32 %v1699, %v1928
  %v1930 = vand.u32 %v1929, 4294901760
  %v1931 = vsub.f32 %v1929, %v1930
  %v1932 = vand.u32 %v1931, 4294901760
  %1933 = vmatmul.mubr.f32.gmra.mxu0 %v1932
  %v1934 = vpop.f32.mrf.mxu0
  %v1935 = vadd.f32 %v1750, %v1934
  %v1936 = vpop.f32.mrf.mxu0
  %1937 = vmatprep.mubr.f32.mxu0 0.0
  %v1938 = vand.u32 %v1700, 4294901760
  %v1939 = vsub.f32 %v1700, %v1938
  %v1940 = vand.u32 %v1939, 4294901760
  %v1941 = vsub.f32 %v1939, %v1940
  %v1942 = vand.u32 %v1941, 4294901760
  %1943 = vmatmul.mubr.f32.gmra.mxu0 %v1942
  %v1944 = vpop.f32.mrf.mxu0
  %v1945 = vadd.f32 %v1755, %v1944
  %v1946 = vpop.f32.mrf.mxu0
  %1947 = vmatprep.mubr.f32.mxu0 0.0
  %v1948 = vand.u32 %v1701, 4294901760
  %v1949 = vsub.f32 %v1701, %v1948
  %v1950 = vand.u32 %v1949, 4294901760
  %v1951 = vsub.f32 %v1949, %v1950
  %v1952 = vand.u32 %v1951, 4294901760
  %1953 = vmatmul.mubr.f32.gmra.mxu0 %v1952
  %v1954 = vpop.f32.mrf.mxu0
  %v1955 = vadd.f32 %v1760, %v1954
  %v1956 = vpop.f32.mrf.mxu0
  %1957 = vmatprep.mubr.f32.mxu0 0.0
  %v1958 = vand.u32 %v1702, 4294901760
  %v1959 = vsub.f32 %v1702, %v1958
  %v1960 = vand.u32 %v1959, 4294901760
  %v1961 = vsub.f32 %v1959, %v1960
  %v1962 = vand.u32 %v1961, 4294901760
  %1963 = vmatmul.mubr.f32.gmra.mxu0 %v1962
  %v1964 = vpop.f32.mrf.mxu0
  %v1965 = vadd.f32 %v1765, %v1964
  %v1966 = vpop.f32.mrf.mxu0
  %1967 = vmatprep.mubr.f32.mxu0 0.0
  %v1968 = vand.u32 %v1703, 4294901760
  %v1969 = vsub.f32 %v1703, %v1968
  %v1970 = vand.u32 %v1969, 4294901760
  %v1971 = vsub.f32 %v1969, %v1970
  %v1972 = vand.u32 %v1971, 4294901760
  %1973 = vmatmul.mubr.f32.gmra.mxu0 %v1972
  %v1974 = vpop.f32.mrf.mxu0
  %v1975 = vadd.f32 %v1770, %v1974
  %v1976 = vpop.f32.mrf.mxu0
  %1977 = vmatprep.mubr.f32.mxu0 0.0
  %v1978 = vand.u32 %v1704, 4294901760
  %v1979 = vsub.f32 %v1704, %v1978
  %v1980 = vand.u32 %v1979, 4294901760
  %v1981 = vsub.f32 %v1979, %v1980
  %v1982 = vand.u32 %v1981, 4294901760
  %1983 = vmatmul.mubr.f32.gmra.mxu0 %v1982
  %v1984 = vpop.f32.mrf.mxu0
  %v1985 = vadd.f32 %v1775, %v1984
  %v1986 = vpop.f32.mrf.mxu0
  %1987 = vmatprep.mubr.f32.mxu0 0.0
  %v1988 = vand.u32 %v1705, 4294901760
  %v1989 = vsub.f32 %v1705, %v1988
  %v1990 = vand.u32 %v1989, 4294901760
  %v1991 = vsub.f32 %v1989, %v1990
  %v1992 = vand.u32 %v1991, 4294901760
  %1993 = vmatmul.mubr.f32.gmra.mxu0 %v1992
  %v1994 = vpop.f32.mrf.mxu0
  %v1995 = vadd.f32 %v1780, %v1994
  %v1996 = vpop.f32.mrf.mxu0
  %1997 = vmatprep.mubr.f32.mxu0 0.0
  %v1998 = vand.u32 %v1706, 4294901760
  %v1999 = vsub.f32 %v1706, %v1998
  %v2000 = vand.u32 %v1999, 4294901760
  %v2001 = vsub.f32 %v1999, %v2000
  %v2002 = vand.u32 %v2001, 4294901760
  %2003 = vmatmul.mubr.f32.gmra.mxu0 %v2002
  %v2004 = vpop.f32.mrf.mxu0
  %v2005 = vadd.f32 %v1785, %v2004
  %v2006 = vpop.f32.mrf.mxu0
  %2007 = vmatprep.mubr.f32.mxu0 0.0
  %v2008 = vand.u32 %v1707, 4294901760
  %v2009 = vsub.f32 %v1707, %v2008
  %v2010 = vand.u32 %v2009, 4294901760
  %v2011 = vsub.f32 %v2009, %v2010
  %v2012 = vand.u32 %v2011, 4294901760
  %2013 = vmatmul.mubr.f32.gmra.mxu0 %v2012
  %v2014 = vpop.f32.mrf.mxu0
  %v2015 = vadd.f32 %v1790, %v2014
  %v2016 = vpop.f32.mrf.mxu0
  %2017 = vmatprep.mubr.f32.mxu0 0.0
  %v2018 = vand.u32 %v1708, 4294901760
  %v2019 = vsub.f32 %v1708, %v2018
  %v2020 = vand.u32 %v2019, 4294901760
  %v2021 = vsub.f32 %v2019, %v2020
  %v2022 = vand.u32 %v2021, 4294901760
  %2023 = vmatmul.mubr.f32.gmra.mxu0 %v2022
  %v2024 = vpop.f32.mrf.mxu0
  %v2025 = vadd.f32 %v1795, %v2024
  %v2026 = vpop.f32.mrf.mxu0
  %2027 = vmatprep.mubr.f32.mxu0 0.0
  %v2028 = vand.u32 %v1709, 4294901760
  %v2029 = vsub.f32 %v1709, %v2028
  %v2030 = vand.u32 %v2029, 4294901760
  %v2031 = vsub.f32 %v2029, %v2030
  %v2032 = vand.u32 %v2031, 4294901760
  %2033 = vmatmul.mubr.f32.gmra.mxu0 %v2032
  %v2034 = vpop.f32.mrf.mxu0
  %v2035 = vadd.f32 %v1800, %v2034
  %v2036 = vpop.f32.mrf.mxu0
  %2037 = vmatprep.mubr.f32.mxu0 0.0
  %v2038 = vand.u32 %v1710, 4294901760
  %v2039 = vsub.f32 %v1710, %v2038
  %v2040 = vand.u32 %v2039, 4294901760
  %v2041 = vsub.f32 %v2039, %v2040
  %v2042 = vand.u32 %v2041, 4294901760
  %2043 = vmatmul.mubr.f32.gmra.mxu0 %v2042
  %v2044 = vpop.f32.mrf.mxu0
  %v2045 = vadd.f32 %v1805, %v2044
  %v2046 = vpop.f32.mrf.mxu0
  %2047 = vdwg.mxu0
  %2048 = vmatprep.subr.mxu0 0.0
  %v2049 = vand.u32 %v1694, 4294901760
  %v2050 = vsub.f32 %v1694, %v2049
  %v2051 = vand.u32 %v2050, 4294901760
  %v2052 = vsub.f32 %v2050, %v2051
  %v2053 = vand.u32 %v2052, 4294901760
  %2054 = vmatpush1.msra.mxu0 %v2053
  %2055 = vmatprep.subr.mxu0 0.0
  %v2056 = vand.u32 %v1693, 4294901760
  %v2057 = vsub.f32 %v1693, %v2056
  %v2058 = vand.u32 %v2057, 4294901760
  %v2059 = vsub.f32 %v2057, %v2058
  %v2060 = vand.u32 %v2059, 4294901760
  %2061 = vmatpush1.msra.mxu0 %v2060
  %2062 = vmatprep.subr.mxu0 0.0
  %v2063 = vand.u32 %v1692, 4294901760
  %v2064 = vsub.f32 %v1692, %v2063
  %v2065 = vand.u32 %v2064, 4294901760
  %v2066 = vsub.f32 %v2064, %v2065
  %v2067 = vand.u32 %v2066, 4294901760
  %2068 = vmatpush1.msra.mxu0 %v2067
  %2069 = vmatprep.subr.mxu0 0.0
  %v2070 = vand.u32 %v1691, 4294901760
  %v2071 = vsub.f32 %v1691, %v2070
  %v2072 = vand.u32 %v2071, 4294901760
  %v2073 = vsub.f32 %v2071, %v2072
  %v2074 = vand.u32 %v2073, 4294901760
  %2075 = vmatpush1.msra.mxu0 %v2074
  %2076 = vmatprep.subr.mxu0 0.0
  %v2077 = vand.u32 %v1690, 4294901760
  %v2078 = vsub.f32 %v1690, %v2077
  %v2079 = vand.u32 %v2078, 4294901760
  %v2080 = vsub.f32 %v2078, %v2079
  %v2081 = vand.u32 %v2080, 4294901760
  %2082 = vmatpush1.msra.mxu0 %v2081
  %2083 = vmatprep.subr.mxu0 0.0
  %v2084 = vand.u32 %v1689, 4294901760
  %v2085 = vsub.f32 %v1689, %v2084
  %v2086 = vand.u32 %v2085, 4294901760
  %v2087 = vsub.f32 %v2085, %v2086
  %v2088 = vand.u32 %v2087, 4294901760
  %2089 = vmatpush1.msra.mxu0 %v2088
  %2090 = vmatprep.subr.mxu0 0.0
  %v2091 = vand.u32 %v1688, 4294901760
  %v2092 = vsub.f32 %v1688, %v2091
  %v2093 = vand.u32 %v2092, 4294901760
  %v2094 = vsub.f32 %v2092, %v2093
  %v2095 = vand.u32 %v2094, 4294901760
  %2096 = vmatpush1.msra.mxu0 %v2095
  %2097 = vmatprep.subr.mxu0 0.0
  %v2098 = vand.u32 %v1687, 4294901760
  %v2099 = vsub.f32 %v1687, %v2098
  %v2100 = vand.u32 %v2099, 4294901760
  %v2101 = vsub.f32 %v2099, %v2100
  %v2102 = vand.u32 %v2101, 4294901760
  %2103 = vmatpush1.msra.mxu0 %v2102
  %2104 = vmatprep.subr.mxu0 0.0
  %v2105 = vand.u32 %v1686, 4294901760
  %v2106 = vsub.f32 %v1686, %v2105
  %v2107 = vand.u32 %v2106, 4294901760
  %v2108 = vsub.f32 %v2106, %v2107
  %v2109 = vand.u32 %v2108, 4294901760
  %2110 = vmatpush1.msra.mxu0 %v2109
  %2111 = vmatprep.subr.mxu0 0.0
  %v2112 = vand.u32 %v1685, 4294901760
  %v2113 = vsub.f32 %v1685, %v2112
  %v2114 = vand.u32 %v2113, 4294901760
  %v2115 = vsub.f32 %v2113, %v2114
  %v2116 = vand.u32 %v2115, 4294901760
  %2117 = vmatpush1.msra.mxu0 %v2116
  %2118 = vmatprep.subr.mxu0 0.0
  %v2119 = vand.u32 %v1684, 4294901760
  %v2120 = vsub.f32 %v1684, %v2119
  %v2121 = vand.u32 %v2120, 4294901760
  %v2122 = vsub.f32 %v2120, %v2121
  %v2123 = vand.u32 %v2122, 4294901760
  %2124 = vmatpush1.msra.mxu0 %v2123
  %2125 = vmatprep.subr.mxu0 0.0
  %v2126 = vand.u32 %v1683, 4294901760
  %v2127 = vsub.f32 %v1683, %v2126
  %v2128 = vand.u32 %v2127, 4294901760
  %v2129 = vsub.f32 %v2127, %v2128
  %v2130 = vand.u32 %v2129, 4294901760
  %2131 = vmatpush1.msra.mxu0 %v2130
  %2132 = vmatprep.subr.mxu0 0.0
  %v2133 = vand.u32 %v1682, 4294901760
  %v2134 = vsub.f32 %v1682, %v2133
  %v2135 = vand.u32 %v2134, 4294901760
  %v2136 = vsub.f32 %v2134, %v2135
  %v2137 = vand.u32 %v2136, 4294901760
  %2138 = vmatpush1.msra.mxu0 %v2137
  %2139 = vmatprep.subr.mxu0 0.0
  %v2140 = vand.u32 %v1681, 4294901760
  %v2141 = vsub.f32 %v1681, %v2140
  %v2142 = vand.u32 %v2141, 4294901760
  %v2143 = vsub.f32 %v2141, %v2142
  %v2144 = vand.u32 %v2143, 4294901760
  %2145 = vmatpush1.msra.mxu0 %v2144
  %2146 = vmatprep.subr.mxu0 0.0
  %v2147 = vand.u32 %v1680, 4294901760
  %v2148 = vsub.f32 %v1680, %v2147
  %v2149 = vand.u32 %v2148, 4294901760
  %v2150 = vsub.f32 %v2148, %v2149
  %v2151 = vand.u32 %v2150, 4294901760
  %2152 = vmatpush1.msra.mxu0 %v2151
  %2153 = vmatprep.subr.mxu0 0.0
  %v2154 = vand.u32 %v1679, 4294901760
  %v2155 = vsub.f32 %v1679, %v2154
  %v2156 = vand.u32 %v2155, 4294901760
  %v2157 = vsub.f32 %v2155, %v2156
  %v2158 = vand.u32 %v2157, 4294901760
  %2159 = vmatpush1.msra.mxu0 %v2158
  %2160 = vmatprep.subr.mxu0 0.0
  %2161 = vmatpush2.msra.mxu0 0.0
  %2162 = vmatprep.subr.mxu0 0.0
  %2163 = vmatpush2.msra.mxu0 0.0
  %2164 = vmatprep.subr.mxu0 0.0
  %2165 = vmatpush2.msra.mxu0 0.0
  %2166 = vmatprep.subr.mxu0 0.0
  %2167 = vmatpush2.msra.mxu0 0.0
  %2168 = vmatprep.subr.mxu0 0.0
  %2169 = vmatpush2.msra.mxu0 0.0
  %2170 = vmatprep.subr.mxu0 0.0
  %2171 = vmatpush2.msra.mxu0 0.0
  %2172 = vmatprep.subr.mxu0 0.0
  %2173 = vmatpush2.msra.mxu0 0.0
  %2174 = vmatprep.subr.mxu0 0.0
  %2175 = vmatpush2.msra.mxu0 0.0
  %2176 = vmatprep.subr.mxu0 0.0
  %2177 = vmatpush2.msra.mxu0 0.0
  %2178 = vmatprep.subr.mxu0 0.0
  %2179 = vmatpush2.msra.mxu0 0.0
  %2180 = vmatprep.subr.mxu0 0.0
  %2181 = vmatpush2.msra.mxu0 0.0
  %2182 = vmatprep.subr.mxu0 0.0
  %2183 = vmatpush2.msra.mxu0 0.0
  %2184 = vmatprep.subr.mxu0 0.0
  %2185 = vmatpush2.msra.mxu0 0.0
  %2186 = vmatprep.subr.mxu0 0.0
  %2187 = vmatpush2.msra.mxu0 0.0
  %2188 = vmatprep.subr.mxu0 0.0
  %2189 = vmatpush2.msra.mxu0 0.0
  %2190 = vmatprep.subr.mxu0 0.0
  %2191 = vmatpush2.msra.mxu0 0.0
  %2192 = vmatprep.mubr.f32.mxu0 0.0
  %v2193 = vand.u32 %v1695, 4294901760
  %2194 = vmatmul.mubr.f32.gmra.mxu0 %v2193
  %v2195 = vpop.f32.mrf.mxu0
  %v2196 = vadd.f32 %v1895, %v2195
  %v2197 = vpop.f32.mrf.mxu0
  %2198 = vmatprep.mubr.f32.mxu0 0.0
  %v2199 = vand.u32 %v1696, 4294901760
  %2200 = vmatmul.mubr.f32.gmra.mxu0 %v2199
  %v2201 = vpop.f32.mrf.mxu0
  %v2202 = vadd.f32 %v1905, %v2201
  %v2203 = vpop.f32.mrf.mxu0
  %2204 = vmatprep.mubr.f32.mxu0 0.0
  %v2205 = vand.u32 %v1697, 4294901760
  %2206 = vmatmul.mubr.f32.gmra.mxu0 %v2205
  %v2207 = vpop.f32.mrf.mxu0
  %v2208 = vadd.f32 %v1915, %v2207
  %v2209 = vpop.f32.mrf.mxu0
  %2210 = vmatprep.mubr.f32.mxu0 0.0
  %v2211 = vand.u32 %v1698, 4294901760
  %2212 = vmatmul.mubr.f32.gmra.mxu0 %v2211
  %v2213 = vpop.f32.mrf.mxu0
  %v2214 = vadd.f32 %v1925, %v2213
  %v2215 = vpop.f32.mrf.mxu0
  %2216 = vmatprep.mubr.f32.mxu0 0.0
  %v2217 = vand.u32 %v1699, 4294901760
  %2218 = vmatmul.mubr.f32.gmra.mxu0 %v2217
  %v2219 = vpop.f32.mrf.mxu0
  %v2220 = vadd.f32 %v1935, %v2219
  %v2221 = vpop.f32.mrf.mxu0
  %2222 = vmatprep.mubr.f32.mxu0 0.0
  %v2223 = vand.u32 %v1700, 4294901760
  %2224 = vmatmul.mubr.f32.gmra.mxu0 %v2223
  %v2225 = vpop.f32.mrf.mxu0
  %v2226 = vadd.f32 %v1945, %v2225
  %v2227 = vpop.f32.mrf.mxu0
  %2228 = vmatprep.mubr.f32.mxu0 0.0
  %v2229 = vand.u32 %v1701, 4294901760
  %2230 = vmatmul.mubr.f32.gmra.mxu0 %v2229
  %v2231 = vpop.f32.mrf.mxu0
  %v2232 = vadd.f32 %v1955, %v2231
  %v2233 = vpop.f32.mrf.mxu0
  %2234 = vmatprep.mubr.f32.mxu0 0.0
  %v2235 = vand.u32 %v1702, 4294901760
  %2236 = vmatmul.mubr.f32.gmra.mxu0 %v2235
  %v2237 = vpop.f32.mrf.mxu0
  %v2238 = vadd.f32 %v1965, %v2237
  %v2239 = vpop.f32.mrf.mxu0
  %2240 = vmatprep.mubr.f32.mxu0 0.0
  %v2241 = vand.u32 %v1703, 4294901760
  %2242 = vmatmul.mubr.f32.gmra.mxu0 %v2241
  %v2243 = vpop.f32.mrf.mxu0
  %v2244 = vadd.f32 %v1975, %v2243
  %v2245 = vpop.f32.mrf.mxu0
  %2246 = vmatprep.mubr.f32.mxu0 0.0
  %v2247 = vand.u32 %v1704, 4294901760
  %2248 = vmatmul.mubr.f32.gmra.mxu0 %v2247
  %v2249 = vpop.f32.mrf.mxu0
  %v2250 = vadd.f32 %v1985, %v2249
  %v2251 = vpop.f32.mrf.mxu0
  %2252 = vmatprep.mubr.f32.mxu0 0.0
  %v2253 = vand.u32 %v1705, 4294901760
  %2254 = vmatmul.mubr.f32.gmra.mxu0 %v2253
  %v2255 = vpop.f32.mrf.mxu0
  %v2256 = vadd.f32 %v1995, %v2255
  %v2257 = vpop.f32.mrf.mxu0
  %2258 = vmatprep.mubr.f32.mxu0 0.0
  %v2259 = vand.u32 %v1706, 4294901760
  %2260 = vmatmul.mubr.f32.gmra.mxu0 %v2259
  %v2261 = vpop.f32.mrf.mxu0
  %v2262 = vadd.f32 %v2005, %v2261
  %v2263 = vpop.f32.mrf.mxu0
  %2264 = vmatprep.mubr.f32.mxu0 0.0
  %v2265 = vand.u32 %v1707, 4294901760
  %2266 = vmatmul.mubr.f32.gmra.mxu0 %v2265
  %v2267 = vpop.f32.mrf.mxu0
  %v2268 = vadd.f32 %v2015, %v2267
  %v2269 = vpop.f32.mrf.mxu0
  %2270 = vmatprep.mubr.f32.mxu0 0.0
  %v2271 = vand.u32 %v1708, 4294901760
  %2272 = vmatmul.mubr.f32.gmra.mxu0 %v2271
  %v2273 = vpop.f32.mrf.mxu0
  %v2274 = vadd.f32 %v2025, %v2273
  %v2275 = vpop.f32.mrf.mxu0
  %2276 = vmatprep.mubr.f32.mxu0 0.0
  %v2277 = vand.u32 %v1709, 4294901760
  %2278 = vmatmul.mubr.f32.gmra.mxu0 %v2277
  %v2279 = vpop.f32.mrf.mxu0
  %v2280 = vadd.f32 %v2035, %v2279
  %v2281 = vpop.f32.mrf.mxu0
  %2282 = vmatprep.mubr.f32.mxu0 0.0
  %v2283 = vand.u32 %v1710, 4294901760
  %2284 = vmatmul.mubr.f32.gmra.mxu0 %v2283
  %v2285 = vpop.f32.mrf.mxu0
  %v2286 = vadd.f32 %v2045, %v2285
  %v2287 = vpop.f32.mrf.mxu0
  %2288 = vdwg.mxu0
  %2289 = vmatprep.subr.mxu0 0.0
  %v2290 = vand.u32 %v1694, 4294901760
  %v2291 = vsub.f32 %v1694, %v2290
  %2292 = vmatpush1.msra.mxu0 %v2291
  %2293 = vmatprep.subr.mxu0 0.0
  %v2294 = vand.u32 %v1693, 4294901760
  %v2295 = vsub.f32 %v1693, %v2294
  %2296 = vmatpush1.msra.mxu0 %v2295
  %2297 = vmatprep.subr.mxu0 0.0
  %v2298 = vand.u32 %v1692, 4294901760
  %v2299 = vsub.f32 %v1692, %v2298
  %2300 = vmatpush1.msra.mxu0 %v2299
  %2301 = vmatprep.subr.mxu0 0.0
  %v2302 = vand.u32 %v1691, 4294901760
  %v2303 = vsub.f32 %v1691, %v2302
  %2304 = vmatpush1.msra.mxu0 %v2303
  %2305 = vmatprep.subr.mxu0 0.0
  %v2306 = vand.u32 %v1690, 4294901760
  %v2307 = vsub.f32 %v1690, %v2306
  %2308 = vmatpush1.msra.mxu0 %v2307
  %2309 = vmatprep.subr.mxu0 0.0
  %v2310 = vand.u32 %v1689, 4294901760
  %v2311 = vsub.f32 %v1689, %v2310
  %2312 = vmatpush1.msra.mxu0 %v2311
  %2313 = vmatprep.subr.mxu0 0.0
  %v2314 = vand.u32 %v1688, 4294901760
  %v2315 = vsub.f32 %v1688, %v2314
  %2316 = vmatpush1.msra.mxu0 %v2315
  %2317 = vmatprep.subr.mxu0 0.0
  %v2318 = vand.u32 %v1687, 4294901760
  %v2319 = vsub.f32 %v1687, %v2318
  %2320 = vmatpush1.msra.mxu0 %v2319
  %2321 = vmatprep.subr.mxu0 0.0
  %v2322 = vand.u32 %v1686, 4294901760
  %v2323 = vsub.f32 %v1686, %v2322
  %2324 = vmatpush1.msra.mxu0 %v2323
  %2325 = vmatprep.subr.mxu0 0.0
  %v2326 = vand.u32 %v1685, 4294901760
  %v2327 = vsub.f32 %v1685, %v2326
  %2328 = vmatpush1.msra.mxu0 %v2327
  %2329 = vmatprep.subr.mxu0 0.0
  %v2330 = vand.u32 %v1684, 4294901760
  %v2331 = vsub.f32 %v1684, %v2330
  %2332 = vmatpush1.msra.mxu0 %v2331
  %2333 = vmatprep.subr.mxu0 0.0
  %v2334 = vand.u32 %v1683, 4294901760
  %v2335 = vsub.f32 %v1683, %v2334
  %2336 = vmatpush1.msra.mxu0 %v2335
  %2337 = vmatprep.subr.mxu0 0.0
  %v2338 = vand.u32 %v1682, 4294901760
  %v2339 = vsub.f32 %v1682, %v2338
  %2340 = vmatpush1.msra.mxu0 %v2339
  %2341 = vmatprep.subr.mxu0 0.0
  %v2342 = vand.u32 %v1681, 4294901760
  %v2343 = vsub.f32 %v1681, %v2342
  %2344 = vmatpush1.msra.mxu0 %v2343
  %2345 = vmatprep.subr.mxu0 0.0
  %v2346 = vand.u32 %v1680, 4294901760
  %v2347 = vsub.f32 %v1680, %v2346
  %2348 = vmatpush1.msra.mxu0 %v2347
  %2349 = vmatprep.subr.mxu0 0.0
  %v2350 = vand.u32 %v1679, 4294901760
  %v2351 = vsub.f32 %v1679, %v2350
  %2352 = vmatpush1.msra.mxu0 %v2351
  %2353 = vmatprep.subr.mxu0 0.0
  %2354 = vmatpush2.msra.mxu0 0.0
  %2355 = vmatprep.subr.mxu0 0.0
  %2356 = vmatpush2.msra.mxu0 0.0
  %2357 = vmatprep.subr.mxu0 0.0
  %2358 = vmatpush2.msra.mxu0 0.0
  %2359 = vmatprep.subr.mxu0 0.0
  %2360 = vmatpush2.msra.mxu0 0.0
  %2361 = vmatprep.subr.mxu0 0.0
  %2362 = vmatpush2.msra.mxu0 0.0
  %2363 = vmatprep.subr.mxu0 0.0
  %2364 = vmatpush2.msra.mxu0 0.0
  %2365 = vmatprep.subr.mxu0 0.0
  %2366 = vmatpush2.msra.mxu0 0.0
  %2367 = vmatprep.subr.mxu0 0.0
  %2368 = vmatpush2.msra.mxu0 0.0
  %2369 = vmatprep.subr.mxu0 0.0
  %2370 = vmatpush2.msra.mxu0 0.0
  %2371 = vmatprep.subr.mxu0 0.0
  %2372 = vmatpush2.msra.mxu0 0.0
  %2373 = vmatprep.subr.mxu0 0.0
  %2374 = vmatpush2.msra.mxu0 0.0
  %2375 = vmatprep.subr.mxu0 0.0
  %2376 = vmatpush2.msra.mxu0 0.0
  %2377 = vmatprep.subr.mxu0 0.0
  %2378 = vmatpush2.msra.mxu0 0.0
  %2379 = vmatprep.subr.mxu0 0.0
  %2380 = vmatpush2.msra.mxu0 0.0
  %2381 = vmatprep.subr.mxu0 0.0
  %2382 = vmatpush2.msra.mxu0 0.0
  %2383 = vmatprep.subr.mxu0 0.0
  %2384 = vmatpush2.msra.mxu0 0.0
  %2385 = vmatprep.mubr.f32.mxu0 0.0
  %v2386 = vand.u32 %v1695, 4294901760
  %v2387 = vsub.f32 %v1695, %v2386
  %2388 = vmatmul.mubr.f32.gmra.mxu0 %v2387
  %v2389 = vpop.f32.mrf.mxu0
  %v2390 = vadd.f32 %v2196, %v2389
  %v2391 = vpop.f32.mrf.mxu0
  %2392 = vmatprep.mubr.f32.mxu0 0.0
  %v2393 = vand.u32 %v1696, 4294901760
  %v2394 = vsub.f32 %v1696, %v2393
  %2395 = vmatmul.mubr.f32.gmra.mxu0 %v2394
  %v2396 = vpop.f32.mrf.mxu0
  %v2397 = vadd.f32 %v2202, %v2396
  %v2398 = vpop.f32.mrf.mxu0
  %2399 = vmatprep.mubr.f32.mxu0 0.0
  %v2400 = vand.u32 %v1697, 4294901760
  %v2401 = vsub.f32 %v1697, %v2400
  %2402 = vmatmul.mubr.f32.gmra.mxu0 %v2401
  %v2403 = vpop.f32.mrf.mxu0
  %v2404 = vadd.f32 %v2208, %v2403
  %v2405 = vpop.f32.mrf.mxu0
  %2406 = vmatprep.mubr.f32.mxu0 0.0
  %v2407 = vand.u32 %v1698, 4294901760
  %v2408 = vsub.f32 %v1698, %v2407
  %2409 = vmatmul.mubr.f32.gmra.mxu0 %v2408
  %v2410 = vpop.f32.mrf.mxu0
  %v2411 = vadd.f32 %v2214, %v2410
  %v2412 = vpop.f32.mrf.mxu0
  %2413 = vmatprep.mubr.f32.mxu0 0.0
  %v2414 = vand.u32 %v1699, 4294901760
  %v2415 = vsub.f32 %v1699, %v2414
  %2416 = vmatmul.mubr.f32.gmra.mxu0 %v2415
  %v2417 = vpop.f32.mrf.mxu0
  %v2418 = vadd.f32 %v2220, %v2417
  %v2419 = vpop.f32.mrf.mxu0
  %2420 = vmatprep.mubr.f32.mxu0 0.0
  %v2421 = vand.u32 %v1700, 4294901760
  %v2422 = vsub.f32 %v1700, %v2421
  %2423 = vmatmul.mubr.f32.gmra.mxu0 %v2422
  %v2424 = vpop.f32.mrf.mxu0
  %v2425 = vadd.f32 %v2226, %v2424
  %v2426 = vpop.f32.mrf.mxu0
  %2427 = vmatprep.mubr.f32.mxu0 0.0
  %v2428 = vand.u32 %v1701, 4294901760
  %v2429 = vsub.f32 %v1701, %v2428
  %2430 = vmatmul.mubr.f32.gmra.mxu0 %v2429
  %v2431 = vpop.f32.mrf.mxu0
  %v2432 = vadd.f32 %v2232, %v2431
  %v2433 = vpop.f32.mrf.mxu0
  %2434 = vmatprep.mubr.f32.mxu0 0.0
  %v2435 = vand.u32 %v1702, 4294901760
  %v2436 = vsub.f32 %v1702, %v2435
  %2437 = vmatmul.mubr.f32.gmra.mxu0 %v2436
  %v2438 = vpop.f32.mrf.mxu0
  %v2439 = vadd.f32 %v2238, %v2438
  %v2440 = vpop.f32.mrf.mxu0
  %2441 = vmatprep.mubr.f32.mxu0 0.0
  %v2442 = vand.u32 %v1703, 4294901760
  %v2443 = vsub.f32 %v1703, %v2442
  %2444 = vmatmul.mubr.f32.gmra.mxu0 %v2443
  %v2445 = vpop.f32.mrf.mxu0
  %v2446 = vadd.f32 %v2244, %v2445
  %v2447 = vpop.f32.mrf.mxu0
  %2448 = vmatprep.mubr.f32.mxu0 0.0
  %v2449 = vand.u32 %v1704, 4294901760
  %v2450 = vsub.f32 %v1704, %v2449
  %2451 = vmatmul.mubr.f32.gmra.mxu0 %v2450
  %v2452 = vpop.f32.mrf.mxu0
  %v2453 = vadd.f32 %v2250, %v2452
  %v2454 = vpop.f32.mrf.mxu0
  %2455 = vmatprep.mubr.f32.mxu0 0.0
  %v2456 = vand.u32 %v1705, 4294901760
  %v2457 = vsub.f32 %v1705, %v2456
  %2458 = vmatmul.mubr.f32.gmra.mxu0 %v2457
  %v2459 = vpop.f32.mrf.mxu0
  %v2460 = vadd.f32 %v2256, %v2459
  %v2461 = vpop.f32.mrf.mxu0
  %2462 = vmatprep.mubr.f32.mxu0 0.0
  %v2463 = vand.u32 %v1706, 4294901760
  %v2464 = vsub.f32 %v1706, %v2463
  %2465 = vmatmul.mubr.f32.gmra.mxu0 %v2464
  %v2466 = vpop.f32.mrf.mxu0
  %v2467 = vadd.f32 %v2262, %v2466
  %v2468 = vpop.f32.mrf.mxu0
  %2469 = vmatprep.mubr.f32.mxu0 0.0
  %v2470 = vand.u32 %v1707, 4294901760
  %v2471 = vsub.f32 %v1707, %v2470
  %2472 = vmatmul.mubr.f32.gmra.mxu0 %v2471
  %v2473 = vpop.f32.mrf.mxu0
  %v2474 = vadd.f32 %v2268, %v2473
  %v2475 = vpop.f32.mrf.mxu0
  %2476 = vmatprep.mubr.f32.mxu0 0.0
  %v2477 = vand.u32 %v1708, 4294901760
  %v2478 = vsub.f32 %v1708, %v2477
  %2479 = vmatmul.mubr.f32.gmra.mxu0 %v2478
  %v2480 = vpop.f32.mrf.mxu0
  %v2481 = vadd.f32 %v2274, %v2480
  %v2482 = vpop.f32.mrf.mxu0
  %2483 = vmatprep.mubr.f32.mxu0 0.0
  %v2484 = vand.u32 %v1709, 4294901760
  %v2485 = vsub.f32 %v1709, %v2484
  %2486 = vmatmul.mubr.f32.gmra.mxu0 %v2485
  %v2487 = vpop.f32.mrf.mxu0
  %v2488 = vadd.f32 %v2280, %v2487
  %v2489 = vpop.f32.mrf.mxu0
  %2490 = vmatprep.mubr.f32.mxu0 0.0
  %v2491 = vand.u32 %v1710, 4294901760
  %v2492 = vsub.f32 %v1710, %v2491
  %2493 = vmatmul.mubr.f32.gmra.mxu0 %v2492
  %v2494 = vpop.f32.mrf.mxu0
  %v2495 = vadd.f32 %v2286, %v2494
  %v2496 = vpop.f32.mrf.mxu0
  %2497 = vdwg.mxu0
  %2498 = vmatprep.subr.mxu0 0.0
  %v2499 = vand.u32 %v1694, 4294901760
  %2500 = vmatpush1.msra.mxu0 %v2499
  %2501 = vmatprep.subr.mxu0 0.0
  %v2502 = vand.u32 %v1693, 4294901760
  %2503 = vmatpush1.msra.mxu0 %v2502
  %2504 = vmatprep.subr.mxu0 0.0
  %v2505 = vand.u32 %v1692, 4294901760
  %2506 = vmatpush1.msra.mxu0 %v2505
  %2507 = vmatprep.subr.mxu0 0.0
  %v2508 = vand.u32 %v1691, 4294901760
  %2509 = vmatpush1.msra.mxu0 %v2508
  %2510 = vmatprep.subr.mxu0 0.0
  %v2511 = vand.u32 %v1690, 4294901760
  %2512 = vmatpush1.msra.mxu0 %v2511
  %2513 = vmatprep.subr.mxu0 0.0
  %v2514 = vand.u32 %v1689, 4294901760
  %2515 = vmatpush1.msra.mxu0 %v2514
  %2516 = vmatprep.subr.mxu0 0.0
  %v2517 = vand.u32 %v1688, 4294901760
  %2518 = vmatpush1.msra.mxu0 %v2517
  %2519 = vmatprep.subr.mxu0 0.0
  %v2520 = vand.u32 %v1687, 4294901760
  %2521 = vmatpush1.msra.mxu0 %v2520
  %2522 = vmatprep.subr.mxu0 0.0
  %v2523 = vand.u32 %v1686, 4294901760
  %2524 = vmatpush1.msra.mxu0 %v2523
  %2525 = vmatprep.subr.mxu0 0.0
  %v2526 = vand.u32 %v1685, 4294901760
  %2527 = vmatpush1.msra.mxu0 %v2526
  %2528 = vmatprep.subr.mxu0 0.0
  %v2529 = vand.u32 %v1684, 4294901760
  %2530 = vmatpush1.msra.mxu0 %v2529
  %2531 = vmatprep.subr.mxu0 0.0
  %v2532 = vand.u32 %v1683, 4294901760
  %2533 = vmatpush1.msra.mxu0 %v2532
  %2534 = vmatprep.subr.mxu0 0.0
  %v2535 = vand.u32 %v1682, 4294901760
  %2536 = vmatpush1.msra.mxu0 %v2535
  %2537 = vmatprep.subr.mxu0 0.0
  %v2538 = vand.u32 %v1681, 4294901760
  %2539 = vmatpush1.msra.mxu0 %v2538
  %2540 = vmatprep.subr.mxu0 0.0
  %v2541 = vand.u32 %v1680, 4294901760
  %2542 = vmatpush1.msra.mxu0 %v2541
  %2543 = vmatprep.subr.mxu0 0.0
  %v2544 = vand.u32 %v1679, 4294901760
  %2545 = vmatpush1.msra.mxu0 %v2544
  %2546 = vmatprep.subr.mxu0 0.0
  %2547 = vmatpush2.msra.mxu0 0.0
  %2548 = vmatprep.subr.mxu0 0.0
  %2549 = vmatpush2.msra.mxu0 0.0
  %2550 = vmatprep.subr.mxu0 0.0
  %2551 = vmatpush2.msra.mxu0 0.0
  %2552 = vmatprep.subr.mxu0 0.0
  %2553 = vmatpush2.msra.mxu0 0.0
  %2554 = vmatprep.subr.mxu0 0.0
  %2555 = vmatpush2.msra.mxu0 0.0
  %2556 = vmatprep.subr.mxu0 0.0
  %2557 = vmatpush2.msra.mxu0 0.0
  %2558 = vmatprep.subr.mxu0 0.0
  %2559 = vmatpush2.msra.mxu0 0.0
  %2560 = vmatprep.subr.mxu0 0.0
  %2561 = vmatpush2.msra.mxu0 0.0
  %2562 = vmatprep.subr.mxu0 0.0
  %2563 = vmatpush2.msra.mxu0 0.0
  %2564 = vmatprep.subr.mxu0 0.0
  %2565 = vmatpush2.msra.mxu0 0.0
  %2566 = vmatprep.subr.mxu0 0.0
  %2567 = vmatpush2.msra.mxu0 0.0
  %2568 = vmatprep.subr.mxu0 0.0
  %2569 = vmatpush2.msra.mxu0 0.0
  %2570 = vmatprep.subr.mxu0 0.0
  %2571 = vmatpush2.msra.mxu0 0.0
  %2572 = vmatprep.subr.mxu0 0.0
  %2573 = vmatpush2.msra.mxu0 0.0
  %2574 = vmatprep.subr.mxu0 0.0
  %2575 = vmatpush2.msra.mxu0 0.0
  %2576 = vmatprep.subr.mxu0 0.0
  %2577 = vmatpush2.msra.mxu0 0.0
  %2578 = vmatprep.mubr.f32.mxu0 0.0
  %v2579 = vand.u32 %v1695, 4294901760
  %v2580 = vsub.f32 %v1695, %v2579
  %v2581 = vand.u32 %v2580, 4294901760
  %2582 = vmatmul.mubr.f32.gmra.mxu0 %v2581
  %v2583 = vpop.f32.mrf.mxu0
  %v2584 = vadd.f32 %v2390, %v2583
  %v2585 = vpop.f32.mrf.mxu0
  %2586 = vmatprep.mubr.f32.mxu0 0.0
  %v2587 = vand.u32 %v1696, 4294901760
  %v2588 = vsub.f32 %v1696, %v2587
  %v2589 = vand.u32 %v2588, 4294901760
  %2590 = vmatmul.mubr.f32.gmra.mxu0 %v2589
  %v2591 = vpop.f32.mrf.mxu0
  %v2592 = vadd.f32 %v2397, %v2591
  %v2593 = vpop.f32.mrf.mxu0
  %2594 = vmatprep.mubr.f32.mxu0 0.0
  %v2595 = vand.u32 %v1697, 4294901760
  %v2596 = vsub.f32 %v1697, %v2595
  %v2597 = vand.u32 %v2596, 4294901760
  %2598 = vmatmul.mubr.f32.gmra.mxu0 %v2597
  %v2599 = vpop.f32.mrf.mxu0
  %v2600 = vadd.f32 %v2404, %v2599
  %v2601 = vpop.f32.mrf.mxu0
  %2602 = vmatprep.mubr.f32.mxu0 0.0
  %v2603 = vand.u32 %v1698, 4294901760
  %v2604 = vsub.f32 %v1698, %v2603
  %v2605 = vand.u32 %v2604, 4294901760
  %2606 = vmatmul.mubr.f32.gmra.mxu0 %v2605
  %v2607 = vpop.f32.mrf.mxu0
  %v2608 = vadd.f32 %v2411, %v2607
  %v2609 = vpop.f32.mrf.mxu0
  %2610 = vmatprep.mubr.f32.mxu0 0.0
  %v2611 = vand.u32 %v1699, 4294901760
  %v2612 = vsub.f32 %v1699, %v2611
  %v2613 = vand.u32 %v2612, 4294901760
  %2614 = vmatmul.mubr.f32.gmra.mxu0 %v2613
  %v2615 = vpop.f32.mrf.mxu0
  %v2616 = vadd.f32 %v2418, %v2615
  %v2617 = vpop.f32.mrf.mxu0
  %2618 = vmatprep.mubr.f32.mxu0 0.0
  %v2619 = vand.u32 %v1700, 4294901760
  %v2620 = vsub.f32 %v1700, %v2619
  %v2621 = vand.u32 %v2620, 4294901760
  %2622 = vmatmul.mubr.f32.gmra.mxu0 %v2621
  %v2623 = vpop.f32.mrf.mxu0
  %v2624 = vadd.f32 %v2425, %v2623
  %v2625 = vpop.f32.mrf.mxu0
  %2626 = vmatprep.mubr.f32.mxu0 0.0
  %v2627 = vand.u32 %v1701, 4294901760
  %v2628 = vsub.f32 %v1701, %v2627
  %v2629 = vand.u32 %v2628, 4294901760
  %2630 = vmatmul.mubr.f32.gmra.mxu0 %v2629
  %v2631 = vpop.f32.mrf.mxu0
  %v2632 = vadd.f32 %v2432, %v2631
  %v2633 = vpop.f32.mrf.mxu0
  %2634 = vmatprep.mubr.f32.mxu0 0.0
  %v2635 = vand.u32 %v1702, 4294901760
  %v2636 = vsub.f32 %v1702, %v2635
  %v2637 = vand.u32 %v2636, 4294901760
  %2638 = vmatmul.mubr.f32.gmra.mxu0 %v2637
  %v2639 = vpop.f32.mrf.mxu0
  %v2640 = vadd.f32 %v2439, %v2639
  %v2641 = vpop.f32.mrf.mxu0
  %2642 = vmatprep.mubr.f32.mxu0 0.0
  %v2643 = vand.u32 %v1703, 4294901760
  %v2644 = vsub.f32 %v1703, %v2643
  %v2645 = vand.u32 %v2644, 4294901760
  %2646 = vmatmul.mubr.f32.gmra.mxu0 %v2645
  %v2647 = vpop.f32.mrf.mxu0
  %v2648 = vadd.f32 %v2446, %v2647
  %v2649 = vpop.f32.mrf.mxu0
  %2650 = vmatprep.mubr.f32.mxu0 0.0
  %v2651 = vand.u32 %v1704, 4294901760
  %v2652 = vsub.f32 %v1704, %v2651
  %v2653 = vand.u32 %v2652, 4294901760
  %2654 = vmatmul.mubr.f32.gmra.mxu0 %v2653
  %v2655 = vpop.f32.mrf.mxu0
  %v2656 = vadd.f32 %v2453, %v2655
  %v2657 = vpop.f32.mrf.mxu0
  %2658 = vmatprep.mubr.f32.mxu0 0.0
  %v2659 = vand.u32 %v1705, 4294901760
  %v2660 = vsub.f32 %v1705, %v2659
  %v2661 = vand.u32 %v2660, 4294901760
  %2662 = vmatmul.mubr.f32.gmra.mxu0 %v2661
  %v2663 = vpop.f32.mrf.mxu0
  %v2664 = vadd.f32 %v2460, %v2663
  %v2665 = vpop.f32.mrf.mxu0
  %2666 = vmatprep.mubr.f32.mxu0 0.0
  %v2667 = vand.u32 %v1706, 4294901760
  %v2668 = vsub.f32 %v1706, %v2667
  %v2669 = vand.u32 %v2668, 4294901760
  %2670 = vmatmul.mubr.f32.gmra.mxu0 %v2669
  %v2671 = vpop.f32.mrf.mxu0
  %v2672 = vadd.f32 %v2467, %v2671
  %v2673 = vpop.f32.mrf.mxu0
  %2674 = vmatprep.mubr.f32.mxu0 0.0
  %v2675 = vand.u32 %v1707, 4294901760
  %v2676 = vsub.f32 %v1707, %v2675
  %v2677 = vand.u32 %v2676, 4294901760
  %2678 = vmatmul.mubr.f32.gmra.mxu0 %v2677
  %v2679 = vpop.f32.mrf.mxu0
  %v2680 = vadd.f32 %v2474, %v2679
  %v2681 = vpop.f32.mrf.mxu0
  %2682 = vmatprep.mubr.f32.mxu0 0.0
  %v2683 = vand.u32 %v1708, 4294901760
  %v2684 = vsub.f32 %v1708, %v2683
  %v2685 = vand.u32 %v2684, 4294901760
  %2686 = vmatmul.mubr.f32.gmra.mxu0 %v2685
  %v2687 = vpop.f32.mrf.mxu0
  %v2688 = vadd.f32 %v2481, %v2687
  %v2689 = vpop.f32.mrf.mxu0
  %2690 = vmatprep.mubr.f32.mxu0 0.0
  %v2691 = vand.u32 %v1709, 4294901760
  %v2692 = vsub.f32 %v1709, %v2691
  %v2693 = vand.u32 %v2692, 4294901760
  %2694 = vmatmul.mubr.f32.gmra.mxu0 %v2693
  %v2695 = vpop.f32.mrf.mxu0
  %v2696 = vadd.f32 %v2488, %v2695
  %v2697 = vpop.f32.mrf.mxu0
  %2698 = vmatprep.mubr.f32.mxu0 0.0
  %v2699 = vand.u32 %v1710, 4294901760
  %v2700 = vsub.f32 %v1710, %v2699
  %v2701 = vand.u32 %v2700, 4294901760
  %2702 = vmatmul.mubr.f32.gmra.mxu0 %v2701
  %v2703 = vpop.f32.mrf.mxu0
  %v2704 = vadd.f32 %v2495, %v2703
  %v2705 = vpop.f32.mrf.mxu0
  %2706 = vdwg.mxu0
  %2707 = vmatprep.subr.mxu0 0.0
  %v2708 = vand.u32 %v1694, 4294901760
  %v2709 = vsub.f32 %v1694, %v2708
  %v2710 = vand.u32 %v2709, 4294901760
  %2711 = vmatpush1.msra.mxu0 %v2710
  %2712 = vmatprep.subr.mxu0 0.0
  %v2713 = vand.u32 %v1693, 4294901760
  %v2714 = vsub.f32 %v1693, %v2713
  %v2715 = vand.u32 %v2714, 4294901760
  %2716 = vmatpush1.msra.mxu0 %v2715
  %2717 = vmatprep.subr.mxu0 0.0
  %v2718 = vand.u32 %v1692, 4294901760
  %v2719 = vsub.f32 %v1692, %v2718
  %v2720 = vand.u32 %v2719, 4294901760
  %2721 = vmatpush1.msra.mxu0 %v2720
  %2722 = vmatprep.subr.mxu0 0.0
  %v2723 = vand.u32 %v1691, 4294901760
  %v2724 = vsub.f32 %v1691, %v2723
  %v2725 = vand.u32 %v2724, 4294901760
  %2726 = vmatpush1.msra.mxu0 %v2725
  %2727 = vmatprep.subr.mxu0 0.0
  %v2728 = vand.u32 %v1690, 4294901760
  %v2729 = vsub.f32 %v1690, %v2728
  %v2730 = vand.u32 %v2729, 4294901760
  %2731 = vmatpush1.msra.mxu0 %v2730
  %2732 = vmatprep.subr.mxu0 0.0
  %v2733 = vand.u32 %v1689, 4294901760
  %v2734 = vsub.f32 %v1689, %v2733
  %v2735 = vand.u32 %v2734, 4294901760
  %2736 = vmatpush1.msra.mxu0 %v2735
  %2737 = vmatprep.subr.mxu0 0.0
  %v2738 = vand.u32 %v1688, 4294901760
  %v2739 = vsub.f32 %v1688, %v2738
  %v2740 = vand.u32 %v2739, 4294901760
  %2741 = vmatpush1.msra.mxu0 %v2740
  %2742 = vmatprep.subr.mxu0 0.0
  %v2743 = vand.u32 %v1687, 4294901760
  %v2744 = vsub.f32 %v1687, %v2743
  %v2745 = vand.u32 %v2744, 4294901760
  %2746 = vmatpush1.msra.mxu0 %v2745
  %2747 = vmatprep.subr.mxu0 0.0
  %v2748 = vand.u32 %v1686, 4294901760
  %v2749 = vsub.f32 %v1686, %v2748
  %v2750 = vand.u32 %v2749, 4294901760
  %2751 = vmatpush1.msra.mxu0 %v2750
  %2752 = vmatprep.subr.mxu0 0.0
  %v2753 = vand.u32 %v1685, 4294901760
  %v2754 = vsub.f32 %v1685, %v2753
  %v2755 = vand.u32 %v2754, 4294901760
  %2756 = vmatpush1.msra.mxu0 %v2755
  %2757 = vmatprep.subr.mxu0 0.0
  %v2758 = vand.u32 %v1684, 4294901760
  %v2759 = vsub.f32 %v1684, %v2758
  %v2760 = vand.u32 %v2759, 4294901760
  %2761 = vmatpush1.msra.mxu0 %v2760
  %2762 = vmatprep.subr.mxu0 0.0
  %v2763 = vand.u32 %v1683, 4294901760
  %v2764 = vsub.f32 %v1683, %v2763
  %v2765 = vand.u32 %v2764, 4294901760
  %2766 = vmatpush1.msra.mxu0 %v2765
  %2767 = vmatprep.subr.mxu0 0.0
  %v2768 = vand.u32 %v1682, 4294901760
  %v2769 = vsub.f32 %v1682, %v2768
  %v2770 = vand.u32 %v2769, 4294901760
  %2771 = vmatpush1.msra.mxu0 %v2770
  %2772 = vmatprep.subr.mxu0 0.0
  %v2773 = vand.u32 %v1681, 4294901760
  %v2774 = vsub.f32 %v1681, %v2773
  %v2775 = vand.u32 %v2774, 4294901760
  %2776 = vmatpush1.msra.mxu0 %v2775
  %2777 = vmatprep.subr.mxu0 0.0
  %v2778 = vand.u32 %v1680, 4294901760
  %v2779 = vsub.f32 %v1680, %v2778
  %v2780 = vand.u32 %v2779, 4294901760
  %2781 = vmatpush1.msra.mxu0 %v2780
  %2782 = vmatprep.subr.mxu0 0.0
  %v2783 = vand.u32 %v1679, 4294901760
  %v2784 = vsub.f32 %v1679, %v2783
  %v2785 = vand.u32 %v2784, 4294901760
  %2786 = vmatpush1.msra.mxu0 %v2785
  %2787 = vmatprep.subr.mxu0 0.0
  %2788 = vmatpush2.msra.mxu0 0.0
  %2789 = vmatprep.subr.mxu0 0.0
  %2790 = vmatpush2.msra.mxu0 0.0
  %2791 = vmatprep.subr.mxu0 0.0
  %2792 = vmatpush2.msra.mxu0 0.0
  %2793 = vmatprep.subr.mxu0 0.0
  %2794 = vmatpush2.msra.mxu0 0.0
  %2795 = vmatprep.subr.mxu0 0.0
  %2796 = vmatpush2.msra.mxu0 0.0
  %2797 = vmatprep.subr.mxu0 0.0
  %2798 = vmatpush2.msra.mxu0 0.0
  %2799 = vmatprep.subr.mxu0 0.0
  %2800 = vmatpush2.msra.mxu0 0.0
  %2801 = vmatprep.subr.mxu0 0.0
  %2802 = vmatpush2.msra.mxu0 0.0
  %2803 = vmatprep.subr.mxu0 0.0
  %2804 = vmatpush2.msra.mxu0 0.0
  %2805 = vmatprep.subr.mxu0 0.0
  %2806 = vmatpush2.msra.mxu0 0.0
  %2807 = vmatprep.subr.mxu0 0.0
  %2808 = vmatpush2.msra.mxu0 0.0
  %2809 = vmatprep.subr.mxu0 0.0
  %2810 = vmatpush2.msra.mxu0 0.0
  %2811 = vmatprep.subr.mxu0 0.0
  %2812 = vmatpush2.msra.mxu0 0.0
  %2813 = vmatprep.subr.mxu0 0.0
  %2814 = vmatpush2.msra.mxu0 0.0
  %2815 = vmatprep.subr.mxu0 0.0
  %2816 = vmatpush2.msra.mxu0 0.0
  %2817 = vmatprep.subr.mxu0 0.0
  %2818 = vmatpush2.msra.mxu0 0.0
  %2819 = vmatprep.mubr.f32.mxu0 0.0
  %v2820 = vand.u32 %v1695, 4294901760
  %2821 = vmatmul.mubr.f32.gmra.mxu0 %v2820
  %v2822 = vpop.f32.mrf.mxu0
  %v2823 = vadd.f32 %v2584, %v2822
  %v2824 = vpop.f32.mrf.mxu0
  %2825 = vmatprep.mubr.f32.mxu0 0.0
  %v2826 = vand.u32 %v1696, 4294901760
  %2827 = vmatmul.mubr.f32.gmra.mxu0 %v2826
  %v2828 = vpop.f32.mrf.mxu0
  %v2829 = vadd.f32 %v2592, %v2828
  %v2830 = vpop.f32.mrf.mxu0
  %2831 = vmatprep.mubr.f32.mxu0 0.0
  %v2832 = vand.u32 %v1697, 4294901760
  %2833 = vmatmul.mubr.f32.gmra.mxu0 %v2832
  %v2834 = vpop.f32.mrf.mxu0
  %v2835 = vadd.f32 %v2600, %v2834
  %v2836 = vpop.f32.mrf.mxu0
  %2837 = vmatprep.mubr.f32.mxu0 0.0
  %v2838 = vand.u32 %v1698, 4294901760
  %2839 = vmatmul.mubr.f32.gmra.mxu0 %v2838
  %v2840 = vpop.f32.mrf.mxu0
  %v2841 = vadd.f32 %v2608, %v2840
  %v2842 = vpop.f32.mrf.mxu0
  %2843 = vmatprep.mubr.f32.mxu0 0.0
  %v2844 = vand.u32 %v1699, 4294901760
  %2845 = vmatmul.mubr.f32.gmra.mxu0 %v2844
  %v2846 = vpop.f32.mrf.mxu0
  %v2847 = vadd.f32 %v2616, %v2846
  %v2848 = vpop.f32.mrf.mxu0
  %2849 = vmatprep.mubr.f32.mxu0 0.0
  %v2850 = vand.u32 %v1700, 4294901760
  %2851 = vmatmul.mubr.f32.gmra.mxu0 %v2850
  %v2852 = vpop.f32.mrf.mxu0
  %v2853 = vadd.f32 %v2624, %v2852
  %v2854 = vpop.f32.mrf.mxu0
  %2855 = vmatprep.mubr.f32.mxu0 0.0
  %v2856 = vand.u32 %v1701, 4294901760
  %2857 = vmatmul.mubr.f32.gmra.mxu0 %v2856
  %v2858 = vpop.f32.mrf.mxu0
  %v2859 = vadd.f32 %v2632, %v2858
  %v2860 = vpop.f32.mrf.mxu0
  %2861 = vmatprep.mubr.f32.mxu0 0.0
  %v2862 = vand.u32 %v1702, 4294901760
  %2863 = vmatmul.mubr.f32.gmra.mxu0 %v2862
  %v2864 = vpop.f32.mrf.mxu0
  %v2865 = vadd.f32 %v2640, %v2864
  %v2866 = vpop.f32.mrf.mxu0
  %2867 = vmatprep.mubr.f32.mxu0 0.0
  %v2868 = vand.u32 %v1703, 4294901760
  %2869 = vmatmul.mubr.f32.gmra.mxu0 %v2868
  %v2870 = vpop.f32.mrf.mxu0
  %v2871 = vadd.f32 %v2648, %v2870
  %v2872 = vpop.f32.mrf.mxu0
  %2873 = vmatprep.mubr.f32.mxu0 0.0
  %v2874 = vand.u32 %v1704, 4294901760
  %2875 = vmatmul.mubr.f32.gmra.mxu0 %v2874
  %v2876 = vpop.f32.mrf.mxu0
  %v2877 = vadd.f32 %v2656, %v2876
  %v2878 = vpop.f32.mrf.mxu0
  %2879 = vmatprep.mubr.f32.mxu0 0.0
  %v2880 = vand.u32 %v1705, 4294901760
  %2881 = vmatmul.mubr.f32.gmra.mxu0 %v2880
  %v2882 = vpop.f32.mrf.mxu0
  %v2883 = vadd.f32 %v2664, %v2882
  %v2884 = vpop.f32.mrf.mxu0
  %2885 = vmatprep.mubr.f32.mxu0 0.0
  %v2886 = vand.u32 %v1706, 4294901760
  %2887 = vmatmul.mubr.f32.gmra.mxu0 %v2886
  %v2888 = vpop.f32.mrf.mxu0
  %v2889 = vadd.f32 %v2672, %v2888
  %v2890 = vpop.f32.mrf.mxu0
  %2891 = vmatprep.mubr.f32.mxu0 0.0
  %v2892 = vand.u32 %v1707, 4294901760
  %2893 = vmatmul.mubr.f32.gmra.mxu0 %v2892
  %v2894 = vpop.f32.mrf.mxu0
  %v2895 = vadd.f32 %v2680, %v2894
  %v2896 = vpop.f32.mrf.mxu0
  %2897 = vmatprep.mubr.f32.mxu0 0.0
  %v2898 = vand.u32 %v1708, 4294901760
  %2899 = vmatmul.mubr.f32.gmra.mxu0 %v2898
  %v2900 = vpop.f32.mrf.mxu0
  %v2901 = vadd.f32 %v2688, %v2900
  %v2902 = vpop.f32.mrf.mxu0
  %2903 = vmatprep.mubr.f32.mxu0 0.0
  %v2904 = vand.u32 %v1709, 4294901760
  %2905 = vmatmul.mubr.f32.gmra.mxu0 %v2904
  %v2906 = vpop.f32.mrf.mxu0
  %v2907 = vadd.f32 %v2696, %v2906
  %v2908 = vpop.f32.mrf.mxu0
  %2909 = vmatprep.mubr.f32.mxu0 0.0
  %v2910 = vand.u32 %v1710, 4294901760
  %2911 = vmatmul.mubr.f32.gmra.mxu0 %v2910
  %v2912 = vpop.f32.mrf.mxu0
  %v2913 = vadd.f32 %v2704, %v2912
  %v2914 = vpop.f32.mrf.mxu0
  %2915 = vdwg.mxu0
  %2916 = vmatprep.subr.mxu0 0.0
  %v2917 = vand.u32 %v1694, 4294901760
  %2918 = vmatpush1.msra.mxu0 %v2917
  %2919 = vmatprep.subr.mxu0 0.0
  %v2920 = vand.u32 %v1693, 4294901760
  %2921 = vmatpush1.msra.mxu0 %v2920
  %2922 = vmatprep.subr.mxu0 0.0
  %v2923 = vand.u32 %v1692, 4294901760
  %2924 = vmatpush1.msra.mxu0 %v2923
  %2925 = vmatprep.subr.mxu0 0.0
  %v2926 = vand.u32 %v1691, 4294901760
  %2927 = vmatpush1.msra.mxu0 %v2926
  %2928 = vmatprep.subr.mxu0 0.0
  %v2929 = vand.u32 %v1690, 4294901760
  %2930 = vmatpush1.msra.mxu0 %v2929
  %2931 = vmatprep.subr.mxu0 0.0
  %v2932 = vand.u32 %v1689, 4294901760
  %2933 = vmatpush1.msra.mxu0 %v2932
  %2934 = vmatprep.subr.mxu0 0.0
  %v2935 = vand.u32 %v1688, 4294901760
  %2936 = vmatpush1.msra.mxu0 %v2935
  %2937 = vmatprep.subr.mxu0 0.0
  %v2938 = vand.u32 %v1687, 4294901760
  %2939 = vmatpush1.msra.mxu0 %v2938
  %2940 = vmatprep.subr.mxu0 0.0
  %v2941 = vand.u32 %v1686, 4294901760
  %2942 = vmatpush1.msra.mxu0 %v2941
  %2943 = vmatprep.subr.mxu0 0.0
  %v2944 = vand.u32 %v1685, 4294901760
  %2945 = vmatpush1.msra.mxu0 %v2944
  %2946 = vmatprep.subr.mxu0 0.0
  %v2947 = vand.u32 %v1684, 4294901760
  %2948 = vmatpush1.msra.mxu0 %v2947
  %2949 = vmatprep.subr.mxu0 0.0
  %v2950 = vand.u32 %v1683, 4294901760
  %2951 = vmatpush1.msra.mxu0 %v2950
  %2952 = vmatprep.subr.mxu0 0.0
  %v2953 = vand.u32 %v1682, 4294901760
  %2954 = vmatpush1.msra.mxu0 %v2953
  %2955 = vmatprep.subr.mxu0 0.0
  %v2956 = vand.u32 %v1681, 4294901760
  %2957 = vmatpush1.msra.mxu0 %v2956
  %2958 = vmatprep.subr.mxu0 0.0
  %v2959 = vand.u32 %v1680, 4294901760
  %2960 = vmatpush1.msra.mxu0 %v2959
  %2961 = vmatprep.subr.mxu0 0.0
  %v2962 = vand.u32 %v1679, 4294901760
  %2963 = vmatpush1.msra.mxu0 %v2962
  %2964 = vmatprep.subr.mxu0 0.0
  %2965 = vmatpush2.msra.mxu0 0.0
  %2966 = vmatprep.subr.mxu0 0.0
  %2967 = vmatpush2.msra.mxu0 0.0
  %2968 = vmatprep.subr.mxu0 0.0
  %2969 = vmatpush2.msra.mxu0 0.0
  %2970 = vmatprep.subr.mxu0 0.0
  %2971 = vmatpush2.msra.mxu0 0.0
  %2972 = vmatprep.subr.mxu0 0.0
  %2973 = vmatpush2.msra.mxu0 0.0
  %2974 = vmatprep.subr.mxu0 0.0
  %2975 = vmatpush2.msra.mxu0 0.0
  %2976 = vmatprep.subr.mxu0 0.0
  %2977 = vmatpush2.msra.mxu0 0.0
  %2978 = vmatprep.subr.mxu0 0.0
  %2979 = vmatpush2.msra.mxu0 0.0
  %2980 = vmatprep.subr.mxu0 0.0
  %2981 = vmatpush2.msra.mxu0 0.0
  %2982 = vmatprep.subr.mxu0 0.0
  %2983 = vmatpush2.msra.mxu0 0.0
  %2984 = vmatprep.subr.mxu0 0.0
  %2985 = vmatpush2.msra.mxu0 0.0
  %2986 = vmatprep.subr.mxu0 0.0
  %2987 = vmatpush2.msra.mxu0 0.0
  %2988 = vmatprep.subr.mxu0 0.0
  %2989 = vmatpush2.msra.mxu0 0.0
  %2990 = vmatprep.subr.mxu0 0.0
  %2991 = vmatpush2.msra.mxu0 0.0
  %2992 = vmatprep.subr.mxu0 0.0
  %2993 = vmatpush2.msra.mxu0 0.0
  %2994 = vmatprep.subr.mxu0 0.0
  %2995 = vmatpush2.msra.mxu0 0.0
  %2996 = vmatprep.mubr.f32.mxu0 0.0
  %v2997 = vand.u32 %v1695, 4294901760
  %2998 = vmatmul.mubr.f32.gmra.mxu0 %v2997
  %v2999 = vpop.f32.mrf.mxu0
  %v3000 = vadd.f32 %v2823, %v2999
  %v3001 = vpop.f32.mrf.mxu0
  %3002 = vmatprep.mubr.f32.mxu0 0.0
  %v3003 = vand.u32 %v1696, 4294901760
  %3004 = vmatmul.mubr.f32.gmra.mxu0 %v3003
  %v3005 = vpop.f32.mrf.mxu0
  %v3006 = vadd.f32 %v2829, %v3005
  %v3007 = vpop.f32.mrf.mxu0
  %3008 = vmatprep.mubr.f32.mxu0 0.0
  %v3009 = vand.u32 %v1697, 4294901760
  %3010 = vmatmul.mubr.f32.gmra.mxu0 %v3009
  %v3011 = vpop.f32.mrf.mxu0
  %v3012 = vadd.f32 %v2835, %v3011
  %v3013 = vpop.f32.mrf.mxu0
  %3014 = vmatprep.mubr.f32.mxu0 0.0
  %v3015 = vand.u32 %v1698, 4294901760
  %3016 = vmatmul.mubr.f32.gmra.mxu0 %v3015
  %v3017 = vpop.f32.mrf.mxu0
  %v3018 = vadd.f32 %v2841, %v3017
  %v3019 = vpop.f32.mrf.mxu0
  %3020 = vmatprep.mubr.f32.mxu0 0.0
  %v3021 = vand.u32 %v1699, 4294901760
  %3022 = vmatmul.mubr.f32.gmra.mxu0 %v3021
  %v3023 = vpop.f32.mrf.mxu0
  %v3024 = vadd.f32 %v2847, %v3023
  %v3025 = vpop.f32.mrf.mxu0
  %3026 = vmatprep.mubr.f32.mxu0 0.0
  %v3027 = vand.u32 %v1700, 4294901760
  %3028 = vmatmul.mubr.f32.gmra.mxu0 %v3027
  %v3029 = vpop.f32.mrf.mxu0
  %v3030 = vadd.f32 %v2853, %v3029
  %v3031 = vpop.f32.mrf.mxu0
  %3032 = vmatprep.mubr.f32.mxu0 0.0
  %v3033 = vand.u32 %v1701, 4294901760
  %3034 = vmatmul.mubr.f32.gmra.mxu0 %v3033
  %v3035 = vpop.f32.mrf.mxu0
  %v3036 = vadd.f32 %v2859, %v3035
  %v3037 = vpop.f32.mrf.mxu0
  %3038 = vmatprep.mubr.f32.mxu0 0.0
  %v3039 = vand.u32 %v1702, 4294901760
  %3040 = vmatmul.mubr.f32.gmra.mxu0 %v3039
  %v3041 = vpop.f32.mrf.mxu0
  %v3042 = vadd.f32 %v2865, %v3041
  %v3043 = vpop.f32.mrf.mxu0
  %3044 = vmatprep.mubr.f32.mxu0 0.0
  %v3045 = vand.u32 %v1703, 4294901760
  %3046 = vmatmul.mubr.f32.gmra.mxu0 %v3045
  %v3047 = vpop.f32.mrf.mxu0
  %v3048 = vadd.f32 %v2871, %v3047
  %v3049 = vpop.f32.mrf.mxu0
  %3050 = vmatprep.mubr.f32.mxu0 0.0
  %v3051 = vand.u32 %v1704, 4294901760
  %3052 = vmatmul.mubr.f32.gmra.mxu0 %v3051
  %v3053 = vpop.f32.mrf.mxu0
  %v3054 = vadd.f32 %v2877, %v3053
  %v3055 = vpop.f32.mrf.mxu0
  %3056 = vmatprep.mubr.f32.mxu0 0.0
  %v3057 = vand.u32 %v1705, 4294901760
  %3058 = vmatmul.mubr.f32.gmra.mxu0 %v3057
  %v3059 = vpop.f32.mrf.mxu0
  %v3060 = vadd.f32 %v2883, %v3059
  %v3061 = vpop.f32.mrf.mxu0
  %3062 = vmatprep.mubr.f32.mxu0 0.0
  %v3063 = vand.u32 %v1706, 4294901760
  %3064 = vmatmul.mubr.f32.gmra.mxu0 %v3063
  %v3065 = vpop.f32.mrf.mxu0
  %v3066 = vadd.f32 %v2889, %v3065
  %v3067 = vpop.f32.mrf.mxu0
  %3068 = vmatprep.mubr.f32.mxu0 0.0
  %v3069 = vand.u32 %v1707, 4294901760
  %3070 = vmatmul.mubr.f32.gmra.mxu0 %v3069
  %v3071 = vpop.f32.mrf.mxu0
  %v3072 = vadd.f32 %v2895, %v3071
  %v3073 = vpop.f32.mrf.mxu0
  %3074 = vmatprep.mubr.f32.mxu0 0.0
  %v3075 = vand.u32 %v1708, 4294901760
  %3076 = vmatmul.mubr.f32.gmra.mxu0 %v3075
  %v3077 = vpop.f32.mrf.mxu0
  %v3078 = vadd.f32 %v2901, %v3077
  %v3079 = vpop.f32.mrf.mxu0
  %3080 = vmatprep.mubr.f32.mxu0 0.0
  %v3081 = vand.u32 %v1709, 4294901760
  %3082 = vmatmul.mubr.f32.gmra.mxu0 %v3081
  %v3083 = vpop.f32.mrf.mxu0
  %v3084 = vadd.f32 %v2907, %v3083
  %v3085 = vpop.f32.mrf.mxu0
  %3086 = vmatprep.mubr.f32.mxu0 0.0
  %v3087 = vand.u32 %v1710, 4294901760
  %3088 = vmatmul.mubr.f32.gmra.mxu0 %v3087
  %v3089 = vpop.f32.mrf.mxu0
  %v3090 = vadd.f32 %v2913, %v3089
  %v3091 = vpop.f32.mrf.mxu0
  %3092 = vdwg.mxu0
  %v3093 = vmax.f32 %v3000, 0.0
  %v3094 = vmax.f32 %v3006, 0.0
  %v3095 = vmax.f32 %v3012, 0.0
  %v3096 = vmax.f32 %v3018, 0.0
  %v3097 = vmax.f32 %v3024, 0.0
  %v3098 = vmax.f32 %v3030, 0.0
  %v3099 = vmax.f32 %v3036, 0.0
  %v3100 = vmax.f32 %v3042, 0.0
  %v3101 = vmax.f32 %v3048, 0.0
  %v3102 = vmax.f32 %v3054, 0.0
  %v3103 = vmax.f32 %v3060, 0.0
  %v3104 = vmax.f32 %v3066, 0.0
  %v3105 = vmax.f32 %v3072, 0.0
  %v3106 = vmax.f32 %v3078, 0.0
  %v3107 = vmax.f32 %v3084, 0.0
  %v3108 = vmax.f32 %v3090, 0.0
  %v3109 = vld [vmem:[%s7] sm:$0xff]
  %v3110 = vld [vmem:[%s7 + $0x8] sm:$0xff]
  %v3111 = vld [vmem:[%s7 + $0x10] sm:$0xff]
  %v3112 = vld [vmem:[%s7 + $0x18] sm:$0xff]
  %v3113 = vld [vmem:[%s7 + $0x20] sm:$0xff]
  %v3114 = vld [vmem:[%s7 + $0x28] sm:$0xff]
  %v3115 = vld [vmem:[%s7 + $0x30] sm:$0xff]
  %v3116 = vld [vmem:[%s7 + $0x38] sm:$0xff]
  %v3117 = vld [vmem:[%s7 + $0x40] sm:$0xff]
  %v3118 = vld [vmem:[%s7 + $0x48] sm:$0xff]
  %v3119 = vld [vmem:[%s7 + $0x50] sm:$0xff]
  %v3120 = vld [vmem:[%s7 + $0x58] sm:$0xff]
  %v3121 = vld [vmem:[%s7 + $0x60] sm:$0xff]
  %v3122 = vld [vmem:[%s7 + $0x68] sm:$0xff]
  %v3123 = vld [vmem:[%s7 + $0x70] sm:$0xff]
  %v3124 = vld [vmem:[%s7 + $0x78] sm:$0xff]
  %3126 = vset.pattern.permute.xlu0 0
  %3127 = vperm.xlu0 %3126, %v3109
  %v3128 = vpop.permute.xlu0 %3127
  %3131 = vset.pattern.permute.xlu0 0
  %3132 = vperm.xlu0 %3131, %v3110
  %v3133 = vpop.permute.xlu0 %3132
  %3136 = vset.pattern.permute.xlu0 0
  %3137 = vperm.xlu0 %3136, %v3111
  %v3138 = vpop.permute.xlu0 %3137
  %3141 = vset.pattern.permute.xlu0 0
  %3142 = vperm.xlu0 %3141, %v3112
  %v3143 = vpop.permute.xlu0 %3142
  %3146 = vset.pattern.permute.xlu0 0
  %3147 = vperm.xlu0 %3146, %v3113
  %v3148 = vpop.permute.xlu0 %3147
  %3151 = vset.pattern.permute.xlu0 0
  %3152 = vperm.xlu0 %3151, %v3114
  %v3153 = vpop.permute.xlu0 %3152
  %3156 = vset.pattern.permute.xlu0 0
  %3157 = vperm.xlu0 %3156, %v3115
  %v3158 = vpop.permute.xlu0 %3157
  %3161 = vset.pattern.permute.xlu0 0
  %3162 = vperm.xlu0 %3161, %v3116
  %v3163 = vpop.permute.xlu0 %3162
  %3166 = vset.pattern.permute.xlu0 0
  %3167 = vperm.xlu0 %3166, %v3117
  %v3168 = vpop.permute.xlu0 %3167
  %3171 = vset.pattern.permute.xlu0 0
  %3172 = vperm.xlu0 %3171, %v3118
  %v3173 = vpop.permute.xlu0 %3172
  %3176 = vset.pattern.permute.xlu0 0
  %3177 = vperm.xlu0 %3176, %v3119
  %v3178 = vpop.permute.xlu0 %3177
  %3181 = vset.pattern.permute.xlu0 0
  %3182 = vperm.xlu0 %3181, %v3120
  %v3183 = vpop.permute.xlu0 %3182
  %3186 = vset.pattern.permute.xlu0 0
  %3187 = vperm.xlu0 %3186, %v3121
  %v3188 = vpop.permute.xlu0 %3187
  %3191 = vset.pattern.permute.xlu0 0
  %3192 = vperm.xlu0 %3191, %v3122
  %v3193 = vpop.permute.xlu0 %3192
  %3196 = vset.pattern.permute.xlu0 0
  %3197 = vperm.xlu0 %3196, %v3123
  %v3198 = vpop.permute.xlu0 %3197
  %3201 = vset.pattern.permute.xlu0 0
  %3202 = vperm.xlu0 %3201, %v3124
  %v3203 = vpop.permute.xlu0 %3202
  %v3205 = vmul.f32 %v3093, %v3128
  %v3206 = vmul.f32 %v3094, %v3133
  %v3207 = vmul.f32 %v3095, %v3138
  %v3208 = vmul.f32 %v3096, %v3143
  %v3209 = vmul.f32 %v3097, %v3148
  %v3210 = vmul.f32 %v3098, %v3153
  %v3211 = vmul.f32 %v3099, %v3158
  %v3212 = vmul.f32 %v3100, %v3163
  %v3213 = vmul.f32 %v3101, %v3168
  %v3214 = vmul.f32 %v3102, %v3173
  %v3215 = vmul.f32 %v3103, %v3178
  %v3216 = vmul.f32 %v3104, %v3183
  %v3217 = vmul.f32 %v3105, %v3188
  %v3218 = vmul.f32 %v3106, %v3193
  %v3219 = vmul.f32 %v3107, %v3198
  %v3220 = vmul.f32 %v3108, %v3203
  %v3221 = vadd.f32 %v3205, %v3206
  %v3222 = vadd.f32 %v3221, %v3207
  %v3223 = vadd.f32 %v3222, %v3208
  %v3224 = vadd.f32 %v3223, %v3209
  %v3225 = vadd.f32 %v3224, %v3210
  %v3226 = vadd.f32 %v3225, %v3211
  %v3227 = vadd.f32 %v3226, %v3212
  %v3228 = vadd.f32 %v3227, %v3213
  %v3229 = vadd.f32 %v3228, %v3214
  %v3230 = vadd.f32 %v3229, %v3215
  %v3231 = vadd.f32 %v3230, %v3216
  %v3232 = vadd.f32 %v3231, %v3217
  %v3233 = vadd.f32 %v3232, %v3218
  %v3234 = vadd.f32 %v3233, %v3219
  %v3235 = vadd.f32 %v3234, %v3220
  %v3236 = vrot.slane %v3235, 4
  %v3237 = vadd.f32 %v3235, %v3236
  %v3238 = vrot.slane %v3237, 2
  %v3239 = vadd.f32 %v3237, %v3238
  %v3240 = vrot.slane %v3239, 1
  %v3241 = vadd.f32 %v3239, %v3240
  %v3242 = vld [vmem:[#allocation2] sm:$0x1]
  %3244 = vset.pattern.permute.xlu0 0
  %3245 = vperm.xlu0 %3244, %v3242
  %v3246 = vpop.permute.xlu0 %3245
  %v3248 = vlaneseq
  %v3249 = vshrl.u32 %v3248, 7
  %v3250 = vsub.s32 0, %v3249
  %v3251 = vrot.slane %v3246, %v3250
  %v3252 = vadd.f32 %v3241, %v3251
  %3253 = vst [vmem:[%s9] sm:$0x1] %v3252
  // Predicated region
  $region38: #{nonlinear_model_forward.1} parent=0 // pred_check
    _
  $region39: #{nonlinear_model_forward.1} parent=0 // pred_check_branch
    %3255 = sbr.rel (0) target = $region41
  $region40: #{nonlinear_model_forward.1} parent=0 // pred_region
    _
  $region41: #{nonlinear_model_forward.1} parent=0 // pred_fallthru
    _
  // Predicated region
  $region42: #{nonlinear_model_forward.1} parent=0 // pred_check
    _
  $region43: #{nonlinear_model_forward.1} parent=0 // pred_check_branch
    %3257 = sbr.rel (0) target = $region45
  $region44: #{nonlinear_model_forward.1} parent=0 // pred_region
    _
  $region45: #{nonlinear_model_forward.1} parent=0 // pred_fallthru
    _

</llo_original>
